<compile_context>
chip_gen: v5e
topology: v5e:2x2
jax: 0.10.0
libtpu: 0.0.40
codegen_flags: <defaults>
</compile_context>

<pallas_src>
import functools

import jax
import jax.numpy as jnp
from jax import lax
from jax.experimental import pallas as pl
from jax.experimental.pallas import tpu as pltpu


def _round_up(x, m):
    return ((x + m - 1) // m) * m


def _estimate_tile_vmem_bytes(TH, W2, W2E, Hp, Wp, Cpad, Ppad, stride, has_proj):
    """Rough per-grid-step VMEM working-set estimate (bytes)."""
    RE = TH + 2
    SPAN = (TH + 1) * stride + 3
    b = 0
    b += 2 * Hp * Wp * Cpad * 2                      # input block (double-buffered)
    w_bytes = (9 * Cpad * Ppad + 9 * Ppad * Ppad) * 2
    if has_proj:
        w_bytes += Cpad * Ppad * 2
    b += 2 * w_bytes                                  # weights (double-buffered)
    b += 2 * TH * W2 * Ppad * 2                       # bf16 output block (double-buffered)
    b += SPAN * Wp * Cpad * 2                         # xt (input band, bf16)
    b += RE * W2E * 9 * Cpad * 2                      # conv1 im2col (bf16)
    b += RE * W2E * Ppad * (4 + 2)                    # conv1 f32 acc + bf16 y1
    b += TH * W2 * 9 * Ppad * 2                       # conv2 im2col (bf16)
    b += TH * W2 * Ppad * 4                           # conv2 f32 acc
    b += TH * W2 * max(Cpad, Ppad) * 4                # shortcut / residual temp (f32)
    return b


def _pick_row_tile(H2, W2, W2E, Hp, Wp, Cpad, Ppad, stride, has_proj,
                   budget=20 * 1024 * 1024, cap=32):
    """Largest divisor of H2 (<= cap) whose working set fits the VMEM budget."""
    best = 1
    for th in range(1, min(cap, H2) + 1):
        if H2 % th:
            continue
        if _estimate_tile_vmem_bytes(th, W2, W2E, Hp, Wp, Cpad, Ppad,
                                     stride, has_proj) <= budget:
            best = th
    return best


def _basic_block_kernel(xp_ref, w1_ref, w2_ref, *rest,
                        H2, W2, TH, W2E, stride, Cpad, Ppad, has_proj):
    """One (batch, row-tile) grid step.

    xp_ref : (1, Hp, Wp, Cpad)   bf16, zero-padded NHWC input (full image)
    w1_ref : (9*Cpad, Ppad)      bf16, conv1 with all 9 taps fused into K
    w2_ref : (9*Ppad, Ppad)      bf16, conv2 (same packing)
    wsc_ref: (Cpad, Ppad)        bf16, 1x1 projection weight (only if has_proj)
    o_ref  : (1, TH, W2, Ppad)   bf16 output tile
    """
    if has_proj:
        wsc_ref, o_ref = rest
    else:
        wsc_ref = None
        (o_ref,) = rest

    t = pl.program_id(1)                     # row-tile index
    RE = TH + 2                              # conv1 rows incl. conv2 halo
    SPAN = (TH + 1) * stride + 3             # input rows needed by this tile

    row0 = pl.multiple_of(t * (TH * stride), TH * stride)
    xt = xp_ref[0, pl.ds(row0, SPAN), :, :]               # (SPAN, Wp, Cpad) bf16

    # ---- conv1: all 9 taps fused into one MXU contraction (K = 9*Cpad) -----
    taps1 = [xt[kh:kh + RE * stride:stride, kw:kw + W2E * stride:stride, :]
             for kh in range(3) for kw in range(3)]
    win1 = jnp.concatenate(taps1, axis=-1).reshape(RE * W2E, 9 * Cpad)
    acc1 = jnp.dot(win1, w1_ref[...], preferred_element_type=jnp.float32)
    acc1 = acc1.reshape(RE, W2E, Ppad)

    # ReLU (f32), then zero every extended position outside the real conv1
    # output so conv2 sees exact zero padding.  Narrow (RE, W2E, 1) mask built
    # from per-dimension iotas, broadcast across the channel lanes.
    r_glb = lax.broadcasted_iota(jnp.int32, (RE, W2E, 1), 0) + (t * TH - 1)
    c_glb = lax.broadcasted_iota(jnp.int32, (RE, W2E, 1), 1) - 1
    valid = (r_glb >= 0) & (r_glb < H2) & (c_glb >= 0) & (c_glb < W2)
    y1 = jnp.where(valid, jnp.maximum(acc1, 0.0), 0.0).astype(jnp.bfloat16)

    # ---- conv2: 3x3, stride 1, all 9 taps fused (K = 9*Ppad) ----------------
    taps2 = [y1[kh:kh + TH, kw:kw + W2, :] for kh in range(3) for kw in range(3)]
    win2 = jnp.concatenate(taps2, axis=-1).reshape(TH * W2, 9 * Ppad)
    acc2 = jnp.dot(win2, w2_ref[...], preferred_element_type=jnp.float32)

    # ---- shortcut: identity add or 1x1 projection (stride in the gather) ----
    o0 = stride + 1                          # centre of the 3x3 window in xt
    x_sc = xt[o0:o0 + TH * stride:stride, o0:o0 + W2 * stride:stride, :]
    if has_proj:
        sc = jnp.dot(x_sc.reshape(TH * W2, Cpad), wsc_ref[...],
                     preferred_element_type=jnp.float32)
    else:
        sc = x_sc.reshape(TH * W2, Cpad).astype(jnp.float32)   # Cpad == Ppad here

    out = jnp.maximum(acc2 + sc, 0.0)        # residual add + final ReLU (f32)
    o_ref[0] = out.reshape(TH, W2, Ppad).astype(o_ref.dtype)


def _pack_3x3(w, cin, cout, cin_pad, cout_pad):
    """PyTorch OIHW 3x3 weight -> (9*cin_pad, cout_pad) bf16 (kh-major, kw, cin)."""
    wt = jnp.transpose(w, (2, 3, 1, 0))                       # (3, 3, cin, cout)
    wp = jnp.zeros((3, 3, cin_pad, cout_pad), jnp.float32)
    wp = wp.at[:, :, :cin, :cout].set(wt.astype(jnp.float32))
    return wp.reshape(9 * cin_pad, cout_pad).astype(jnp.bfloat16)


@functools.partial(jax.jit, static_argnames=("stride",))
def basic_block_forward_nhwc(x_nhwc, w1, w2, w_sc=None, *, stride=1):
    """NHWC entry point.  x_nhwc: (N, H, W, Cin) f32/bf16; w1: (P, Cin, 3, 3);
    w2: (P, P, 3, 3); w_sc: (P, Cin, 1, 1) or None.
    Returns (N, H2, W2, Ppad) bf16 with channels >= P exactly zero (so chained
    blocks can consume it without extra pad/slice HBM passes)."""
    N, H, W, Cin = x_nhwc.shape
    P = w1.shape[0]
    has_proj = w_sc is not None
    if not has_proj:
        assert stride == 1 and Cin == P, "identity shortcut needs stride=1, Cin==P"

    H2 = (H - 1) // stride + 1
    W2 = (W - 1) // stride + 1
    Cpad = _round_up(Cin, 128)
    Ppad = _round_up(P, 128)
    W2E = _round_up(W2 + 2, 8)                   # extended conv1 cols (8-aligned, not pow2)

    pad_lo = 1 + stride                          # conv pad (1) + tile halo margin
    Hp = H + 2 + 2 * stride
    Wp = (W2E - 1) * stride + 3

    TH = _pick_row_tile(H2, W2, W2E, Hp, Wp, Cpad, Ppad, stride, has_proj)
    NT = H2 // TH

    xb = x_nhwc.astype(jnp.bfloat16)
    xp = jnp.pad(xb, ((0, 0),
                      (pad_lo, Hp - H - pad_lo),
                      (pad_lo, Wp - W - pad_lo),
                      (0, Cpad - Cin)))

    w1_k = _pack_3x3(w1, Cin, P, Cpad, Ppad)
    w2_k = _pack_3x3(w2, P, P, Ppad, Ppad)

    in_specs = [
        pl.BlockSpec((1, Hp, Wp, Cpad), lambda n, t: (n, 0, 0, 0)),
        pl.BlockSpec((9 * Cpad, Ppad), lambda n, t: (0, 0)),
        pl.BlockSpec((9 * Ppad, Ppad), lambda n, t: (0, 0)),
    ]
    args = [xp, w1_k, w2_k]
    if has_proj:
        wsc = jnp.zeros((Cpad, Ppad), jnp.float32)
        wsc = wsc.at[:Cin, :P].set(
            jnp.transpose(w_sc[:, :, 0, 0], (1, 0)).astype(jnp.float32))
        args.append(wsc.astype(jnp.bfloat16))
        in_specs.append(pl.BlockSpec((Cpad, Ppad), lambda n, t: (0, 0)))

    kernel = functools.partial(
        _basic_block_kernel, H2=H2, W2=W2, TH=TH, W2E=W2E, stride=stride,
        Cpad=Cpad, Ppad=Ppad, has_proj=has_proj)

    out_padded = pl.pallas_call(
        kernel,
        out_shape=jax.ShapeDtypeStruct((N, H2, W2, Ppad), jnp.bfloat16),
        grid_spec=pltpu.PrefetchScalarGridSpec(
            num_scalar_prefetch=0,
            grid=(N, NT),
            in_specs=in_specs,
            out_specs=pl.BlockSpec((1, TH, W2, Ppad), lambda n, t: (n, t, 0, 0)),
        ),
        compiler_params=pltpu.CompilerParams(
            dimension_semantics=("parallel", "parallel"),
            # tile picker budgets ~20 MiB of live working set, so the default
            # 32 MiB scoped limit is safe on every generation (v7x included);
            # on v6e this could be raised for even larger tiles.
            vmem_limit_bytes=32 * 1024 * 1024,
        ),
    )(*args)

    return out_padded


def basic_block_forward(x_nchw, w1, w2, w_sc=None, *, stride=1):
    """PyTorch-layout compat wrapper: (N, Cin, H, W) f32 in, (N, P, H2, W2) f32 out."""
    P = w1.shape[0]
    x_nhwc = jnp.transpose(x_nchw, (0, 2, 3, 1))
    out = basic_block_forward_nhwc(x_nhwc, w1, w2, w_sc, stride=stride)
    # channel slice + transpose + f32 cast fuse into a single XLA copy
    return jnp.transpose(out[..., :P], (0, 3, 1, 2)).astype(jnp.float32)


def _reference_forward(x, w1, w2, w_sc=None, *, stride=1):
    """Pure-JAX reference with the same matmul numerics as the kernel
    (bf16 operands, f32 accumulation, f32 elementwise)."""
    dn = ("NCHW", "OIHW", "NCHW")
    xb = x.astype(jnp.bfloat16)
    y = lax.conv_general_dilated(xb, w1.astype(jnp.bfloat16), (stride, stride),
                                 ((1, 1), (1, 1)), dimension_numbers=dn,
                                 preferred_element_type=jnp.float32)
    y = jnp.maximum(y, 0.0).astype(jnp.bfloat16)
    y = lax.conv_general_dilated(y, w2.astype(jnp.bfloat16), (1, 1),
                                 ((1, 1), (1, 1)), dimension_numbers=dn,
                                 preferred_element_type=jnp.float32)
    if w_sc is None:
        sc = xb.astype(jnp.float32)
    else:
        sc = lax.conv_general_dilated(xb, w_sc.astype(jnp.bfloat16),
                                      (stride, stride), ((0, 0), (0, 0)),
                                      dimension_numbers=dn,
                                      preferred_element_type=jnp.float32)
    return jnp.maximum(y + sc, 0.0)


if __name__ == "__main__":
    key = jax.random.PRNGKey(0)

    # Case 1: BasicBlock(inplanes=4, planes=8, stride=1) -> 1x1 projection shortcut.
    N, Cin, H, W, P, stride = 2, 4, 16, 16, 8, 1
    kx, k1, k2, k3 = jax.random.split(key, 4)
    x = jax.random.normal(kx, (N, Cin, H, W), jnp.float32)
    w1 = jax.random.normal(k1, (P, Cin, 3, 3), jnp.float32) * (2.0 / (Cin * 9)) ** 0.5
    w2 = jax.random.normal(k2, (P, P, 3, 3), jnp.float32) * (2.0 / (P * 9)) ** 0.5
    w_sc = jax.random.normal(k3, (P, Cin, 1, 1), jnp.float32) * (2.0 / Cin) ** 0.5

    out = jax.block_until_ready(basic_block_forward(x, w1, w2, w_sc, stride=stride))
    ref = _reference_forward(x, w1, w2, w_sc, stride=stride)
    assert out.shape == ref.shape == (N, P, H, W)
    err = float(jnp.max(jnp.abs(out - ref)))
    assert err < 5e-2, f"projection-block max abs err = {err}"

    # Case 2: BasicBlock(inplanes=8, planes=8, stride=1) -> identity shortcut.
    k4, k5, k6 = jax.random.split(k3, 3)
    x2 = jax.random.normal(k4, (N, P, H, W), jnp.float32)
    w1b = jax.random.normal(k5, (P, P, 3, 3), jnp.float32) * (2.0 / (P * 9)) ** 0.5
    w2b = jax.random.normal(k6, (P, P, 3, 3), jnp.float32) * (2.0 / (P * 9)) ** 0.5

    out2 = jax.block_until_ready(basic_block_forward(x2, w1b, w2b, None, stride=1))
    ref2 = _reference_forward(x2, w1b, w2b, None, stride=1)
    err2 = float(jnp.max(jnp.abs(out2 - ref2)))
    assert err2 < 5e-2, f"identity-block max abs err = {err2}"

    print("KERNEL_OK")
</pallas_src>

<mosaic_0001>
module attributes {stable_mosaic.version = 11 : i64} {
  func.func @_basic_block_kernel(%arg0: i32, %arg1: i32, %arg2: memref<1x20x26x128xbf16, #tpu.memory_space<vmem>>, %arg3: memref<1152x128xbf16, #tpu.memory_space<vmem>>, %arg4: memref<1152x128xbf16, #tpu.memory_space<vmem>>, %arg5: memref<128x128xbf16, #tpu.memory_space<vmem>>, %arg6: memref<1x16x16x128xbf16, #tpu.memory_space<vmem>>) attributes {dimension_semantics = [#tpu.dimension_semantics<parallel>, #tpu.dimension_semantics<parallel>], iteration_bounds = array<i64: 2, 1>, scalar_prefetch = 0 : i64, scratch_operands = 0 : i64, tpu.core_type = #tpu.core_type<tc>, window_params = [{transform_indices = @transform_0, window_bounds = array<i64: 1, 20, 26, 128>}, {pipeline_mode = #tpu.pipeline_mode<synchronous>, transform_indices = @transform_1, window_bounds = array<i64: 1152, 128>}, {pipeline_mode = #tpu.pipeline_mode<synchronous>, transform_indices = @transform_2, window_bounds = array<i64: 1152, 128>}, {pipeline_mode = #tpu.pipeline_mode<synchronous>, transform_indices = @transform_3, window_bounds = array<i64: 128, 128>}, {transform_indices = @transform_4, window_bounds = array<i64: 1, 16, 16, 128>}]} {
    %c16_i32 = arith.constant 16 : i32
    %0 = arith.muli %arg1, %c16_i32 : i32
    %1 = tpu.assume_multiple %0, 16 : i32
    %c0 = arith.constant 0 : index
    %2 = arith.index_cast %1 : i32 to index
    %c0_0 = arith.constant 0 : index
    %c0_1 = arith.constant 0 : index
    %3 = vector.load %arg2[%c0, %2, %c0_0, %c0_1] : memref<1x20x26x128xbf16, #tpu.memory_space<vmem>>, vector<1x20x26x128xbf16>
    %4 = vector.shape_cast %3 : vector<1x20x26x128xbf16> to vector<20x26x128xbf16>
    %5 = vector.extract_strided_slice %4 {offsets = [0, 0, 0], sizes = [18, 24, 128], strides = [1, 1, 1]} : vector<20x26x128xbf16> to vector<18x24x128xbf16>
    %6 = vector.extract_strided_slice %4 {offsets = [0, 1, 0], sizes = [18, 24, 128], strides = [1, 1, 1]} : vector<20x26x128xbf16> to vector<18x24x128xbf16>
    %7 = vector.extract_strided_slice %4 {offsets = [0, 2, 0], sizes = [18, 24, 128], strides = [1, 1, 1]} : vector<20x26x128xbf16> to vector<18x24x128xbf16>
    %8 = vector.extract_strided_slice %4 {offsets = [1, 0, 0], sizes = [18, 24, 128], strides = [1, 1, 1]} : vector<20x26x128xbf16> to vector<18x24x128xbf16>
    %9 = vector.extract_strided_slice %4 {offsets = [1, 1, 0], sizes = [18, 24, 128], strides = [1, 1, 1]} : vector<20x26x128xbf16> to vector<18x24x128xbf16>
    %10 = vector.extract_strided_slice %4 {offsets = [1, 2, 0], sizes = [18, 24, 128], strides = [1, 1, 1]} : vector<20x26x128xbf16> to vector<18x24x128xbf16>
    %11 = vector.extract_strided_slice %4 {offsets = [2, 0, 0], sizes = [18, 24, 128], strides = [1, 1, 1]} : vector<20x26x128xbf16> to vector<18x24x128xbf16>
    %12 = vector.extract_strided_slice %4 {offsets = [2, 1, 0], sizes = [18, 24, 128], strides = [1, 1, 1]} : vector<20x26x128xbf16> to vector<18x24x128xbf16>
    %13 = vector.extract_strided_slice %4 {offsets = [2, 2, 0], sizes = [18, 24, 128], strides = [1, 1, 1]} : vector<20x26x128xbf16> to vector<18x24x128xbf16>
    %14 = tpu.concatenate %5, %6, %7, %8, %9, %10, %11, %12, %13 in 2 : vector<18x24x128xbf16>, vector<18x24x128xbf16>, vector<18x24x128xbf16>, vector<18x24x128xbf16>, vector<18x24x128xbf16>, vector<18x24x128xbf16>, vector<18x24x128xbf16>, vector<18x24x128xbf16>, vector<18x24x128xbf16> -> vector<18x24x1152xbf16>
    %15 = vector.shape_cast %14 : vector<18x24x1152xbf16> to vector<432x1152xbf16>
    %c0_2 = arith.constant 0 : index
    %c0_3 = arith.constant 0 : index
    %16 = vector.load %arg3[%c0_2, %c0_3] : memref<1152x128xbf16, #tpu.memory_space<vmem>>, vector<1152x128xbf16>
    %cst = arith.constant dense<0.000000e+00> : vector<432x128xf32>
    %17 = tpu.matmul %15, %16, %cst {dimension_numbers = #tpu.dot_dimension_numbers<[1], [0], [0], [1], [0, 0, 1, 1], [], []>} : vector<432x1152xbf16>, vector<1152x128xbf16>, vector<432x128xf32> -> vector<432x128xf32>
    %18 = vector.shape_cast %17 : vector<432x128xf32> to vector<18x24x128xf32>
    %19 = tpu.iota {dimensions = array<i32: 0>} : vector<18x24x1xi32>
    %c16_i32_4 = arith.constant 16 : i32
    %20 = arith.muli %arg1, %c16_i32_4 : i32
    %c1_i32 = arith.constant 1 : i32
    %21 = arith.subi %20, %c1_i32 : i32
    %22 = vector.broadcast %21 : i32 to vector<18x24x1xi32>
    %23 = arith.addi %19, %22 : vector<18x24x1xi32>
    %24 = tpu.iota {dimensions = array<i32: 1>} : vector<18x24x1xi32>
    %c1_i32_5 = arith.constant 1 : i32
    %25 = vector.broadcast %c1_i32_5 : i32 to vector<18x24x1xi32>
    %26 = arith.subi %24, %25 : vector<18x24x1xi32>
    %c0_i32 = arith.constant 0 : i32
    %27 = vector.broadcast %c0_i32 : i32 to vector<18x24x1xi32>
    %28 = arith.cmpi sge, %23, %27 : vector<18x24x1xi32>
    %c16_i32_6 = arith.constant 16 : i32
    %29 = vector.broadcast %c16_i32_6 : i32 to vector<18x24x1xi32>
    %30 = arith.cmpi slt, %23, %29 : vector<18x24x1xi32>
    %31 = arith.andi %28, %30 : vector<18x24x1xi1>
    %c0_i32_7 = arith.constant 0 : i32
    %32 = vector.broadcast %c0_i32_7 : i32 to vector<18x24x1xi32>
    %33 = arith.cmpi sge, %26, %32 : vector<18x24x1xi32>
    %34 = arith.andi %31, %33 : vector<18x24x1xi1>
    %c16_i32_8 = arith.constant 16 : i32
    %35 = vector.broadcast %c16_i32_8 : i32 to vector<18x24x1xi32>
    %36 = arith.cmpi slt, %26, %35 : vector<18x24x1xi32>
    %37 = arith.andi %34, %36 : vector<18x24x1xi1>
    %cst_9 = arith.constant 0.000000e+00 : f32
    %38 = vector.broadcast %cst_9 : f32 to vector<18x24x128xf32>
    %39 = arith.maximumf %18, %38 : vector<18x24x128xf32>
    %cst_10 = arith.constant 0.000000e+00 : f32
    %40 = vector.shape_cast %37 : vector<18x24x1xi1> to vector<18x24x1xi1>
    %41 = vector.broadcast %40 : vector<18x24x1xi1> to vector<18x24x128xi1>
    %42 = vector.broadcast %cst_10 : f32 to vector<18x24x128xf32>
    %43 = arith.select %41, %39, %42 : vector<18x24x128xi1>, vector<18x24x128xf32>
    %44 = arith.truncf %43 : vector<18x24x128xf32> to vector<18x24x128xbf16>
    %45 = vector.extract_strided_slice %44 {offsets = [0, 0, 0], sizes = [16, 16, 128], strides = [1, 1, 1]} : vector<18x24x128xbf16> to vector<16x16x128xbf16>
    %46 = vector.extract_strided_slice %44 {offsets = [0, 1, 0], sizes = [16, 16, 128], strides = [1, 1, 1]} : vector<18x24x128xbf16> to vector<16x16x128xbf16>
    %47 = vector.extract_strided_slice %44 {offsets = [0, 2, 0], sizes = [16, 16, 128], strides = [1, 1, 1]} : vector<18x24x128xbf16> to vector<16x16x128xbf16>
    %48 = vector.extract_strided_slice %44 {offsets = [1, 0, 0], sizes = [16, 16, 128], strides = [1, 1, 1]} : vector<18x24x128xbf16> to vector<16x16x128xbf16>
    %49 = vector.extract_strided_slice %44 {offsets = [1, 1, 0], sizes = [16, 16, 128], strides = [1, 1, 1]} : vector<18x24x128xbf16> to vector<16x16x128xbf16>
    %50 = vector.extract_strided_slice %44 {offsets = [1, 2, 0], sizes = [16, 16, 128], strides = [1, 1, 1]} : vector<18x24x128xbf16> to vector<16x16x128xbf16>
    %51 = vector.extract_strided_slice %44 {offsets = [2, 0, 0], sizes = [16, 16, 128], strides = [1, 1, 1]} : vector<18x24x128xbf16> to vector<16x16x128xbf16>
    %52 = vector.extract_strided_slice %44 {offsets = [2, 1, 0], sizes = [16, 16, 128], strides = [1, 1, 1]} : vector<18x24x128xbf16> to vector<16x16x128xbf16>
    %53 = vector.extract_strided_slice %44 {offsets = [2, 2, 0], sizes = [16, 16, 128], strides = [1, 1, 1]} : vector<18x24x128xbf16> to vector<16x16x128xbf16>
    %54 = tpu.concatenate %45, %46, %47, %48, %49, %50, %51, %52, %53 in 2 : vector<16x16x128xbf16>, vector<16x16x128xbf16>, vector<16x16x128xbf16>, vector<16x16x128xbf16>, vector<16x16x128xbf16>, vector<16x16x128xbf16>, vector<16x16x128xbf16>, vector<16x16x128xbf16>, vector<16x16x128xbf16> -> vector<16x16x1152xbf16>
    %55 = vector.shape_cast %54 : vector<16x16x1152xbf16> to vector<256x1152xbf16>
    %c0_11 = arith.constant 0 : index
    %c0_12 = arith.constant 0 : index
    %56 = vector.load %arg4[%c0_11, %c0_12] : memref<1152x128xbf16, #tpu.memory_space<vmem>>, vector<1152x128xbf16>
    %cst_13 = arith.constant dense<0.000000e+00> : vector<256x128xf32>
    %57 = tpu.matmul %55, %56, %cst_13 {dimension_numbers = #tpu.dot_dimension_numbers<[1], [0], [0], [1], [0, 0, 1, 1], [], []>} : vector<256x1152xbf16>, vector<1152x128xbf16>, vector<256x128xf32> -> vector<256x128xf32>
    %58 = vector.extract_strided_slice %4 {offsets = [2, 2, 0], sizes = [16, 16, 128], strides = [1, 1, 1]} : vector<20x26x128xbf16> to vector<16x16x128xbf16>
    %59 = vector.shape_cast %58 : vector<16x16x128xbf16> to vector<256x128xbf16>
    %c0_14 = arith.constant 0 : index
    %c0_15 = arith.constant 0 : index
    %60 = vector.load %arg5[%c0_14, %c0_15] : memref<128x128xbf16, #tpu.memory_space<vmem>>, vector<128x128xbf16>
    %cst_16 = arith.constant dense<0.000000e+00> : vector<256x128xf32>
    %61 = tpu.matmul %59, %60, %cst_16 {dimension_numbers = #tpu.dot_dimension_numbers<[1], [0], [0], [1], [0, 0, 1, 1], [], []>} : vector<256x128xbf16>, vector<128x128xbf16>, vector<256x128xf32> -> vector<256x128xf32>
    %62 = arith.addf %57, %61 : vector<256x128xf32>
    %cst_17 = arith.constant 0.000000e+00 : f32
    %63 = vector.broadcast %cst_17 : f32 to vector<256x128xf32>
    %64 = arith.maximumf %62, %63 : vector<256x128xf32>
    %65 = vector.shape_cast %64 : vector<256x128xf32> to vector<16x16x128xf32>
    %66 = arith.truncf %65 : vector<16x16x128xf32> to vector<16x16x128xbf16>
    %c0_18 = arith.constant 0 : index
    %c0_19 = arith.constant 0 : index
    %c0_20 = arith.constant 0 : index
    %c0_21 = arith.constant 0 : index
    %67 = vector.load %arg6[%c0_18, %c0_19, %c0_20, %c0_21] : memref<1x16x16x128xbf16, #tpu.memory_space<vmem>>, vector<1x16x16x128xbf16>
    %68 = vector.shape_cast %67 : vector<1x16x16x128xbf16> to vector<16x16x128xbf16>
    %69 = vector.shape_cast %66 : vector<16x16x128xbf16> to vector<1x16x16x128xbf16>
    tpu.vector_store %arg6[%c0_18, %c0_19, %c0_20, %c0_21], %69 {strides = array<i32>} : memref<1x16x16x128xbf16, #tpu.memory_space<vmem>>, vector<1x16x16x128xbf16>,
    return
  }
  func.func @transform_0(%arg0: i32, %arg1: i32) -> (i32, i32, i32, i32) {
    %c0_i32 = arith.constant 0 : i32
    %c0_i32_0 = arith.constant 0 : i32
    %c0_i32_1 = arith.constant 0 : i32
    %c0_i32_2 = arith.constant 0 : i32
    return %arg0, %c0_i32, %c0_i32_0, %c0_i32_1 : i32, i32, i32, i32
  }
  func.func @transform_1(%arg0: i32, %arg1: i32) -> (i32, i32) {
    %c0_i32 = arith.constant 0 : i32
    %c0_i32_0 = arith.constant 0 : i32
    %c0_i32_1 = arith.constant 0 : i32
    return %c0_i32, %c0_i32_0 : i32, i32
  }
  func.func @transform_2(%arg0: i32, %arg1: i32) -> (i32, i32) {
    %c0_i32 = arith.constant 0 : i32
    %c0_i32_0 = arith.constant 0 : i32
    %c0_i32_1 = arith.constant 0 : i32
    return %c0_i32, %c0_i32_0 : i32, i32
  }
  func.func @transform_3(%arg0: i32, %arg1: i32) -> (i32, i32) {
    %c0_i32 = arith.constant 0 : i32
    %c0_i32_0 = arith.constant 0 : i32
    %c0_i32_1 = arith.constant 0 : i32
    return %c0_i32, %c0_i32_0 : i32, i32
  }
  func.func @transform_4(%arg0: i32, %arg1: i32) -> (i32, i32, i32, i32) {
    %c0_i32 = arith.constant 0 : i32
    %c0_i32_0 = arith.constant 0 : i32
    %c0_i32_1 = arith.constant 0 : i32
    return %arg0, %arg1, %c0_i32, %c0_i32_0 : i32, i32, i32, i32
  }
}

</mosaic_0001>

<llo_original>
// kernel: basic_block_forward_nhwc.1
$region0: #{basic_block_forward_nhwc.1}
  #allocation0 [shape = 'u32[]', space=smem, size = 0x4, offset = 0x4, fixed_abs, tag = 'smem constant byte address 0x4 - core index']
  #allocation1 [shape = 'u32[72,128]{1,0:T(1,128)}', space=vmem, size = 0x9000, scoped, tag = 'internal scratch']
  %s0 = inlined_call_operand.vmem [shape: bf16[2,20,26,128], index: 0, kind: input, shape index: {}]
  %s1 = inlined_call_operand.vmem [shape: bf16[1152,128], index: 1, kind: input, shape index: {}]
  %s2 = inlined_call_operand.vmem [shape: bf16[1152,128], index: 2, kind: input, shape index: {}]
  %s3 = inlined_call_operand.vmem [shape: bf16[128,128], index: 3, kind: input, shape index: {}]
  %s4 = inlined_call_operand.hbm [shape: bf16[2,16,16,128], index: 4, kind: output, shape index: {}]
  %s5 = sld [smem:[#allocation0]]
  $region49: #{basic_block_forward_nhwc.1} parent=0
    _
  %s7 = ssub.s32 1, %s5
  %s8 = scalar_select 0, %s7, %s5
  $region1: #{basic_block_forward_nhwc.1} parent=0
    #allocation2 [shape = 'u8[131072]{0}', space=vmem, size = 0x20000, scoped, tag = 'output window, operand 0']
    #allocation3 [shape = 's32[2]{0}', space=sflag, size = 0x8, scoped, tag = 'scoped memory for basic_block_forward_nhwc.1']
    %9 = vsyncpa [#allocation3], 0
    %s10 = scalar_lea.sflag [#allocation3], 1
    %11 = vsyncpa %s10, 0
    loop: start=0, step=1, limit=4
    $region2: #{basic_block_forward_nhwc.1} parent=1 // loop_pre_header
      _
    $region3: #{basic_block_forward_nhwc.1} parent=1 // loop_header
      %s13 = sphi 0, %s17
      %p14 = scmp.ge.s32.totalorder %s13, 4
      %s20 = sphi 0, %s32
      %s21 = sphi 0, %s28
      %s22 = sphi 0, %s20
      %s23 = sphi 0, %s21
      %s24 = sphi 0, %s22
      %s25 = sphi 0, %s23
      %s35 = sphi 0, %s37
      %s38 = sphi 0, %s35
      %s39 = sphi 0, %s38
      %s55 = sphi 0, %s39
      %s59 = sphi 0, %s59
      %s61 = sphi 0, %s59
      %s62 = sphi 0, %s61
      %s76 = sphi 0, %s62
      %s80 = sphi 0, %s80
      %s82 = sphi 0, %s80
      %s83 = sphi 0, %s82
      %s97 = sphi 0, %s83
      %s101 = sphi 0, %s101
      %s103 = sphi 0, %s101
      %s104 = sphi 0, %s103
      %s118 = sphi 0, %s104
      %s126 = sphi 0, %s128
      %s129 = sphi 0, %s126
      %s130 = sphi 0, %s129
      %s146 = sphi 0, %s130
    $region4: #{basic_block_forward_nhwc.1} parent=1 // loop_header_branch
      %16 = sbr.rel (%p14) target = $region8
    $region5: #{basic_block_forward_nhwc.1} parent=1 // loop_body
      %s18 = ssub.s32 %s13, 1
      %s19 = ssub.s32 %s13, 2
      %s26 = sadd.s32 1, %s21
      %p27 = scmp.ge.s32.totalorder %s26, 1
      %s28 = scalar_select %p27, 0, %s26
      %s29 = sadd.s32 1, %s20
      %s30 = scalar_select %p27, %s29, %s20
      %p31 = scmp.ge.s32.totalorder %s30, 2
      %s32 = scalar_select %p31, 0, %s30
      %s33 = ssub.s32 %s20, %s32
      %p34 = scmp.eq.s32.totalorder %s33, 0
      %s36 = sadd.s32 %s35, 1
      %s37 = scalar_select %p34, %s35, %s36
      %p40 = pneg %p34
      %p41 = scmp.eq.s32.totalorder %s13, 1
      %p42 = por %p40, %p41
      %p43 = scmp.ne.s32.totalorder %s35, %s38
      %p44 = scmp.eq.s32.totalorder %s13, 0
      %p45 = por %p43, %p44
      %p46 = scmp.ne.s32.totalorder %s35, %s38
      %p47 = scmp.eq.s32.totalorder %s18, 1
      %p48 = por %p46, %p47
      %p49 = scmp.ne.s32.totalorder %s38, %s39
      %p50 = scmp.eq.s32.totalorder %s18, 0
      %p51 = por %p49, %p50
      %p52 = scmp.ne.s32.totalorder %s38, %s39
      %p53 = scmp.eq.s32.totalorder %s19, 1
      %p54 = por %p52, %p53
      %p56 = scmp.ne.s32.totalorder %s39, %s55
      %p57 = scmp.eq.s32.totalorder %s19, 0
      %p58 = por %p56, %p57
      %s60 = sadd.s32 %s59, 1
      %p63 = scmp.eq.s32.totalorder %s13, 1
      %p64 = scmp.ne.s32.totalorder %s59, %s61
      %p65 = scmp.eq.s32.totalorder %s13, 0
      %p66 = por %p64, %p65
      %p67 = scmp.ne.s32.totalorder %s59, %s61
      %p68 = scmp.eq.s32.totalorder %s18, 1
      %p69 = por %p67, %p68
      %p70 = scmp.ne.s32.totalorder %s61, %s62
      %p71 = scmp.eq.s32.totalorder %s18, 0
      %p72 = por %p70, %p71
      %p73 = scmp.ne.s32.totalorder %s61, %s62
      %p74 = scmp.eq.s32.totalorder %s19, 1
      %p75 = por %p73, %p74
      %p77 = scmp.ne.s32.totalorder %s62, %s76
      %p78 = scmp.eq.s32.totalorder %s19, 0
      %p79 = por %p77, %p78
      %s81 = sadd.s32 %s80, 1
      %p84 = scmp.eq.s32.totalorder %s13, 1
      %p85 = scmp.ne.s32.totalorder %s80, %s82
      %p86 = scmp.eq.s32.totalorder %s13, 0
      %p87 = por %p85, %p86
      %p88 = scmp.ne.s32.totalorder %s80, %s82
      %p89 = scmp.eq.s32.totalorder %s18, 1
      %p90 = por %p88, %p89
      %p91 = scmp.ne.s32.totalorder %s82, %s83
      %p92 = scmp.eq.s32.totalorder %s18, 0
      %p93 = por %p91, %p92
      %p94 = scmp.ne.s32.totalorder %s82, %s83
      %p95 = scmp.eq.s32.totalorder %s19, 1
      %p96 = por %p94, %p95
      %p98 = scmp.ne.s32.totalorder %s83, %s97
      %p99 = scmp.eq.s32.totalorder %s19, 0
      %p100 = por %p98, %p99
      %s102 = sadd.s32 %s101, 1
      %p105 = scmp.eq.s32.totalorder %s13, 1
      %p106 = scmp.ne.s32.totalorder %s101, %s103
      %p107 = scmp.eq.s32.totalorder %s13, 0
      %p108 = por %p106, %p107
      %p109 = scmp.ne.s32.totalorder %s101, %s103
      %p110 = scmp.eq.s32.totalorder %s18, 1
      %p111 = por %p109, %p110
      %p112 = scmp.ne.s32.totalorder %s103, %s104
      %p113 = scmp.eq.s32.totalorder %s18, 0
      %p114 = por %p112, %p113
      %p115 = scmp.ne.s32.totalorder %s103, %s104
      %p116 = scmp.eq.s32.totalorder %s19, 1
      %p117 = por %p115, %p116
      %p119 = scmp.ne.s32.totalorder %s104, %s118
      %p120 = scmp.eq.s32.totalorder %s19, 0
      %p121 = por %p119, %p120
      %s122 = ssub.s32 %s20, %s32
      %s123 = ssub.s32 %s21, %s28
      %s124 = sor.u32 %s122, %s123
      %p125 = scmp.eq.s32.totalorder %s124, 0
      %s127 = sadd.s32 %s126, 1
      %s128 = scalar_select %p125, %s126, %s127
      %p131 = pneg %p125
      %p132 = scmp.eq.s32.totalorder %s13, 1
      %p133 = por %p131, %p132
      %p134 = scmp.ne.s32.totalorder %s126, %s129
      %p135 = scmp.eq.s32.totalorder %s13, 0
      %p136 = por %p134, %p135
      %p137 = scmp.ne.s32.totalorder %s126, %s129
      %p138 = scmp.eq.s32.totalorder %s18, 1
      %p139 = por %p137, %p138
      %p140 = scmp.ne.s32.totalorder %s129, %s130
      %p141 = scmp.eq.s32.totalorder %s18, 0
      %p142 = por %p140, %p141
      %p143 = scmp.ne.s32.totalorder %s129, %s130
      %p144 = scmp.eq.s32.totalorder %s19, 1
      %p145 = por %p143, %p144
      %p147 = scmp.ne.s32.totalorder %s130, %s146
      %p148 = scmp.eq.s32.totalorder %s19, 0
      %p149 = por %p147, %p148
      %p150 = scmp.le.s32.totalorder 1, %s13
      %p151 = scmp.lt.s32.totalorder %s13, 3
      %p152 = pnand %p150, %p151
      %p153 = pneg %p152
      // Predicated region
      $region9: #{basic_block_forward_nhwc.1} parent=5 // pred_check
        _
      $region10: #{basic_block_forward_nhwc.1} parent=5 // pred_check_branch
        %155 = sbr.rel (%p152) target = $region12
      $region11: #{basic_block_forward_nhwc.1} parent=5 // pred_region
        %s156 = ssub.s32 %s13, 1
        // Predicated region
        $region13: #{basic_block_forward_nhwc.1} parent=11 // pred_check
          %p157 = pneg %p72
        $region14: #{basic_block_forward_nhwc.1} parent=11 // pred_check_branch
          %159 = sbr.rel (%p157) target = $region16
        $region15: #{basic_block_forward_nhwc.1} parent=11 // pred_region
          _
        $region16: #{basic_block_forward_nhwc.1} parent=11 // pred_fallthru
          _
        // Predicated region
        $region17: #{basic_block_forward_nhwc.1} parent=11 // pred_check
          %p160 = pneg %p93
        $region18: #{basic_block_forward_nhwc.1} parent=11 // pred_check_branch
          %162 = sbr.rel (%p160) target = $region20
        $region19: #{basic_block_forward_nhwc.1} parent=11 // pred_region
          _
        $region20: #{basic_block_forward_nhwc.1} parent=11 // pred_fallthru
          _
        // Predicated region
        $region21: #{basic_block_forward_nhwc.1} parent=11 // pred_check
          %p163 = pneg %p114
        $region22: #{basic_block_forward_nhwc.1} parent=11 // pred_check_branch
          %165 = sbr.rel (%p163) target = $region24
        $region23: #{basic_block_forward_nhwc.1} parent=11 // pred_region
          _
        $region24: #{basic_block_forward_nhwc.1} parent=11 // pred_fallthru
          _
      $region12: #{basic_block_forward_nhwc.1} parent=5 // pred_fallthru
        _
      %p166 = scmp.lt.s32.totalorder %s13, 2
      // Predicated region
      $region25: #{basic_block_forward_nhwc.1} parent=5 // pred_check
        %p167 = pneg %p166
      $region26: #{basic_block_forward_nhwc.1} parent=5 // pred_check_branch
        %169 = sbr.rel (%p167) target = $region28
      $region27: #{basic_block_forward_nhwc.1} parent=5 // pred_region
        // Predicated region
        $region29: #{basic_block_forward_nhwc.1} parent=27 // pred_check
          %p170 = pneg %p45
        $region30: #{basic_block_forward_nhwc.1} parent=27 // pred_check_branch
          %172 = sbr.rel (%p170) target = $region32
        $region31: #{basic_block_forward_nhwc.1} parent=27 // pred_region
          %p173 = scmp.lt.s32.totalorder %s20, 1
          %s174 = scalar_select %p173, %s20, 1
          %s175 = smul.addr %s174, 80
          %s176 = smul.addr %s175, 4
          %s177 = scalar_lea.vmem %s0, %s176
        $region32: #{basic_block_forward_nhwc.1} parent=27 // pred_fallthru
          _
      $region28: #{basic_block_forward_nhwc.1} parent=5 // pred_fallthru
        _
      %p178 = scmp.le.s32.totalorder 1, %s13
      %p179 = scmp.lt.s32.totalorder %s13, 3
      %p180 = pnand %p178, %p179
      %p181 = pneg %p180
      // Predicated region
      $region33: #{basic_block_forward_nhwc.1} parent=5 // pred_check
        _
      $region34: #{basic_block_forward_nhwc.1} parent=5 // pred_check_branch
        %183 = sbr.rel (%p180) target = $region36
      $region35: #{basic_block_forward_nhwc.1} parent=5 // pred_region
        %s184 = ssub.s32 %s13, 1
        %p185 = scmp.lt.s32.totalorder %s22, 1
        %s186 = scalar_select %p185, %s22, 1
        %s187 = smul.addr %s186, 80
        %s188 = smul.addr %s187, 4
        %s189 = scalar_lea.vmem %s0, %s188
        %p190 = pneg %p51
        %p191 = pneg %p48
        %p192 = pneg %p72
        %p193 = pneg %p69
        %p194 = pneg %p93
        %p195 = pneg %p90
        %p196 = pneg %p114
        %p197 = pneg %p111
        %p198 = pneg %p142
        %p199 = pneg %p139
        %s200 = sand.u32 %s129, 1
        %s201 = scalar_lea.sflag [#allocation3], %s200
        %s202 = sand.u32 %s129, 1
        %s203 = smul.addr %s202, 128
        %s204 = scalar_lea.vmem [#allocation2], %s203
        %p205 = scmp.lt.s32.totalorder %s22, 1
        %s206 = scalar_select %p205, %s22, 1
        %s207 = smul.addr %s206, 80
        %s208 = smul.addr %s207, 4
        %s209 = scalar_lea.vmem %s0, %s208
        %s210 = smul.u32 16, %s23
        %s211 = smul.u32 %s23, 16
        %s212 = smul.u32 %s211, 4
        %s213 = smul.addr %s212, 4
        %s214 = scalar_lea.vmem %s209, %s213
        %v215 = vld [vmem:[%s214] sm:$0xf]
        %v216 = vld [vmem:[%s214 + $0x4] sm:$0xf]
        %v217 = vld [vmem:[%s214 + $0x8] sm:$0xf]
        %v218 = vld [vmem:[%s214 + $0xc] sm:$0x1]
        %v219 = vld [vmem:[%s214 + $0x10] sm:$0xf]
        %v220 = vld [vmem:[%s214 + $0x14] sm:$0xf]
        %v221 = vld [vmem:[%s214 + $0x18] sm:$0xf]
        %v222 = vld [vmem:[%s214 + $0x1c] sm:$0x1]
        %v223 = vld [vmem:[%s214 + $0x20] sm:$0xf]
        %v224 = vld [vmem:[%s214 + $0x24] sm:$0xf]
        %v225 = vld [vmem:[%s214 + $0x28] sm:$0xf]
        %v226 = vld [vmem:[%s214 + $0x2c] sm:$0x1]
        %v227 = vld [vmem:[%s214 + $0x30] sm:$0xf]
        %v228 = vld [vmem:[%s214 + $0x34] sm:$0xf]
        %v229 = vld [vmem:[%s214 + $0x38] sm:$0xf]
        %v230 = vld [vmem:[%s214 + $0x3c] sm:$0x1]
        %v231 = vld [vmem:[%s214 + $0x40] sm:$0xf]
        %v232 = vld [vmem:[%s214 + $0x44] sm:$0xf]
        %v233 = vld [vmem:[%s214 + $0x48] sm:$0xf]
        %v234 = vld [vmem:[%s214 + $0x4c] sm:$0x1]
        %v235 = vld [vmem:[%s214 + $0x50] sm:$0xf]
        %v236 = vld [vmem:[%s214 + $0x54] sm:$0xf]
        %v237 = vld [vmem:[%s214 + $0x58] sm:$0xf]
        %v238 = vld [vmem:[%s214 + $0x5c] sm:$0x1]
        %v239 = vld [vmem:[%s214 + $0x60] sm:$0xf]
        %v240 = vld [vmem:[%s214 + $0x64] sm:$0xf]
        %v241 = vld [vmem:[%s214 + $0x68] sm:$0xf]
        %v242 = vld [vmem:[%s214 + $0x6c] sm:$0x1]
        %v243 = vld [vmem:[%s214 + $0x70] sm:$0xf]
        %v244 = vld [vmem:[%s214 + $0x74] sm:$0xf]
        %v245 = vld [vmem:[%s214 + $0x78] sm:$0xf]
        %v246 = vld [vmem:[%s214 + $0x7c] sm:$0x1]
        %v247 = vld [vmem:[%s214 + $0x80] sm:$0xf]
        %v248 = vld [vmem:[%s214 + $0x84] sm:$0xf]
        %v249 = vld [vmem:[%s214 + $0x88] sm:$0xf]
        %v250 = vld [vmem:[%s214 + $0x8c] sm:$0x1]
        %v251 = vld [vmem:[%s214 + $0x90] sm:$0xf]
        %v252 = vld [vmem:[%s214 + $0x94] sm:$0xf]
        %v253 = vld [vmem:[%s214 + $0x98] sm:$0xf]
        %v254 = vld [vmem:[%s214 + $0x9c] sm:$0x1]
        %v255 = vld [vmem:[%s214 + $0xa0] sm:$0xf]
        %v256 = vld [vmem:[%s214 + $0xa4] sm:$0xf]
        %v257 = vld [vmem:[%s214 + $0xa8] sm:$0xf]
        %v258 = vld [vmem:[%s214 + $0xac] sm:$0x1]
        %v259 = vld [vmem:[%s214 + $0xb0] sm:$0xf]
        %v260 = vld [vmem:[%s214 + $0xb4] sm:$0xf]
        %v261 = vld [vmem:[%s214 + $0xb8] sm:$0xf]
        %v262 = vld [vmem:[%s214 + $0xbc] sm:$0x1]
        %v263 = vld [vmem:[%s214 + $0xc0] sm:$0xf]
        %v264 = vld [vmem:[%s214 + $0xc4] sm:$0xf]
        %v265 = vld [vmem:[%s214 + $0xc8] sm:$0xf]
        %v266 = vld [vmem:[%s214 + $0xcc] sm:$0x1]
        %v267 = vld [vmem:[%s214 + $0xd0] sm:$0xf]
        %v268 = vld [vmem:[%s214 + $0xd4] sm:$0xf]
        %v269 = vld [vmem:[%s214 + $0xd8] sm:$0xf]
        %v270 = vld [vmem:[%s214 + $0xdc] sm:$0x1]
        %v271 = vld [vmem:[%s214 + $0xe0] sm:$0xf]
        %v272 = vld [vmem:[%s214 + $0xe4] sm:$0xf]
        %v273 = vld [vmem:[%s214 + $0xe8] sm:$0xf]
        %v274 = vld [vmem:[%s214 + $0xec] sm:$0x1]
        %v275 = vld [vmem:[%s214 + $0xf0] sm:$0xf]
        %v276 = vld [vmem:[%s214 + $0xf4] sm:$0xf]
        %v277 = vld [vmem:[%s214 + $0xf8] sm:$0xf]
        %v278 = vld [vmem:[%s214 + $0xfc] sm:$0x1]
        %v279 = vld [vmem:[%s214 + $0x100] sm:$0xf]
        %v280 = vld [vmem:[%s214 + $0x104] sm:$0xf]
        %v281 = vld [vmem:[%s214 + $0x108] sm:$0xf]
        %v282 = vld [vmem:[%s214 + $0x10c] sm:$0x1]
        %v283 = vld [vmem:[%s214 + $0x110] sm:$0xf]
        %v284 = vld [vmem:[%s214 + $0x114] sm:$0xf]
        %v285 = vld [vmem:[%s214 + $0x118] sm:$0xf]
        %v286 = vld [vmem:[%s214 + $0x11c] sm:$0x1]
        %v287 = vld [vmem:[%s214 + $0x120] sm:$0xf]
        %v288 = vld [vmem:[%s214 + $0x124] sm:$0xf]
        %v289 = vld [vmem:[%s214 + $0x128] sm:$0xf]
        %v290 = vld [vmem:[%s214 + $0x12c] sm:$0x1]
        %v291 = vld [vmem:[%s214 + $0x130] sm:$0xf]
        %v292 = vld [vmem:[%s214 + $0x134] sm:$0xf]
        %v293 = vld [vmem:[%s214 + $0x138] sm:$0xf]
        %v294 = vld [vmem:[%s214 + $0x13c] sm:$0x1]
        %v349 = vunpack.c.l.b16 %v215
        %v350 = vunpack.c.l.b16 %v216
        %v351 = vunpack.c.l.b16 %v217
        %v352 = vunpack.c.l.b16 %v219
        %v353 = vunpack.c.l.b16 %v220
        %v354 = vunpack.c.l.b16 %v221
        %v355 = vunpack.c.l.b16 %v223
        %v356 = vunpack.c.l.b16 %v224
        %v357 = vunpack.c.l.b16 %v225
        %v358 = vunpack.c.l.b16 %v227
        %v359 = vunpack.c.l.b16 %v228
        %v360 = vunpack.c.l.b16 %v229
        %v361 = vunpack.c.l.b16 %v231
        %v362 = vunpack.c.l.b16 %v232
        %v363 = vunpack.c.l.b16 %v233
        %v364 = vunpack.c.l.b16 %v235
        %v365 = vunpack.c.l.b16 %v236
        %v366 = vunpack.c.l.b16 %v237
        %v367 = vunpack.c.l.b16 %v239
        %v368 = vunpack.c.l.b16 %v240
        %v369 = vunpack.c.l.b16 %v241
        %v370 = vunpack.c.l.b16 %v243
        %v371 = vunpack.c.l.b16 %v244
        %v372 = vunpack.c.l.b16 %v245
        %v373 = vunpack.c.l.b16 %v247
        %v374 = vunpack.c.l.b16 %v248
        %v375 = vunpack.c.l.b16 %v249
        %v376 = vunpack.c.l.b16 %v251
        %v377 = vunpack.c.l.b16 %v252
        %v378 = vunpack.c.l.b16 %v253
        %v379 = vunpack.c.l.b16 %v255
        %v380 = vunpack.c.l.b16 %v256
        %v381 = vunpack.c.l.b16 %v257
        %v382 = vunpack.c.l.b16 %v259
        %v383 = vunpack.c.l.b16 %v260
        %v384 = vunpack.c.l.b16 %v261
        %v385 = vunpack.c.l.b16 %v263
        %v386 = vunpack.c.l.b16 %v264
        %v387 = vunpack.c.l.b16 %v265
        %v388 = vunpack.c.l.b16 %v267
        %v389 = vunpack.c.l.b16 %v268
        %v390 = vunpack.c.l.b16 %v269
        %v391 = vunpack.c.l.b16 %v271
        %v392 = vunpack.c.l.b16 %v272
        %v393 = vunpack.c.l.b16 %v273
        %v394 = vunpack.c.l.b16 %v275
        %v395 = vunpack.c.l.b16 %v276
        %v396 = vunpack.c.l.b16 %v277
        %v397 = vunpack.c.l.b16 %v279
        %v398 = vunpack.c.l.b16 %v280
        %v399 = vunpack.c.l.b16 %v281
        %v400 = vunpack.c.l.b16 %v283
        %v401 = vunpack.c.l.b16 %v284
        %v402 = vunpack.c.l.b16 %v285
        %v421 = vunpack.c.l.b16 %v218
        %v422 = vunpack.c.l.b16 %v222
        %v423 = vunpack.c.l.b16 %v226
        %v424 = vunpack.c.l.b16 %v230
        %v425 = vunpack.c.l.b16 %v234
        %v426 = vunpack.c.l.b16 %v238
        %v427 = vunpack.c.l.b16 %v242
        %v428 = vunpack.c.l.b16 %v246
        %v429 = vunpack.c.l.b16 %v250
        %v430 = vunpack.c.l.b16 %v254
        %v431 = vunpack.c.l.b16 %v258
        %v432 = vunpack.c.l.b16 %v262
        %v433 = vunpack.c.l.b16 %v266
        %v434 = vunpack.c.l.b16 %v270
        %v435 = vunpack.c.l.b16 %v274
        %v436 = vunpack.c.l.b16 %v278
        %v437 = vunpack.c.l.b16 %v282
        %v438 = vunpack.c.l.b16 %v286
        %v439 = vpack.c.b16 %v350, %v349
        %v440 = vpack.c.b16 %v421, %v351
        %v441 = vpack.c.b16 %v353, %v352
        %v442 = vpack.c.b16 %v422, %v354
        %v443 = vpack.c.b16 %v356, %v355
        %v444 = vpack.c.b16 %v423, %v357
        %v445 = vpack.c.b16 %v359, %v358
        %v446 = vpack.c.b16 %v424, %v360
        %v447 = vpack.c.b16 %v362, %v361
        %v448 = vpack.c.b16 %v425, %v363
        %v449 = vpack.c.b16 %v365, %v364
        %v450 = vpack.c.b16 %v426, %v366
        %v451 = vpack.c.b16 %v368, %v367
        %v452 = vpack.c.b16 %v427, %v369
        %v453 = vpack.c.b16 %v371, %v370
        %v454 = vpack.c.b16 %v428, %v372
        %v455 = vpack.c.b16 %v374, %v373
        %v456 = vpack.c.b16 %v429, %v375
        %v457 = vpack.c.b16 %v377, %v376
        %v458 = vpack.c.b16 %v430, %v378
        %v459 = vpack.c.b16 %v380, %v379
        %v460 = vpack.c.b16 %v431, %v381
        %v461 = vpack.c.b16 %v383, %v382
        %v462 = vpack.c.b16 %v432, %v384
        %v463 = vpack.c.b16 %v386, %v385
        %v464 = vpack.c.b16 %v433, %v387
        %v465 = vpack.c.b16 %v389, %v388
        %v466 = vpack.c.b16 %v434, %v390
        %v467 = vpack.c.b16 %v392, %v391
        %v468 = vpack.c.b16 %v435, %v393
        %v469 = vpack.c.b16 %v395, %v394
        %v470 = vpack.c.b16 %v436, %v396
        %v471 = vpack.c.b16 %v398, %v397
        %v472 = vpack.c.b16 %v437, %v399
        %v473 = vpack.c.b16 %v401, %v400
        %v474 = vpack.c.b16 %v438, %v402
        %vm475 = vsmask.f32 7424
        %v477 = vshrl.u32 %v439, 16
        %v479 = vshll.u32 %v439, 16
        %v481 = vrot.slane %v479, 1
        %v482 = vor.u32 %v477, %v481
        %v484 = vshll.u32 %v440, 16
        %v486 = vrot.slane %v484, 1
        %v487 = vsel %vm475, %v482, %v486
        %v488 = vshrl.u32 %v440, 16
        %v490 = vor.u32 %v488, %v486
        %v492 = vshrl.u32 %v441, 16
        %v494 = vshll.u32 %v441, 16
        %v496 = vrot.slane %v494, 1
        %v497 = vor.u32 %v492, %v496
        %v499 = vshll.u32 %v442, 16
        %v501 = vrot.slane %v499, 1
        %v502 = vsel %vm475, %v497, %v501
        %v503 = vshrl.u32 %v442, 16
        %v505 = vor.u32 %v503, %v501
        %v507 = vshrl.u32 %v443, 16
        %v509 = vshll.u32 %v443, 16
        %v511 = vrot.slane %v509, 1
        %v512 = vor.u32 %v507, %v511
        %v514 = vshll.u32 %v444, 16
        %v516 = vrot.slane %v514, 1
        %v517 = vsel %vm475, %v512, %v516
        %v518 = vshrl.u32 %v444, 16
        %v520 = vor.u32 %v518, %v516
        %v522 = vshrl.u32 %v445, 16
        %v524 = vshll.u32 %v445, 16
        %v526 = vrot.slane %v524, 1
        %v527 = vor.u32 %v522, %v526
        %v529 = vshll.u32 %v446, 16
        %v531 = vrot.slane %v529, 1
        %v532 = vsel %vm475, %v527, %v531
        %v533 = vshrl.u32 %v446, 16
        %v535 = vor.u32 %v533, %v531
        %v537 = vshrl.u32 %v447, 16
        %v539 = vshll.u32 %v447, 16
        %v541 = vrot.slane %v539, 1
        %v542 = vor.u32 %v537, %v541
        %v544 = vshll.u32 %v448, 16
        %v546 = vrot.slane %v544, 1
        %v547 = vsel %vm475, %v542, %v546
        %v548 = vshrl.u32 %v448, 16
        %v550 = vor.u32 %v548, %v546
        %v552 = vshrl.u32 %v449, 16
        %v554 = vshll.u32 %v449, 16
        %v556 = vrot.slane %v554, 1
        %v557 = vor.u32 %v552, %v556
        %v559 = vshll.u32 %v450, 16
        %v561 = vrot.slane %v559, 1
        %v562 = vsel %vm475, %v557, %v561
        %v563 = vshrl.u32 %v450, 16
        %v565 = vor.u32 %v563, %v561
        %v567 = vshrl.u32 %v451, 16
        %v569 = vshll.u32 %v451, 16
        %v571 = vrot.slane %v569, 1
        %v572 = vor.u32 %v567, %v571
        %v574 = vshll.u32 %v452, 16
        %v576 = vrot.slane %v574, 1
        %v577 = vsel %vm475, %v572, %v576
        %v578 = vshrl.u32 %v452, 16
        %v580 = vor.u32 %v578, %v576
        %v582 = vshrl.u32 %v453, 16
        %v584 = vshll.u32 %v453, 16
        %v586 = vrot.slane %v584, 1
        %v587 = vor.u32 %v582, %v586
        %v589 = vshll.u32 %v454, 16
        %v591 = vrot.slane %v589, 1
        %v592 = vsel %vm475, %v587, %v591
        %v593 = vshrl.u32 %v454, 16
        %v595 = vor.u32 %v593, %v591
        %v597 = vshrl.u32 %v455, 16
        %v599 = vshll.u32 %v455, 16
        %v601 = vrot.slane %v599, 1
        %v602 = vor.u32 %v597, %v601
        %v604 = vshll.u32 %v456, 16
        %v606 = vrot.slane %v604, 1
        %v607 = vsel %vm475, %v602, %v606
        %v608 = vshrl.u32 %v456, 16
        %v610 = vor.u32 %v608, %v606
        %v612 = vshrl.u32 %v457, 16
        %v614 = vshll.u32 %v457, 16
        %v616 = vrot.slane %v614, 1
        %v617 = vor.u32 %v612, %v616
        %v619 = vshll.u32 %v458, 16
        %v621 = vrot.slane %v619, 1
        %v622 = vsel %vm475, %v617, %v621
        %v623 = vshrl.u32 %v458, 16
        %v625 = vor.u32 %v623, %v621
        %v627 = vshrl.u32 %v459, 16
        %v629 = vshll.u32 %v459, 16
        %v631 = vrot.slane %v629, 1
        %v632 = vor.u32 %v627, %v631
        %v634 = vshll.u32 %v460, 16
        %v636 = vrot.slane %v634, 1
        %v637 = vsel %vm475, %v632, %v636
        %v638 = vshrl.u32 %v460, 16
        %v640 = vor.u32 %v638, %v636
        %v642 = vshrl.u32 %v461, 16
        %v644 = vshll.u32 %v461, 16
        %v646 = vrot.slane %v644, 1
        %v647 = vor.u32 %v642, %v646
        %v649 = vshll.u32 %v462, 16
        %v651 = vrot.slane %v649, 1
        %v652 = vsel %vm475, %v647, %v651
        %v653 = vshrl.u32 %v462, 16
        %v655 = vor.u32 %v653, %v651
        %v657 = vshrl.u32 %v463, 16
        %v659 = vshll.u32 %v463, 16
        %v661 = vrot.slane %v659, 1
        %v662 = vor.u32 %v657, %v661
        %v664 = vshll.u32 %v464, 16
        %v666 = vrot.slane %v664, 1
        %v667 = vsel %vm475, %v662, %v666
        %v668 = vshrl.u32 %v464, 16
        %v670 = vor.u32 %v668, %v666
        %v672 = vshrl.u32 %v465, 16
        %v674 = vshll.u32 %v465, 16
        %v676 = vrot.slane %v674, 1
        %v677 = vor.u32 %v672, %v676
        %v679 = vshll.u32 %v466, 16
        %v681 = vrot.slane %v679, 1
        %v682 = vsel %vm475, %v677, %v681
        %v683 = vshrl.u32 %v466, 16
        %v685 = vor.u32 %v683, %v681
        %v687 = vshrl.u32 %v467, 16
        %v689 = vshll.u32 %v467, 16
        %v691 = vrot.slane %v689, 1
        %v692 = vor.u32 %v687, %v691
        %v694 = vshll.u32 %v468, 16
        %v696 = vrot.slane %v694, 1
        %v697 = vsel %vm475, %v692, %v696
        %v698 = vshrl.u32 %v468, 16
        %v700 = vor.u32 %v698, %v696
        %v702 = vshrl.u32 %v469, 16
        %v704 = vshll.u32 %v469, 16
        %v706 = vrot.slane %v704, 1
        %v707 = vor.u32 %v702, %v706
        %v709 = vshll.u32 %v470, 16
        %v711 = vrot.slane %v709, 1
        %v712 = vsel %vm475, %v707, %v711
        %v713 = vshrl.u32 %v470, 16
        %v715 = vor.u32 %v713, %v711
        %v717 = vshrl.u32 %v471, 16
        %v719 = vshll.u32 %v471, 16
        %v721 = vrot.slane %v719, 1
        %v722 = vor.u32 %v717, %v721
        %v724 = vshll.u32 %v472, 16
        %v726 = vrot.slane %v724, 1
        %v727 = vsel %vm475, %v722, %v726
        %v728 = vshrl.u32 %v472, 16
        %v730 = vor.u32 %v728, %v726
        %v732 = vshrl.u32 %v473, 16
        %v734 = vshll.u32 %v473, 16
        %v736 = vrot.slane %v734, 1
        %v737 = vor.u32 %v732, %v736
        %v739 = vshll.u32 %v474, 16
        %v741 = vrot.slane %v739, 1
        %v742 = vsel %vm475, %v737, %v741
        %v743 = vshrl.u32 %v474, 16
        %v745 = vor.u32 %v743, %v741
        %vm746 = vcmask 1046528
        %v747 = vrot.slane %v439, 1
        %v748 = vrot.slane %v440, 1
        %v749 = vsel %vm746, %v747, %v748
        %v750 = vrot.slane %v441, 1
        %v751 = vrot.slane %v442, 1
        %v752 = vsel %vm746, %v750, %v751
        %v753 = vrot.slane %v443, 1
        %v754 = vrot.slane %v444, 1
        %v755 = vsel %vm746, %v753, %v754
        %v756 = vrot.slane %v445, 1
        %v757 = vrot.slane %v446, 1
        %v758 = vsel %vm746, %v756, %v757
        %v759 = vrot.slane %v447, 1
        %v760 = vrot.slane %v448, 1
        %v761 = vsel %vm746, %v759, %v760
        %v762 = vrot.slane %v449, 1
        %v763 = vrot.slane %v450, 1
        %v764 = vsel %vm746, %v762, %v763
        %v765 = vrot.slane %v451, 1
        %v766 = vrot.slane %v452, 1
        %v767 = vsel %vm746, %v765, %v766
        %v768 = vrot.slane %v453, 1
        %v769 = vrot.slane %v454, 1
        %v770 = vsel %vm746, %v768, %v769
        %v771 = vrot.slane %v455, 1
        %v772 = vrot.slane %v456, 1
        %v773 = vsel %vm746, %v771, %v772
        %v774 = vrot.slane %v457, 1
        %v775 = vrot.slane %v458, 1
        %v776 = vsel %vm746, %v774, %v775
        %v777 = vrot.slane %v459, 1
        %v778 = vrot.slane %v460, 1
        %v779 = vsel %vm746, %v777, %v778
        %v780 = vrot.slane %v461, 1
        %v781 = vrot.slane %v462, 1
        %v782 = vsel %vm746, %v780, %v781
        %v783 = vrot.slane %v463, 1
        %v784 = vrot.slane %v464, 1
        %v785 = vsel %vm746, %v783, %v784
        %v786 = vrot.slane %v465, 1
        %v787 = vrot.slane %v466, 1
        %v788 = vsel %vm746, %v786, %v787
        %v789 = vrot.slane %v467, 1
        %v790 = vrot.slane %v468, 1
        %v791 = vsel %vm746, %v789, %v790
        %v792 = vrot.slane %v469, 1
        %v793 = vrot.slane %v470, 1
        %v794 = vsel %vm746, %v792, %v793
        %v795 = vrot.slane %v471, 1
        %v796 = vrot.slane %v472, 1
        %v797 = vsel %vm746, %v795, %v796
        %v798 = vrot.slane %v473, 1
        %v799 = vrot.slane %v474, 1
        %v800 = vsel %vm746, %v798, %v799
        %v804 = vunpack.c.l.b16 %v287
        %v805 = vunpack.c.l.b16 %v288
        %v806 = vunpack.c.l.b16 %v289
        %v808 = vunpack.c.l.b16 %v290
        %v809 = vpack.c.b16 %v805, %v804
        %v810 = vpack.c.b16 %v808, %v806
        %v812 = vshrl.u32 %v809, 16
        %v814 = vshll.u32 %v809, 16
        %v816 = vrot.slane %v814, 1
        %v817 = vor.u32 %v812, %v816
        %v819 = vshll.u32 %v810, 16
        %v821 = vrot.slane %v819, 1
        %v822 = vsel %vm475, %v817, %v821
        %v823 = vshrl.u32 %v810, 16
        %v825 = vor.u32 %v823, %v821
        %v826 = vrot.slane %v809, 1
        %v827 = vrot.slane %v810, 1
        %v828 = vsel %vm746, %v826, %v827
        %v832 = vunpack.c.l.b16 %v291
        %v833 = vunpack.c.l.b16 %v292
        %v834 = vunpack.c.l.b16 %v293
        %v836 = vunpack.c.l.b16 %v294
        %v837 = vpack.c.b16 %v833, %v832
        %v838 = vpack.c.b16 %v836, %v834
        %v840 = vshrl.u32 %v837, 16
        %v842 = vshll.u32 %v837, 16
        %v844 = vrot.slane %v842, 1
        %v845 = vor.u32 %v840, %v844
        %v847 = vshll.u32 %v838, 16
        %v849 = vrot.slane %v847, 1
        %v850 = vsel %vm475, %v845, %v849
        %v851 = vshrl.u32 %v838, 16
        %v853 = vor.u32 %v851, %v849
        %v854 = vrot.slane %v837, 1
        %v855 = vrot.slane %v838, 1
        %v856 = vsel %vm746, %v854, %v855
        %v857 = vunpack.c.l.b16 %v487
        %v858 = vunpack.c.l.b16 %v749
        %v859 = vunpack.c.l.b16 %v502
        %v860 = vunpack.c.l.b16 %v752
        %v861 = vunpack.c.l.b16 %v517
        %v862 = vunpack.c.l.b16 %v755
        %v863 = vunpack.c.h.b16 %v487
        %v864 = vunpack.c.h.b16 %v749
        %v865 = vunpack.c.h.b16 %v502
        %v866 = vunpack.c.h.b16 %v752
        %v867 = vunpack.c.h.b16 %v517
        %v868 = vunpack.c.h.b16 %v755
        %v869 = vunpack.c.l.b16 %v490
        %v870 = vunpack.c.l.b16 %v748
        %v871 = vunpack.c.l.b16 %v505
        %v872 = vunpack.c.l.b16 %v751
        %v873 = vunpack.c.l.b16 %v520
        %v874 = vunpack.c.l.b16 %v754
        %v875 = vunpack.c.l.b16 %v532
        %v876 = vunpack.c.l.b16 %v758
        %v877 = vunpack.c.h.b16 %v532
        %v878 = vunpack.c.h.b16 %v758
        %v879 = vunpack.c.l.b16 %v535
        %v880 = vunpack.c.l.b16 %v757
        %v881 = vunpack.c.l.b16 %v547
        %v882 = vunpack.c.l.b16 %v761
        %v883 = vunpack.c.h.b16 %v547
        %v884 = vunpack.c.h.b16 %v761
        %v885 = vunpack.c.l.b16 %v550
        %v886 = vunpack.c.l.b16 %v760
        %v887 = vunpack.c.l.b16 %v562
        %v888 = vunpack.c.l.b16 %v764
        %v889 = vunpack.c.h.b16 %v562
        %v890 = vunpack.c.h.b16 %v764
        %v891 = vunpack.c.l.b16 %v565
        %v892 = vunpack.c.l.b16 %v763
        %v893 = vunpack.c.l.b16 %v577
        %v894 = vunpack.c.l.b16 %v767
        %v895 = vunpack.c.h.b16 %v577
        %v896 = vunpack.c.h.b16 %v767
        %v897 = vunpack.c.l.b16 %v580
        %v898 = vunpack.c.l.b16 %v766
        %v899 = vunpack.c.l.b16 %v592
        %v900 = vunpack.c.l.b16 %v770
        %v901 = vunpack.c.h.b16 %v592
        %v902 = vunpack.c.h.b16 %v770
        %v903 = vunpack.c.l.b16 %v595
        %v904 = vunpack.c.l.b16 %v769
        %v905 = vunpack.c.l.b16 %v607
        %v906 = vunpack.c.l.b16 %v773
        %v907 = vunpack.c.h.b16 %v607
        %v908 = vunpack.c.h.b16 %v773
        %v909 = vunpack.c.l.b16 %v610
        %v910 = vunpack.c.l.b16 %v772
        %v911 = vunpack.c.l.b16 %v622
        %v912 = vunpack.c.l.b16 %v776
        %v913 = vunpack.c.h.b16 %v622
        %v914 = vunpack.c.h.b16 %v776
        %v915 = vunpack.c.l.b16 %v625
        %v916 = vunpack.c.l.b16 %v775
        %v917 = vunpack.c.l.b16 %v637
        %v918 = vunpack.c.l.b16 %v779
        %v919 = vunpack.c.h.b16 %v637
        %v920 = vunpack.c.h.b16 %v779
        %v921 = vunpack.c.l.b16 %v640
        %v922 = vunpack.c.l.b16 %v778
        %v923 = vunpack.c.l.b16 %v652
        %v924 = vunpack.c.l.b16 %v782
        %v925 = vunpack.c.h.b16 %v652
        %v926 = vunpack.c.h.b16 %v782
        %v927 = vunpack.c.l.b16 %v655
        %v928 = vunpack.c.l.b16 %v781
        %v929 = vunpack.c.l.b16 %v667
        %v930 = vunpack.c.l.b16 %v785
        %v931 = vunpack.c.h.b16 %v667
        %v932 = vunpack.c.h.b16 %v785
        %v933 = vunpack.c.l.b16 %v670
        %v934 = vunpack.c.l.b16 %v784
        %v935 = vunpack.c.l.b16 %v682
        %v936 = vunpack.c.l.b16 %v788
        %v937 = vunpack.c.h.b16 %v682
        %v938 = vunpack.c.h.b16 %v788
        %v939 = vunpack.c.l.b16 %v685
        %v940 = vunpack.c.l.b16 %v787
        %v941 = vunpack.c.l.b16 %v697
        %v942 = vunpack.c.l.b16 %v791
        %v943 = vunpack.c.h.b16 %v697
        %v944 = vunpack.c.h.b16 %v791
        %v945 = vunpack.c.l.b16 %v700
        %v946 = vunpack.c.l.b16 %v790
        %v947 = vunpack.c.l.b16 %v712
        %v948 = vunpack.c.l.b16 %v794
        %v949 = vunpack.c.h.b16 %v712
        %v950 = vunpack.c.h.b16 %v794
        %v951 = vunpack.c.l.b16 %v715
        %v952 = vunpack.c.l.b16 %v793
        %v953 = vunpack.c.l.b16 %v727
        %v954 = vunpack.c.l.b16 %v797
        %v955 = vunpack.c.h.b16 %v727
        %v956 = vunpack.c.h.b16 %v797
        %v957 = vunpack.c.l.b16 %v730
        %v958 = vunpack.c.l.b16 %v796
        %v959 = vunpack.c.l.b16 %v742
        %v960 = vunpack.c.l.b16 %v800
        %v961 = vunpack.c.h.b16 %v742
        %v962 = vunpack.c.h.b16 %v800
        %v963 = vunpack.c.l.b16 %v745
        %v964 = vunpack.c.l.b16 %v799
        %v965 = vunpack.c.l.b16 %v822
        %v966 = vunpack.c.l.b16 %v828
        %v967 = vunpack.c.h.b16 %v822
        %v968 = vunpack.c.h.b16 %v828
        %v969 = vunpack.c.l.b16 %v825
        %v970 = vunpack.c.l.b16 %v827
        %v971 = vunpack.c.l.b16 %v850
        %v972 = vunpack.c.l.b16 %v856
        %v973 = vunpack.c.h.b16 %v850
        %v974 = vunpack.c.h.b16 %v856
        %v975 = vunpack.c.l.b16 %v853
        %v976 = vunpack.c.l.b16 %v855
        %v977 = vld [vmem:[%s1] sm:$0xf]
        %v978 = vld [vmem:[%s1 + $0x4] sm:$0xf]
        %v979 = vld [vmem:[%s1 + $0x8] sm:$0xf]
        %v980 = vld [vmem:[%s1 + $0xc] sm:$0xf]
        %v981 = vld [vmem:[%s1 + $0x10] sm:$0xf]
        %v982 = vld [vmem:[%s1 + $0x14] sm:$0xf]
        %v983 = vld [vmem:[%s1 + $0x18] sm:$0xf]
        %v984 = vld [vmem:[%s1 + $0x1c] sm:$0xf]
        %v985 = vld [vmem:[%s1 + $0x20] sm:$0xf]
        %v986 = vld [vmem:[%s1 + $0x24] sm:$0xf]
        %v987 = vld [vmem:[%s1 + $0x28] sm:$0xf]
        %v988 = vld [vmem:[%s1 + $0x2c] sm:$0xf]
        %v989 = vld [vmem:[%s1 + $0x30] sm:$0xf]
        %v990 = vld [vmem:[%s1 + $0x34] sm:$0xf]
        %v991 = vld [vmem:[%s1 + $0x38] sm:$0xf]
        %v992 = vld [vmem:[%s1 + $0x3c] sm:$0xf]
        %v993 = vld [vmem:[%s1 + $0x40] sm:$0xf]
        %v994 = vld [vmem:[%s1 + $0x44] sm:$0xf]
        %v995 = vld [vmem:[%s1 + $0x48] sm:$0xf]
        %v996 = vld [vmem:[%s1 + $0x4c] sm:$0xf]
        %v997 = vld [vmem:[%s1 + $0x50] sm:$0xf]
        %v998 = vld [vmem:[%s1 + $0x54] sm:$0xf]
        %v999 = vld [vmem:[%s1 + $0x58] sm:$0xf]
        %v1000 = vld [vmem:[%s1 + $0x5c] sm:$0xf]
        %v1001 = vld [vmem:[%s1 + $0x60] sm:$0xf]
        %v1002 = vld [vmem:[%s1 + $0x64] sm:$0xf]
        %v1003 = vld [vmem:[%s1 + $0x68] sm:$0xf]
        %v1004 = vld [vmem:[%s1 + $0x6c] sm:$0xf]
        %v1005 = vld [vmem:[%s1 + $0x70] sm:$0xf]
        %v1006 = vld [vmem:[%s1 + $0x74] sm:$0xf]
        %v1007 = vld [vmem:[%s1 + $0x78] sm:$0xf]
        %v1008 = vld [vmem:[%s1 + $0x7c] sm:$0xf]
        %v1009 = vld [vmem:[%s1 + $0x80] sm:$0xf]
        %v1010 = vld [vmem:[%s1 + $0x84] sm:$0xf]
        %v1011 = vld [vmem:[%s1 + $0x88] sm:$0xf]
        %v1012 = vld [vmem:[%s1 + $0x8c] sm:$0xf]
        %v1013 = vld [vmem:[%s1 + $0x90] sm:$0xf]
        %v1014 = vld [vmem:[%s1 + $0x94] sm:$0xf]
        %v1015 = vld [vmem:[%s1 + $0x98] sm:$0xf]
        %v1016 = vld [vmem:[%s1 + $0x9c] sm:$0xf]
        %v1017 = vld [vmem:[%s1 + $0xa0] sm:$0xf]
        %v1018 = vld [vmem:[%s1 + $0xa4] sm:$0xf]
        %v1019 = vld [vmem:[%s1 + $0xa8] sm:$0xf]
        %v1020 = vld [vmem:[%s1 + $0xac] sm:$0xf]
        %v1021 = vld [vmem:[%s1 + $0xb0] sm:$0xf]
        %v1022 = vld [vmem:[%s1 + $0xb4] sm:$0xf]
        %v1023 = vld [vmem:[%s1 + $0xb8] sm:$0xf]
        %v1024 = vld [vmem:[%s1 + $0xbc] sm:$0xf]
        %v1025 = vld [vmem:[%s1 + $0xc0] sm:$0xf]
        %v1026 = vld [vmem:[%s1 + $0xc4] sm:$0xf]
        %v1027 = vld [vmem:[%s1 + $0xc8] sm:$0xf]
        %v1028 = vld [vmem:[%s1 + $0xcc] sm:$0xf]
        %v1029 = vld [vmem:[%s1 + $0xd0] sm:$0xf]
        %v1030 = vld [vmem:[%s1 + $0xd4] sm:$0xf]
        %v1031 = vld [vmem:[%s1 + $0xd8] sm:$0xf]
        %v1032 = vld [vmem:[%s1 + $0xdc] sm:$0xf]
        %v1033 = vld [vmem:[%s1 + $0xe0] sm:$0xf]
        %v1034 = vld [vmem:[%s1 + $0xe4] sm:$0xf]
        %v1035 = vld [vmem:[%s1 + $0xe8] sm:$0xf]
        %v1036 = vld [vmem:[%s1 + $0xec] sm:$0xf]
        %v1037 = vld [vmem:[%s1 + $0xf0] sm:$0xf]
        %v1038 = vld [vmem:[%s1 + $0xf4] sm:$0xf]
        %v1039 = vld [vmem:[%s1 + $0xf8] sm:$0xf]
        %v1040 = vld [vmem:[%s1 + $0xfc] sm:$0xf]
        %v1041 = vld [vmem:[%s1 + $0x100] sm:$0xf]
        %v1042 = vld [vmem:[%s1 + $0x104] sm:$0xf]
        %v1043 = vld [vmem:[%s1 + $0x108] sm:$0xf]
        %v1044 = vld [vmem:[%s1 + $0x10c] sm:$0xf]
        %v1045 = vld [vmem:[%s1 + $0x110] sm:$0xf]
        %v1046 = vld [vmem:[%s1 + $0x114] sm:$0xf]
        %v1047 = vld [vmem:[%s1 + $0x118] sm:$0xf]
        %v1048 = vld [vmem:[%s1 + $0x11c] sm:$0xf]
        %v1049 = vld [vmem:[%s1 + $0x120] sm:$0xf]
        %v1050 = vld [vmem:[%s1 + $0x124] sm:$0xf]
        %v1051 = vld [vmem:[%s1 + $0x128] sm:$0xf]
        %v1052 = vld [vmem:[%s1 + $0x12c] sm:$0xf]
        %v1053 = vld [vmem:[%s1 + $0x130] sm:$0xf]
        %v1054 = vld [vmem:[%s1 + $0x134] sm:$0xf]
        %v1055 = vld [vmem:[%s1 + $0x138] sm:$0xf]
        %v1056 = vld [vmem:[%s1 + $0x13c] sm:$0xf]
        %v1057 = vld [vmem:[%s1 + $0x140] sm:$0xf]
        %v1058 = vld [vmem:[%s1 + $0x144] sm:$0xf]
        %v1059 = vld [vmem:[%s1 + $0x148] sm:$0xf]
        %v1060 = vld [vmem:[%s1 + $0x14c] sm:$0xf]
        %v1061 = vld [vmem:[%s1 + $0x150] sm:$0xf]
        %v1062 = vld [vmem:[%s1 + $0x154] sm:$0xf]
        %v1063 = vld [vmem:[%s1 + $0x158] sm:$0xf]
        %v1064 = vld [vmem:[%s1 + $0x15c] sm:$0xf]
        %v1065 = vld [vmem:[%s1 + $0x160] sm:$0xf]
        %v1066 = vld [vmem:[%s1 + $0x164] sm:$0xf]
        %v1067 = vld [vmem:[%s1 + $0x168] sm:$0xf]
        %v1068 = vld [vmem:[%s1 + $0x16c] sm:$0xf]
        %v1069 = vld [vmem:[%s1 + $0x170] sm:$0xf]
        %v1070 = vld [vmem:[%s1 + $0x174] sm:$0xf]
        %v1071 = vld [vmem:[%s1 + $0x178] sm:$0xf]
        %v1072 = vld [vmem:[%s1 + $0x17c] sm:$0xf]
        %v1073 = vld [vmem:[%s1 + $0x180] sm:$0xf]
        %v1074 = vld [vmem:[%s1 + $0x184] sm:$0xf]
        %v1075 = vld [vmem:[%s1 + $0x188] sm:$0xf]
        %v1076 = vld [vmem:[%s1 + $0x18c] sm:$0xf]
        %v1077 = vld [vmem:[%s1 + $0x190] sm:$0xf]
        %v1078 = vld [vmem:[%s1 + $0x194] sm:$0xf]
        %v1079 = vld [vmem:[%s1 + $0x198] sm:$0xf]
        %v1080 = vld [vmem:[%s1 + $0x19c] sm:$0xf]
        %v1081 = vld [vmem:[%s1 + $0x1a0] sm:$0xf]
        %v1082 = vld [vmem:[%s1 + $0x1a4] sm:$0xf]
        %v1083 = vld [vmem:[%s1 + $0x1a8] sm:$0xf]
        %v1084 = vld [vmem:[%s1 + $0x1ac] sm:$0xf]
        %v1085 = vld [vmem:[%s1 + $0x1b0] sm:$0xf]
        %v1086 = vld [vmem:[%s1 + $0x1b4] sm:$0xf]
        %v1087 = vld [vmem:[%s1 + $0x1b8] sm:$0xf]
        %v1088 = vld [vmem:[%s1 + $0x1bc] sm:$0xf]
        %v1089 = vld [vmem:[%s1 + $0x1c0] sm:$0xf]
        %v1090 = vld [vmem:[%s1 + $0x1c4] sm:$0xf]
        %v1091 = vld [vmem:[%s1 + $0x1c8] sm:$0xf]
        %v1092 = vld [vmem:[%s1 + $0x1cc] sm:$0xf]
        %v1093 = vld [vmem:[%s1 + $0x1d0] sm:$0xf]
        %v1094 = vld [vmem:[%s1 + $0x1d4] sm:$0xf]
        %v1095 = vld [vmem:[%s1 + $0x1d8] sm:$0xf]
        %v1096 = vld [vmem:[%s1 + $0x1dc] sm:$0xf]
        %v1097 = vld [vmem:[%s1 + $0x1e0] sm:$0xf]
        %v1098 = vld [vmem:[%s1 + $0x1e4] sm:$0xf]
        %v1099 = vld [vmem:[%s1 + $0x1e8] sm:$0xf]
        %v1100 = vld [vmem:[%s1 + $0x1ec] sm:$0xf]
        %v1101 = vld [vmem:[%s1 + $0x1f0] sm:$0xf]
        %v1102 = vld [vmem:[%s1 + $0x1f4] sm:$0xf]
        %v1103 = vld [vmem:[%s1 + $0x1f8] sm:$0xf]
        %v1104 = vld [vmem:[%s1 + $0x1fc] sm:$0xf]
        %v1105 = vld [vmem:[%s1 + $0x200] sm:$0xf]
        %v1106 = vld [vmem:[%s1 + $0x204] sm:$0xf]
        %v1107 = vld [vmem:[%s1 + $0x208] sm:$0xf]
        %v1108 = vld [vmem:[%s1 + $0x20c] sm:$0xf]
        %v1109 = vld [vmem:[%s1 + $0x210] sm:$0xf]
        %v1110 = vld [vmem:[%s1 + $0x214] sm:$0xf]
        %v1111 = vld [vmem:[%s1 + $0x218] sm:$0xf]
        %v1112 = vld [vmem:[%s1 + $0x21c] sm:$0xf]
        %v1113 = vld [vmem:[%s1 + $0x220] sm:$0xf]
        %v1114 = vld [vmem:[%s1 + $0x224] sm:$0xf]
        %v1115 = vld [vmem:[%s1 + $0x228] sm:$0xf]
        %v1116 = vld [vmem:[%s1 + $0x22c] sm:$0xf]
        %v1117 = vld [vmem:[%s1 + $0x230] sm:$0xf]
        %v1118 = vld [vmem:[%s1 + $0x234] sm:$0xf]
        %v1119 = vld [vmem:[%s1 + $0x238] sm:$0xf]
        %v1120 = vld [vmem:[%s1 + $0x23c] sm:$0xf]
        %v1121 = vpack.c.b16 %v863, %v857
        %v1122 = vpack.c.b16 %v864, %v858
        %v1123 = vpack.c.b16 %v865, %v859
        %v1124 = vpack.c.b16 %v866, %v860
        %v1125 = vpack.c.b16 %v867, %v861
        %v1126 = vpack.c.b16 %v868, %v862
        %v1127 = vpack.c.b16 %v352, %v351
        %v1128 = vpack.c.b16 %v859, %v869
        %v1129 = vpack.c.b16 %v860, %v870
        %v1130 = vpack.c.b16 %v355, %v354
        %v1131 = vpack.c.b16 %v861, %v871
        %v1132 = vpack.c.b16 %v862, %v872
        %v1133 = vpack.c.b16 %v358, %v357
        %v1134 = vpack.c.b16 %v875, %v873
        %v1135 = vpack.c.b16 %v876, %v874
        %v1136 = vpack.c.b16 %v354, %v353
        %v1137 = vpack.c.b16 %v871, %v865
        %v1138 = vpack.c.b16 %v872, %v866
        %v1139 = vpack.c.b16 %v357, %v356
        %v1140 = vpack.c.b16 %v873, %v867
        %v1141 = vpack.c.b16 %v874, %v868
        %v1142 = vpack.c.b16 %v360, %v359
        %v1143 = vpack.c.b16 %v879, %v877
        %v1144 = vpack.c.b16 %v880, %v878
        %v1145 = vpack.c.b16 %v877, %v875
        %v1146 = vpack.c.b16 %v878, %v876
        %v1147 = vpack.c.b16 %v883, %v881
        %v1148 = vpack.c.b16 %v884, %v882
        %v1149 = vpack.c.b16 %v361, %v360
        %v1150 = vpack.c.b16 %v881, %v879
        %v1151 = vpack.c.b16 %v882, %v880
        %v1152 = vpack.c.b16 %v364, %v363
        %v1153 = vpack.c.b16 %v887, %v885
        %v1154 = vpack.c.b16 %v888, %v886
        %v1155 = vpack.c.b16 %v363, %v362
        %v1156 = vpack.c.b16 %v885, %v883
        %v1157 = vpack.c.b16 %v886, %v884
        %v1158 = vpack.c.b16 %v366, %v365
        %v1159 = vpack.c.b16 %v891, %v889
        %v1160 = vpack.c.b16 %v892, %v890
        %v1161 = vpack.c.b16 %v889, %v887
        %v1162 = vpack.c.b16 %v890, %v888
        %v1163 = vpack.c.b16 %v895, %v893
        %v1164 = vpack.c.b16 %v896, %v894
        %v1165 = vpack.c.b16 %v367, %v366
        %v1166 = vpack.c.b16 %v893, %v891
        %v1167 = vpack.c.b16 %v894, %v892
        %v1168 = vpack.c.b16 %v370, %v369
        %v1169 = vpack.c.b16 %v899, %v897
        %v1170 = vpack.c.b16 %v900, %v898
        %v1171 = vpack.c.b16 %v369, %v368
        %v1172 = vpack.c.b16 %v897, %v895
        %v1173 = vpack.c.b16 %v898, %v896
        %v1174 = vpack.c.b16 %v372, %v371
        %v1175 = vpack.c.b16 %v903, %v901
        %v1176 = vpack.c.b16 %v904, %v902
        %v1177 = vpack.c.b16 %v901, %v899
        %v1178 = vpack.c.b16 %v902, %v900
        %v1179 = vpack.c.b16 %v907, %v905
        %v1180 = vpack.c.b16 %v908, %v906
        %v1181 = vpack.c.b16 %v373, %v372
        %v1182 = vpack.c.b16 %v905, %v903
        %v1183 = vpack.c.b16 %v906, %v904
        %v1184 = vpack.c.b16 %v376, %v375
        %v1185 = vpack.c.b16 %v911, %v909
        %v1186 = vpack.c.b16 %v912, %v910
        %v1187 = vpack.c.b16 %v375, %v374
        %v1188 = vpack.c.b16 %v909, %v907
        %v1189 = vpack.c.b16 %v910, %v908
        %v1190 = vpack.c.b16 %v378, %v377
        %v1191 = vpack.c.b16 %v915, %v913
        %v1192 = vpack.c.b16 %v916, %v914
        %v1193 = vpack.c.b16 %v913, %v911
        %v1194 = vpack.c.b16 %v914, %v912
        %v1195 = vpack.c.b16 %v919, %v917
        %v1196 = vpack.c.b16 %v920, %v918
        %v1197 = vpack.c.b16 %v379, %v378
        %v1198 = vpack.c.b16 %v917, %v915
        %v1199 = vpack.c.b16 %v918, %v916
        %v1200 = vpack.c.b16 %v382, %v381
        %v1201 = vpack.c.b16 %v923, %v921
        %v1202 = vpack.c.b16 %v924, %v922
        %v1203 = vpack.c.b16 %v381, %v380
        %v1204 = vpack.c.b16 %v921, %v919
        %v1205 = vpack.c.b16 %v922, %v920
        %v1206 = vpack.c.b16 %v384, %v383
        %v1207 = vpack.c.b16 %v927, %v925
        %v1208 = vpack.c.b16 %v928, %v926
        %v1209 = vpack.c.b16 %v925, %v923
        %v1210 = vpack.c.b16 %v926, %v924
        %v1211 = vpack.c.b16 %v931, %v929
        %v1212 = vpack.c.b16 %v932, %v930
        %v1213 = vpack.c.b16 %v385, %v384
        %v1214 = vpack.c.b16 %v929, %v927
        %v1215 = vpack.c.b16 %v930, %v928
        %v1216 = vpack.c.b16 %v388, %v387
        %v1217 = vpack.c.b16 %v935, %v933
        %v1218 = vpack.c.b16 %v936, %v934
        %v1219 = vpack.c.b16 %v387, %v386
        %v1220 = vpack.c.b16 %v933, %v931
        %v1221 = vpack.c.b16 %v934, %v932
        %v1222 = vpack.c.b16 %v390, %v389
        %v1223 = vpack.c.b16 %v939, %v937
        %v1224 = vpack.c.b16 %v940, %v938
        %v1225 = vpack.c.b16 %v937, %v935
        %v1226 = vpack.c.b16 %v938, %v936
        %v1227 = vpack.c.b16 %v943, %v941
        %v1228 = vpack.c.b16 %v944, %v942
        %v1229 = vpack.c.b16 %v391, %v390
        %v1230 = vpack.c.b16 %v941, %v939
        %v1231 = vpack.c.b16 %v942, %v940
        %v1232 = vpack.c.b16 %v394, %v393
        %v1233 = vpack.c.b16 %v947, %v945
        %v1234 = vpack.c.b16 %v948, %v946
        %v1235 = vpack.c.b16 %v393, %v392
        %v1236 = vpack.c.b16 %v945, %v943
        %v1237 = vpack.c.b16 %v946, %v944
        %v1238 = vpack.c.b16 %v396, %v395
        %v1239 = vpack.c.b16 %v951, %v949
        %v1240 = vpack.c.b16 %v952, %v950
        %v1241 = vpack.c.b16 %v949, %v947
        %v1242 = vpack.c.b16 %v950, %v948
        %v1243 = vpack.c.b16 %v955, %v953
        %v1244 = vpack.c.b16 %v956, %v954
        %v1245 = vpack.c.b16 %v397, %v396
        %v1246 = vpack.c.b16 %v953, %v951
        %v1247 = vpack.c.b16 %v954, %v952
        %v1248 = vpack.c.b16 %v400, %v399
        %v1249 = vpack.c.b16 %v959, %v957
        %v1250 = vpack.c.b16 %v960, %v958
        %v1251 = vpack.c.b16 %v399, %v398
        %v1252 = vpack.c.b16 %v957, %v955
        %v1253 = vpack.c.b16 %v958, %v956
        %v1254 = vpack.c.b16 %v402, %v401
        %v1255 = vpack.c.b16 %v963, %v961
        %v1256 = vpack.c.b16 %v964, %v962
        %v1257 = vpack.c.b16 %v961, %v959
        %v1258 = vpack.c.b16 %v962, %v960
        %v1259 = vpack.c.b16 %v967, %v965
        %v1260 = vpack.c.b16 %v968, %v966
        %v1261 = vpack.c.b16 %v804, %v402
        %v1262 = vpack.c.b16 %v965, %v963
        %v1263 = vpack.c.b16 %v966, %v964
        %v1264 = vpack.c.b16 %v832, %v806
        %v1265 = vpack.c.b16 %v971, %v969
        %v1266 = vpack.c.b16 %v972, %v970
        %v1267 = vpack.c.b16 %v806, %v805
        %v1268 = vpack.c.b16 %v969, %v967
        %v1269 = vpack.c.b16 %v970, %v968
        %v1270 = vpack.c.b16 %v834, %v833
        %v1271 = vpack.c.b16 %v975, %v973
        %v1272 = vpack.c.b16 %v976, %v974
        %v1588 = vunpack.c.l.b16 %v977
        %v1589 = vunpack.c.l.b16 %v978
        %v1590 = vunpack.c.l.b16 %v979
        %v1591 = vunpack.c.l.b16 %v980
        %v1592 = vunpack.c.l.b16 %v981
        %v1593 = vunpack.c.l.b16 %v982
        %v1594 = vunpack.c.l.b16 %v983
        %v1595 = vunpack.c.l.b16 %v984
        %v1596 = vunpack.c.l.b16 %v985
        %v1597 = vunpack.c.l.b16 %v986
        %v1598 = vunpack.c.l.b16 %v987
        %v1599 = vunpack.c.l.b16 %v988
        %v1600 = vunpack.c.l.b16 %v989
        %v1601 = vunpack.c.l.b16 %v990
        %v1602 = vunpack.c.l.b16 %v991
        %v1603 = vunpack.c.l.b16 %v992
        %v1604 = vunpack.c.l.b16 %v993
        %v1605 = vunpack.c.l.b16 %v994
        %v1606 = vunpack.c.l.b16 %v995
        %v1607 = vunpack.c.l.b16 %v996
        %v1608 = vunpack.c.l.b16 %v997
        %v1609 = vunpack.c.l.b16 %v998
        %v1610 = vunpack.c.l.b16 %v999
        %v1611 = vunpack.c.l.b16 %v1000
        %v1612 = vunpack.c.l.b16 %v1001
        %v1613 = vunpack.c.l.b16 %v1002
        %v1614 = vunpack.c.l.b16 %v1003
        %v1615 = vunpack.c.l.b16 %v1004
        %v1616 = vunpack.c.l.b16 %v1005
        %v1617 = vunpack.c.l.b16 %v1006
        %v1618 = vunpack.c.l.b16 %v1007
        %v1619 = vunpack.c.l.b16 %v1008
        %v1620 = vunpack.c.l.b16 %v1009
        %v1621 = vunpack.c.l.b16 %v1010
        %v1622 = vunpack.c.l.b16 %v1011
        %v1623 = vunpack.c.l.b16 %v1012
        %v1624 = vunpack.c.l.b16 %v1013
        %v1625 = vunpack.c.l.b16 %v1014
        %v1626 = vunpack.c.l.b16 %v1015
        %v1627 = vunpack.c.l.b16 %v1016
        %v1628 = vunpack.c.l.b16 %v1017
        %v1629 = vunpack.c.l.b16 %v1018
        %v1630 = vunpack.c.l.b16 %v1019
        %v1631 = vunpack.c.l.b16 %v1020
        %v1632 = vunpack.c.l.b16 %v1021
        %v1633 = vunpack.c.l.b16 %v1022
        %v1634 = vunpack.c.l.b16 %v1023
        %v1635 = vunpack.c.l.b16 %v1024
        %v1636 = vunpack.c.l.b16 %v1025
        %v1637 = vunpack.c.l.b16 %v1026
        %v1638 = vunpack.c.l.b16 %v1027
        %v1639 = vunpack.c.l.b16 %v1028
        %v1640 = vunpack.c.l.b16 %v1029
        %v1641 = vunpack.c.l.b16 %v1030
        %v1642 = vunpack.c.l.b16 %v1031
        %v1643 = vunpack.c.l.b16 %v1032
        %v1644 = vunpack.c.l.b16 %v1033
        %v1645 = vunpack.c.l.b16 %v1034
        %v1646 = vunpack.c.l.b16 %v1035
        %v1647 = vunpack.c.l.b16 %v1036
        %v1648 = vunpack.c.l.b16 %v1037
        %v1649 = vunpack.c.l.b16 %v1038
        %v1650 = vunpack.c.l.b16 %v1039
        %v1651 = vunpack.c.l.b16 %v1040
        %v1652 = vunpack.c.l.b16 %v1041
        %v1653 = vunpack.c.l.b16 %v1042
        %v1654 = vunpack.c.l.b16 %v1043
        %v1655 = vunpack.c.l.b16 %v1044
        %v1656 = vunpack.c.l.b16 %v1045
        %v1657 = vunpack.c.l.b16 %v1046
        %v1658 = vunpack.c.l.b16 %v1047
        %v1659 = vunpack.c.l.b16 %v1048
        %v1660 = vunpack.c.l.b16 %v1049
        %v1661 = vunpack.c.l.b16 %v1050
        %v1662 = vunpack.c.l.b16 %v1051
        %v1663 = vunpack.c.l.b16 %v1052
        %v1664 = vunpack.c.l.b16 %v1053
        %v1665 = vunpack.c.l.b16 %v1054
        %v1666 = vunpack.c.l.b16 %v1055
        %v1667 = vunpack.c.l.b16 %v1056
        %v1668 = vunpack.c.l.b16 %v1057
        %v1669 = vunpack.c.l.b16 %v1058
        %v1670 = vunpack.c.l.b16 %v1059
        %v1671 = vunpack.c.l.b16 %v1060
        %v1672 = vunpack.c.l.b16 %v1061
        %v1673 = vunpack.c.l.b16 %v1062
        %v1674 = vunpack.c.l.b16 %v1063
        %v1675 = vunpack.c.l.b16 %v1064
        %v1676 = vunpack.c.l.b16 %v1065
        %v1677 = vunpack.c.l.b16 %v1066
        %v1678 = vunpack.c.l.b16 %v1067
        %v1679 = vunpack.c.l.b16 %v1068
        %v1680 = vunpack.c.l.b16 %v1069
        %v1681 = vunpack.c.l.b16 %v1070
        %v1682 = vunpack.c.l.b16 %v1071
        %v1683 = vunpack.c.l.b16 %v1072
        %v1684 = vunpack.c.l.b16 %v1073
        %v1685 = vunpack.c.l.b16 %v1074
        %v1686 = vunpack.c.l.b16 %v1075
        %v1687 = vunpack.c.l.b16 %v1076
        %v1688 = vunpack.c.l.b16 %v1077
        %v1689 = vunpack.c.l.b16 %v1078
        %v1690 = vunpack.c.l.b16 %v1079
        %v1691 = vunpack.c.l.b16 %v1080
        %v1692 = vunpack.c.l.b16 %v1081
        %v1693 = vunpack.c.l.b16 %v1082
        %v1694 = vunpack.c.l.b16 %v1083
        %v1695 = vunpack.c.l.b16 %v1084
        %v1696 = vunpack.c.l.b16 %v1085
        %v1697 = vunpack.c.l.b16 %v1086
        %v1698 = vunpack.c.l.b16 %v1087
        %v1699 = vunpack.c.l.b16 %v1088
        %v1700 = vunpack.c.l.b16 %v1089
        %v1701 = vunpack.c.l.b16 %v1090
        %v1702 = vunpack.c.l.b16 %v1091
        %v1703 = vunpack.c.l.b16 %v1092
        %v1704 = vunpack.c.l.b16 %v1093
        %v1705 = vunpack.c.l.b16 %v1094
        %v1706 = vunpack.c.l.b16 %v1095
        %v1707 = vunpack.c.l.b16 %v1096
        %v1708 = vunpack.c.l.b16 %v1097
        %v1709 = vunpack.c.l.b16 %v1098
        %v1710 = vunpack.c.l.b16 %v1099
        %v1711 = vunpack.c.l.b16 %v1100
        %v1712 = vunpack.c.l.b16 %v1101
        %v1713 = vunpack.c.l.b16 %v1102
        %v1714 = vunpack.c.l.b16 %v1103
        %v1715 = vunpack.c.l.b16 %v1104
        %v1716 = vunpack.c.l.b16 %v1105
        %v1717 = vunpack.c.l.b16 %v1106
        %v1718 = vunpack.c.l.b16 %v1107
        %v1719 = vunpack.c.l.b16 %v1108
        %v1720 = vunpack.c.l.b16 %v1109
        %v1721 = vunpack.c.l.b16 %v1110
        %v1722 = vunpack.c.l.b16 %v1111
        %v1723 = vunpack.c.l.b16 %v1112
        %v1724 = vunpack.c.l.b16 %v1113
        %v1725 = vunpack.c.l.b16 %v1114
        %v1726 = vunpack.c.l.b16 %v1115
        %v1727 = vunpack.c.l.b16 %v1116
        %v1728 = vunpack.c.l.b16 %v1117
        %v1729 = vunpack.c.l.b16 %v1118
        %v1730 = vunpack.c.l.b16 %v1119
        %v1731 = vunpack.c.l.b16 %v1120
        %v1732 = vpack.c.b16 %v1589, %v1588
        %v1733 = vpack.c.b16 %v1591, %v1590
        %v1734 = vpack.c.b16 %v1593, %v1592
        %v1735 = vpack.c.b16 %v1595, %v1594
        %v1736 = vpack.c.b16 %v1597, %v1596
        %v1737 = vpack.c.b16 %v1599, %v1598
        %v1738 = vpack.c.b16 %v1601, %v1600
        %v1739 = vpack.c.b16 %v1603, %v1602
        %v1740 = vpack.c.b16 %v1605, %v1604
        %v1741 = vpack.c.b16 %v1607, %v1606
        %v1742 = vpack.c.b16 %v1609, %v1608
        %v1743 = vpack.c.b16 %v1611, %v1610
        %v1744 = vpack.c.b16 %v1613, %v1612
        %v1745 = vpack.c.b16 %v1615, %v1614
        %v1746 = vpack.c.b16 %v1617, %v1616
        %v1747 = vpack.c.b16 %v1619, %v1618
        %v1748 = vpack.c.b16 %v1621, %v1620
        %v1749 = vpack.c.b16 %v1623, %v1622
        %v1750 = vpack.c.b16 %v1625, %v1624
        %v1751 = vpack.c.b16 %v1627, %v1626
        %v1752 = vpack.c.b16 %v1629, %v1628
        %v1753 = vpack.c.b16 %v1631, %v1630
        %v1754 = vpack.c.b16 %v1633, %v1632
        %v1755 = vpack.c.b16 %v1635, %v1634
        %v1756 = vpack.c.b16 %v1637, %v1636
        %v1757 = vpack.c.b16 %v1639, %v1638
        %v1758 = vpack.c.b16 %v1641, %v1640
        %v1759 = vpack.c.b16 %v1643, %v1642
        %v1760 = vpack.c.b16 %v1645, %v1644
        %v1761 = vpack.c.b16 %v1647, %v1646
        %v1762 = vpack.c.b16 %v1649, %v1648
        %v1763 = vpack.c.b16 %v1651, %v1650
        %v1764 = vpack.c.b16 %v1653, %v1652
        %v1765 = vpack.c.b16 %v1655, %v1654
        %v1766 = vpack.c.b16 %v1657, %v1656
        %v1767 = vpack.c.b16 %v1659, %v1658
        %v1768 = vpack.c.b16 %v1661, %v1660
        %v1769 = vpack.c.b16 %v1663, %v1662
        %v1770 = vpack.c.b16 %v1665, %v1664
        %v1771 = vpack.c.b16 %v1667, %v1666
        %v1772 = vpack.c.b16 %v1669, %v1668
        %v1773 = vpack.c.b16 %v1671, %v1670
        %v1774 = vpack.c.b16 %v1673, %v1672
        %v1775 = vpack.c.b16 %v1675, %v1674
        %v1776 = vpack.c.b16 %v1677, %v1676
        %v1777 = vpack.c.b16 %v1679, %v1678
        %v1778 = vpack.c.b16 %v1681, %v1680
        %v1779 = vpack.c.b16 %v1683, %v1682
        %v1780 = vpack.c.b16 %v1685, %v1684
        %v1781 = vpack.c.b16 %v1687, %v1686
        %v1782 = vpack.c.b16 %v1689, %v1688
        %v1783 = vpack.c.b16 %v1691, %v1690
        %v1784 = vpack.c.b16 %v1693, %v1692
        %v1785 = vpack.c.b16 %v1695, %v1694
        %v1786 = vpack.c.b16 %v1697, %v1696
        %v1787 = vpack.c.b16 %v1699, %v1698
        %v1788 = vpack.c.b16 %v1701, %v1700
        %v1789 = vpack.c.b16 %v1703, %v1702
        %v1790 = vpack.c.b16 %v1705, %v1704
        %v1791 = vpack.c.b16 %v1707, %v1706
        %v1792 = vpack.c.b16 %v1709, %v1708
        %v1793 = vpack.c.b16 %v1711, %v1710
        %v1794 = vpack.c.b16 %v1713, %v1712
        %v1795 = vpack.c.b16 %v1715, %v1714
        %v1796 = vpack.c.b16 %v1717, %v1716
        %v1797 = vpack.c.b16 %v1719, %v1718
        %v1798 = vpack.c.b16 %v1721, %v1720
        %v1799 = vpack.c.b16 %v1723, %v1722
        %v1800 = vpack.c.b16 %v1725, %v1724
        %v1801 = vpack.c.b16 %v1727, %v1726
        %v1802 = vpack.c.b16 %v1729, %v1728
        %v1803 = vpack.c.b16 %v1731, %v1730
        %1876 = vmatpush.bf16.msra.mxu0 %v1739
        %1877 = vmatpush.bf16.msra.mxu0 %v1738
        %1878 = vmatpush.bf16.msra.mxu0 %v1737
        %1879 = vmatpush.bf16.msra.mxu0 %v1736
        %1880 = vmatpush.bf16.msra.mxu0 %v1735
        %1881 = vmatpush.bf16.msra.mxu0 %v1734
        %1882 = vmatpush.bf16.msra.mxu0 %v1733
        %1883 = vmatpush.bf16.msra.mxu0 %v1732
        %1884 = vmatmul.bf16.gmra.mxu0 %v439
        %v1885 = vpop.f32.mrf.mxu0
        %v1886 = vadd.f32 0.0, %v1885
        %v1887 = vpop.f32.mrf.mxu0
        %v1888 = vadd.f32 0.0, %v1887
        %1889 = vmatmul.bf16.gmra.mxu0 %v1127
        %v1890 = vpop.f32.mrf.mxu0
        %v1891 = vadd.f32 0.0, %v1890
        %v1892 = vpop.f32.mrf.mxu0
        %v1893 = vadd.f32 0.0, %v1892
        %1894 = vmatmul.bf16.gmra.mxu0 %v1136
        %v1895 = vpop.f32.mrf.mxu0
        %v1896 = vadd.f32 0.0, %v1895
        %v1897 = vpop.f32.mrf.mxu0
        %v1898 = vadd.f32 0.0, %v1897
        %1899 = vmatmul.bf16.gmra.mxu0 %v443
        %v1900 = vpop.f32.mrf.mxu0
        %v1901 = vadd.f32 0.0, %v1900
        %v1902 = vpop.f32.mrf.mxu0
        %v1903 = vadd.f32 0.0, %v1902
        %1904 = vmatmul.bf16.gmra.mxu0 %v1133
        %v1905 = vpop.f32.mrf.mxu0
        %v1906 = vadd.f32 0.0, %v1905
        %v1907 = vpop.f32.mrf.mxu0
        %v1908 = vadd.f32 0.0, %v1907
        %1909 = vmatmul.bf16.gmra.mxu0 %v1142
        %v1910 = vpop.f32.mrf.mxu0
        %v1911 = vadd.f32 0.0, %v1910
        %v1912 = vpop.f32.mrf.mxu0
        %v1913 = vadd.f32 0.0, %v1912
        %1914 = vmatmul.bf16.gmra.mxu0 %v447
        %v1915 = vpop.f32.mrf.mxu0
        %v1916 = vadd.f32 0.0, %v1915
        %v1917 = vpop.f32.mrf.mxu0
        %v1918 = vadd.f32 0.0, %v1917
        %1919 = vmatmul.bf16.gmra.mxu0 %v1152
        %v1920 = vpop.f32.mrf.mxu0
        %v1921 = vadd.f32 0.0, %v1920
        %v1922 = vpop.f32.mrf.mxu0
        %v1923 = vadd.f32 0.0, %v1922
        %1924 = vmatmul.bf16.gmra.mxu0 %v1158
        %v1925 = vpop.f32.mrf.mxu0
        %v1926 = vadd.f32 0.0, %v1925
        %v1927 = vpop.f32.mrf.mxu0
        %v1928 = vadd.f32 0.0, %v1927
        %1929 = vmatmul.bf16.gmra.mxu0 %v451
        %v1930 = vpop.f32.mrf.mxu0
        %v1931 = vadd.f32 0.0, %v1930
        %v1932 = vpop.f32.mrf.mxu0
        %v1933 = vadd.f32 0.0, %v1932
        %1934 = vmatmul.bf16.gmra.mxu0 %v1168
        %v1935 = vpop.f32.mrf.mxu0
        %v1936 = vadd.f32 0.0, %v1935
        %v1937 = vpop.f32.mrf.mxu0
        %v1938 = vadd.f32 0.0, %v1937
        %1939 = vmatmul.bf16.gmra.mxu0 %v1174
        %v1940 = vpop.f32.mrf.mxu0
        %v1941 = vadd.f32 0.0, %v1940
        %v1942 = vpop.f32.mrf.mxu0
        %v1943 = vadd.f32 0.0, %v1942
        %1944 = vmatmul.bf16.gmra.mxu0 %v455
        %v1945 = vpop.f32.mrf.mxu0
        %v1946 = vadd.f32 0.0, %v1945
        %v1947 = vpop.f32.mrf.mxu0
        %v1948 = vadd.f32 0.0, %v1947
        %1949 = vmatmul.bf16.gmra.mxu0 %v1184
        %v1950 = vpop.f32.mrf.mxu0
        %v1951 = vadd.f32 0.0, %v1950
        %v1952 = vpop.f32.mrf.mxu0
        %v1953 = vadd.f32 0.0, %v1952
        %1954 = vmatmul.bf16.gmra.mxu0 %v1190
        %v1955 = vpop.f32.mrf.mxu0
        %v1956 = vadd.f32 0.0, %v1955
        %v1957 = vpop.f32.mrf.mxu0
        %v1958 = vadd.f32 0.0, %v1957
        %1959 = vmatmul.bf16.gmra.mxu0 %v459
        %v1960 = vpop.f32.mrf.mxu0
        %v1961 = vadd.f32 0.0, %v1960
        %v1962 = vpop.f32.mrf.mxu0
        %v1963 = vadd.f32 0.0, %v1962
        %1964 = vmatmul.bf16.gmra.mxu0 %v1200
        %v1965 = vpop.f32.mrf.mxu0
        %v1966 = vadd.f32 0.0, %v1965
        %v1967 = vpop.f32.mrf.mxu0
        %v1968 = vadd.f32 0.0, %v1967
        %1969 = vmatmul.bf16.gmra.mxu0 %v1206
        %v1970 = vpop.f32.mrf.mxu0
        %v1971 = vadd.f32 0.0, %v1970
        %v1972 = vpop.f32.mrf.mxu0
        %v1973 = vadd.f32 0.0, %v1972
        %1974 = vmatmul.bf16.gmra.mxu0 %v463
        %v1975 = vpop.f32.mrf.mxu0
        %v1976 = vadd.f32 0.0, %v1975
        %v1977 = vpop.f32.mrf.mxu0
        %v1978 = vadd.f32 0.0, %v1977
        %1979 = vmatmul.bf16.gmra.mxu0 %v1216
        %v1980 = vpop.f32.mrf.mxu0
        %v1981 = vadd.f32 0.0, %v1980
        %v1982 = vpop.f32.mrf.mxu0
        %v1983 = vadd.f32 0.0, %v1982
        %1984 = vmatmul.bf16.gmra.mxu0 %v1222
        %v1985 = vpop.f32.mrf.mxu0
        %v1986 = vadd.f32 0.0, %v1985
        %v1987 = vpop.f32.mrf.mxu0
        %v1988 = vadd.f32 0.0, %v1987
        %1989 = vmatmul.bf16.gmra.mxu0 %v467
        %v1990 = vpop.f32.mrf.mxu0
        %v1991 = vadd.f32 0.0, %v1990
        %v1992 = vpop.f32.mrf.mxu0
        %v1993 = vadd.f32 0.0, %v1992
        %1994 = vmatmul.bf16.gmra.mxu0 %v1232
        %v1995 = vpop.f32.mrf.mxu0
        %v1996 = vadd.f32 0.0, %v1995
        %v1997 = vpop.f32.mrf.mxu0
        %v1998 = vadd.f32 0.0, %v1997
        %1999 = vmatmul.bf16.gmra.mxu0 %v1238
        %v2000 = vpop.f32.mrf.mxu0
        %v2001 = vadd.f32 0.0, %v2000
        %v2002 = vpop.f32.mrf.mxu0
        %v2003 = vadd.f32 0.0, %v2002
        %2004 = vmatmul.bf16.gmra.mxu0 %v471
        %v2005 = vpop.f32.mrf.mxu0
        %v2006 = vadd.f32 0.0, %v2005
        %v2007 = vpop.f32.mrf.mxu0
        %v2008 = vadd.f32 0.0, %v2007
        %2009 = vmatmul.bf16.gmra.mxu0 %v1248
        %v2010 = vpop.f32.mrf.mxu0
        %v2011 = vadd.f32 0.0, %v2010
        %v2012 = vpop.f32.mrf.mxu0
        %v2013 = vadd.f32 0.0, %v2012
        %2014 = vmatmul.bf16.gmra.mxu0 %v1254
        %v2015 = vpop.f32.mrf.mxu0
        %v2016 = vadd.f32 0.0, %v2015
        %v2017 = vpop.f32.mrf.mxu0
        %v2018 = vadd.f32 0.0, %v2017
        %2019 = vdwg.mxu0
        %2020 = vmatpush.bf16.msra.mxu0 %v1747
        %2021 = vmatpush.bf16.msra.mxu0 %v1746
        %2022 = vmatpush.bf16.msra.mxu0 %v1745
        %2023 = vmatpush.bf16.msra.mxu0 %v1744
        %2024 = vmatpush.bf16.msra.mxu0 %v1743
        %2025 = vmatpush.bf16.msra.mxu0 %v1742
        %2026 = vmatpush.bf16.msra.mxu0 %v1741
        %2027 = vmatpush.bf16.msra.mxu0 %v1740
        %2028 = vmatmul.bf16.gmra.mxu0 %v1121
        %v2029 = vpop.f32.mrf.mxu0
        %v2030 = vadd.f32 %v1886, %v2029
        %v2031 = vpop.f32.mrf.mxu0
        %v2032 = vadd.f32 %v1888, %v2031
        %2033 = vmatmul.bf16.gmra.mxu0 %v1128
        %v2034 = vpop.f32.mrf.mxu0
        %v2035 = vadd.f32 %v1891, %v2034
        %v2036 = vpop.f32.mrf.mxu0
        %v2037 = vadd.f32 %v1893, %v2036
        %2038 = vmatmul.bf16.gmra.mxu0 %v1137
        %v2039 = vpop.f32.mrf.mxu0
        %v2040 = vadd.f32 %v1896, %v2039
        %v2041 = vpop.f32.mrf.mxu0
        %v2042 = vadd.f32 %v1898, %v2041
        %2043 = vmatmul.bf16.gmra.mxu0 %v1125
        %v2044 = vpop.f32.mrf.mxu0
        %v2045 = vadd.f32 %v1901, %v2044
        %v2046 = vpop.f32.mrf.mxu0
        %v2047 = vadd.f32 %v1903, %v2046
        %2048 = vmatmul.bf16.gmra.mxu0 %v1134
        %v2049 = vpop.f32.mrf.mxu0
        %v2050 = vadd.f32 %v1906, %v2049
        %v2051 = vpop.f32.mrf.mxu0
        %v2052 = vadd.f32 %v1908, %v2051
        %2053 = vmatmul.bf16.gmra.mxu0 %v1143
        %v2054 = vpop.f32.mrf.mxu0
        %v2055 = vadd.f32 %v1911, %v2054
        %v2056 = vpop.f32.mrf.mxu0
        %v2057 = vadd.f32 %v1913, %v2056
        %2058 = vmatmul.bf16.gmra.mxu0 %v1147
        %v2059 = vpop.f32.mrf.mxu0
        %v2060 = vadd.f32 %v1916, %v2059
        %v2061 = vpop.f32.mrf.mxu0
        %v2062 = vadd.f32 %v1918, %v2061
        %2063 = vmatmul.bf16.gmra.mxu0 %v1153
        %v2064 = vpop.f32.mrf.mxu0
        %v2065 = vadd.f32 %v1921, %v2064
        %v2066 = vpop.f32.mrf.mxu0
        %v2067 = vadd.f32 %v1923, %v2066
        %2068 = vmatmul.bf16.gmra.mxu0 %v1159
        %v2069 = vpop.f32.mrf.mxu0
        %v2070 = vadd.f32 %v1926, %v2069
        %v2071 = vpop.f32.mrf.mxu0
        %v2072 = vadd.f32 %v1928, %v2071
        %2073 = vmatmul.bf16.gmra.mxu0 %v1163
        %v2074 = vpop.f32.mrf.mxu0
        %v2075 = vadd.f32 %v1931, %v2074
        %v2076 = vpop.f32.mrf.mxu0
        %v2077 = vadd.f32 %v1933, %v2076
        %2078 = vmatmul.bf16.gmra.mxu0 %v1169
        %v2079 = vpop.f32.mrf.mxu0
        %v2080 = vadd.f32 %v1936, %v2079
        %v2081 = vpop.f32.mrf.mxu0
        %v2082 = vadd.f32 %v1938, %v2081
        %2083 = vmatmul.bf16.gmra.mxu0 %v1175
        %v2084 = vpop.f32.mrf.mxu0
        %v2085 = vadd.f32 %v1941, %v2084
        %v2086 = vpop.f32.mrf.mxu0
        %v2087 = vadd.f32 %v1943, %v2086
        %2088 = vmatmul.bf16.gmra.mxu0 %v1179
        %v2089 = vpop.f32.mrf.mxu0
        %v2090 = vadd.f32 %v1946, %v2089
        %v2091 = vpop.f32.mrf.mxu0
        %v2092 = vadd.f32 %v1948, %v2091
        %2093 = vmatmul.bf16.gmra.mxu0 %v1185
        %v2094 = vpop.f32.mrf.mxu0
        %v2095 = vadd.f32 %v1951, %v2094
        %v2096 = vpop.f32.mrf.mxu0
        %v2097 = vadd.f32 %v1953, %v2096
        %2098 = vmatmul.bf16.gmra.mxu0 %v1191
        %v2099 = vpop.f32.mrf.mxu0
        %v2100 = vadd.f32 %v1956, %v2099
        %v2101 = vpop.f32.mrf.mxu0
        %v2102 = vadd.f32 %v1958, %v2101
        %2103 = vmatmul.bf16.gmra.mxu0 %v1195
        %v2104 = vpop.f32.mrf.mxu0
        %v2105 = vadd.f32 %v1961, %v2104
        %v2106 = vpop.f32.mrf.mxu0
        %v2107 = vadd.f32 %v1963, %v2106
        %2108 = vmatmul.bf16.gmra.mxu0 %v1201
        %v2109 = vpop.f32.mrf.mxu0
        %v2110 = vadd.f32 %v1966, %v2109
        %v2111 = vpop.f32.mrf.mxu0
        %v2112 = vadd.f32 %v1968, %v2111
        %2113 = vmatmul.bf16.gmra.mxu0 %v1207
        %v2114 = vpop.f32.mrf.mxu0
        %v2115 = vadd.f32 %v1971, %v2114
        %v2116 = vpop.f32.mrf.mxu0
        %v2117 = vadd.f32 %v1973, %v2116
        %2118 = vmatmul.bf16.gmra.mxu0 %v1211
        %v2119 = vpop.f32.mrf.mxu0
        %v2120 = vadd.f32 %v1976, %v2119
        %v2121 = vpop.f32.mrf.mxu0
        %v2122 = vadd.f32 %v1978, %v2121
        %2123 = vmatmul.bf16.gmra.mxu0 %v1217
        %v2124 = vpop.f32.mrf.mxu0
        %v2125 = vadd.f32 %v1981, %v2124
        %v2126 = vpop.f32.mrf.mxu0
        %v2127 = vadd.f32 %v1983, %v2126
        %2128 = vmatmul.bf16.gmra.mxu0 %v1223
        %v2129 = vpop.f32.mrf.mxu0
        %v2130 = vadd.f32 %v1986, %v2129
        %v2131 = vpop.f32.mrf.mxu0
        %v2132 = vadd.f32 %v1988, %v2131
        %2133 = vmatmul.bf16.gmra.mxu0 %v1227
        %v2134 = vpop.f32.mrf.mxu0
        %v2135 = vadd.f32 %v1991, %v2134
        %v2136 = vpop.f32.mrf.mxu0
        %v2137 = vadd.f32 %v1993, %v2136
        %2138 = vmatmul.bf16.gmra.mxu0 %v1233
        %v2139 = vpop.f32.mrf.mxu0
        %v2140 = vadd.f32 %v1996, %v2139
        %v2141 = vpop.f32.mrf.mxu0
        %v2142 = vadd.f32 %v1998, %v2141
        %2143 = vmatmul.bf16.gmra.mxu0 %v1239
        %v2144 = vpop.f32.mrf.mxu0
        %v2145 = vadd.f32 %v2001, %v2144
        %v2146 = vpop.f32.mrf.mxu0
        %v2147 = vadd.f32 %v2003, %v2146
        %2148 = vmatmul.bf16.gmra.mxu0 %v1243
        %v2149 = vpop.f32.mrf.mxu0
        %v2150 = vadd.f32 %v2006, %v2149
        %v2151 = vpop.f32.mrf.mxu0
        %v2152 = vadd.f32 %v2008, %v2151
        %2153 = vmatmul.bf16.gmra.mxu0 %v1249
        %v2154 = vpop.f32.mrf.mxu0
        %v2155 = vadd.f32 %v2011, %v2154
        %v2156 = vpop.f32.mrf.mxu0
        %v2157 = vadd.f32 %v2013, %v2156
        %2158 = vmatmul.bf16.gmra.mxu0 %v1255
        %v2159 = vpop.f32.mrf.mxu0
        %v2160 = vadd.f32 %v2016, %v2159
        %v2161 = vpop.f32.mrf.mxu0
        %v2162 = vadd.f32 %v2018, %v2161
        %2163 = vdwg.mxu0
        %2164 = vmatpush.bf16.msra.mxu0 %v1755
        %2165 = vmatpush.bf16.msra.mxu0 %v1754
        %2166 = vmatpush.bf16.msra.mxu0 %v1753
        %2167 = vmatpush.bf16.msra.mxu0 %v1752
        %2168 = vmatpush.bf16.msra.mxu0 %v1751
        %2169 = vmatpush.bf16.msra.mxu0 %v1750
        %2170 = vmatpush.bf16.msra.mxu0 %v1749
        %2171 = vmatpush.bf16.msra.mxu0 %v1748
        %2172 = vmatmul.bf16.gmra.mxu0 %v1122
        %v2173 = vpop.f32.mrf.mxu0
        %v2174 = vadd.f32 %v2030, %v2173
        %v2175 = vpop.f32.mrf.mxu0
        %v2176 = vadd.f32 %v2032, %v2175
        %2177 = vmatmul.bf16.gmra.mxu0 %v1129
        %v2178 = vpop.f32.mrf.mxu0
        %v2179 = vadd.f32 %v2035, %v2178
        %v2180 = vpop.f32.mrf.mxu0
        %v2181 = vadd.f32 %v2037, %v2180
        %2182 = vmatmul.bf16.gmra.mxu0 %v1138
        %v2183 = vpop.f32.mrf.mxu0
        %v2184 = vadd.f32 %v2040, %v2183
        %v2185 = vpop.f32.mrf.mxu0
        %v2186 = vadd.f32 %v2042, %v2185
        %2187 = vmatmul.bf16.gmra.mxu0 %v1126
        %v2188 = vpop.f32.mrf.mxu0
        %v2189 = vadd.f32 %v2045, %v2188
        %v2190 = vpop.f32.mrf.mxu0
        %v2191 = vadd.f32 %v2047, %v2190
        %2192 = vmatmul.bf16.gmra.mxu0 %v1135
        %v2193 = vpop.f32.mrf.mxu0
        %v2194 = vadd.f32 %v2050, %v2193
        %v2195 = vpop.f32.mrf.mxu0
        %v2196 = vadd.f32 %v2052, %v2195
        %2197 = vmatmul.bf16.gmra.mxu0 %v1144
        %v2198 = vpop.f32.mrf.mxu0
        %v2199 = vadd.f32 %v2055, %v2198
        %v2200 = vpop.f32.mrf.mxu0
        %v2201 = vadd.f32 %v2057, %v2200
        %2202 = vmatmul.bf16.gmra.mxu0 %v1148
        %v2203 = vpop.f32.mrf.mxu0
        %v2204 = vadd.f32 %v2060, %v2203
        %v2205 = vpop.f32.mrf.mxu0
        %v2206 = vadd.f32 %v2062, %v2205
        %2207 = vmatmul.bf16.gmra.mxu0 %v1154
        %v2208 = vpop.f32.mrf.mxu0
        %v2209 = vadd.f32 %v2065, %v2208
        %v2210 = vpop.f32.mrf.mxu0
        %v2211 = vadd.f32 %v2067, %v2210
        %2212 = vmatmul.bf16.gmra.mxu0 %v1160
        %v2213 = vpop.f32.mrf.mxu0
        %v2214 = vadd.f32 %v2070, %v2213
        %v2215 = vpop.f32.mrf.mxu0
        %v2216 = vadd.f32 %v2072, %v2215
        %2217 = vmatmul.bf16.gmra.mxu0 %v1164
        %v2218 = vpop.f32.mrf.mxu0
        %v2219 = vadd.f32 %v2075, %v2218
        %v2220 = vpop.f32.mrf.mxu0
        %v2221 = vadd.f32 %v2077, %v2220
        %2222 = vmatmul.bf16.gmra.mxu0 %v1170
        %v2223 = vpop.f32.mrf.mxu0
        %v2224 = vadd.f32 %v2080, %v2223
        %v2225 = vpop.f32.mrf.mxu0
        %v2226 = vadd.f32 %v2082, %v2225
        %2227 = vmatmul.bf16.gmra.mxu0 %v1176
        %v2228 = vpop.f32.mrf.mxu0
        %v2229 = vadd.f32 %v2085, %v2228
        %v2230 = vpop.f32.mrf.mxu0
        %v2231 = vadd.f32 %v2087, %v2230
        %2232 = vmatmul.bf16.gmra.mxu0 %v1180
        %v2233 = vpop.f32.mrf.mxu0
        %v2234 = vadd.f32 %v2090, %v2233
        %v2235 = vpop.f32.mrf.mxu0
        %v2236 = vadd.f32 %v2092, %v2235
        %2237 = vmatmul.bf16.gmra.mxu0 %v1186
        %v2238 = vpop.f32.mrf.mxu0
        %v2239 = vadd.f32 %v2095, %v2238
        %v2240 = vpop.f32.mrf.mxu0
        %v2241 = vadd.f32 %v2097, %v2240
        %2242 = vmatmul.bf16.gmra.mxu0 %v1192
        %v2243 = vpop.f32.mrf.mxu0
        %v2244 = vadd.f32 %v2100, %v2243
        %v2245 = vpop.f32.mrf.mxu0
        %v2246 = vadd.f32 %v2102, %v2245
        %2247 = vmatmul.bf16.gmra.mxu0 %v1196
        %v2248 = vpop.f32.mrf.mxu0
        %v2249 = vadd.f32 %v2105, %v2248
        %v2250 = vpop.f32.mrf.mxu0
        %v2251 = vadd.f32 %v2107, %v2250
        %2252 = vmatmul.bf16.gmra.mxu0 %v1202
        %v2253 = vpop.f32.mrf.mxu0
        %v2254 = vadd.f32 %v2110, %v2253
        %v2255 = vpop.f32.mrf.mxu0
        %v2256 = vadd.f32 %v2112, %v2255
        %2257 = vmatmul.bf16.gmra.mxu0 %v1208
        %v2258 = vpop.f32.mrf.mxu0
        %v2259 = vadd.f32 %v2115, %v2258
        %v2260 = vpop.f32.mrf.mxu0
        %v2261 = vadd.f32 %v2117, %v2260
        %2262 = vmatmul.bf16.gmra.mxu0 %v1212
        %v2263 = vpop.f32.mrf.mxu0
        %v2264 = vadd.f32 %v2120, %v2263
        %v2265 = vpop.f32.mrf.mxu0
        %v2266 = vadd.f32 %v2122, %v2265
        %2267 = vmatmul.bf16.gmra.mxu0 %v1218
        %v2268 = vpop.f32.mrf.mxu0
        %v2269 = vadd.f32 %v2125, %v2268
        %v2270 = vpop.f32.mrf.mxu0
        %v2271 = vadd.f32 %v2127, %v2270
        %2272 = vmatmul.bf16.gmra.mxu0 %v1224
        %v2273 = vpop.f32.mrf.mxu0
        %v2274 = vadd.f32 %v2130, %v2273
        %v2275 = vpop.f32.mrf.mxu0
        %v2276 = vadd.f32 %v2132, %v2275
        %2277 = vmatmul.bf16.gmra.mxu0 %v1228
        %v2278 = vpop.f32.mrf.mxu0
        %v2279 = vadd.f32 %v2135, %v2278
        %v2280 = vpop.f32.mrf.mxu0
        %v2281 = vadd.f32 %v2137, %v2280
        %2282 = vmatmul.bf16.gmra.mxu0 %v1234
        %v2283 = vpop.f32.mrf.mxu0
        %v2284 = vadd.f32 %v2140, %v2283
        %v2285 = vpop.f32.mrf.mxu0
        %v2286 = vadd.f32 %v2142, %v2285
        %2287 = vmatmul.bf16.gmra.mxu0 %v1240
        %v2288 = vpop.f32.mrf.mxu0
        %v2289 = vadd.f32 %v2145, %v2288
        %v2290 = vpop.f32.mrf.mxu0
        %v2291 = vadd.f32 %v2147, %v2290
        %2292 = vmatmul.bf16.gmra.mxu0 %v1244
        %v2293 = vpop.f32.mrf.mxu0
        %v2294 = vadd.f32 %v2150, %v2293
        %v2295 = vpop.f32.mrf.mxu0
        %v2296 = vadd.f32 %v2152, %v2295
        %2297 = vmatmul.bf16.gmra.mxu0 %v1250
        %v2298 = vpop.f32.mrf.mxu0
        %v2299 = vadd.f32 %v2155, %v2298
        %v2300 = vpop.f32.mrf.mxu0
        %v2301 = vadd.f32 %v2157, %v2300
        %2302 = vmatmul.bf16.gmra.mxu0 %v1256
        %v2303 = vpop.f32.mrf.mxu0
        %v2304 = vadd.f32 %v2160, %v2303
        %v2305 = vpop.f32.mrf.mxu0
        %v2306 = vadd.f32 %v2162, %v2305
        %2307 = vdwg.mxu0
        %2308 = vmatpush.bf16.msra.mxu0 %v1763
        %2309 = vmatpush.bf16.msra.mxu0 %v1762
        %2310 = vmatpush.bf16.msra.mxu0 %v1761
        %2311 = vmatpush.bf16.msra.mxu0 %v1760
        %2312 = vmatpush.bf16.msra.mxu0 %v1759
        %2313 = vmatpush.bf16.msra.mxu0 %v1758
        %2314 = vmatpush.bf16.msra.mxu0 %v1757
        %2315 = vmatpush.bf16.msra.mxu0 %v1756
        %2316 = vmatmul.bf16.gmra.mxu0 %v441
        %v2317 = vpop.f32.mrf.mxu0
        %v2318 = vadd.f32 %v2174, %v2317
        %v2319 = vpop.f32.mrf.mxu0
        %v2320 = vadd.f32 %v2176, %v2319
        %2321 = vmatmul.bf16.gmra.mxu0 %v1130
        %v2322 = vpop.f32.mrf.mxu0
        %v2323 = vadd.f32 %v2179, %v2322
        %v2324 = vpop.f32.mrf.mxu0
        %v2325 = vadd.f32 %v2181, %v2324
        %2326 = vmatmul.bf16.gmra.mxu0 %v1139
        %v2327 = vpop.f32.mrf.mxu0
        %v2328 = vadd.f32 %v2184, %v2327
        %v2329 = vpop.f32.mrf.mxu0
        %v2330 = vadd.f32 %v2186, %v2329
        %2331 = vmatmul.bf16.gmra.mxu0 %v445
        %v2332 = vpop.f32.mrf.mxu0
        %v2333 = vadd.f32 %v2189, %v2332
        %v2334 = vpop.f32.mrf.mxu0
        %v2335 = vadd.f32 %v2191, %v2334
        %2336 = vmatmul.bf16.gmra.mxu0 %v1149
        %v2337 = vpop.f32.mrf.mxu0
        %v2338 = vadd.f32 %v2194, %v2337
        %v2339 = vpop.f32.mrf.mxu0
        %v2340 = vadd.f32 %v2196, %v2339
        %2341 = vmatmul.bf16.gmra.mxu0 %v1155
        %v2342 = vpop.f32.mrf.mxu0
        %v2343 = vadd.f32 %v2199, %v2342
        %v2344 = vpop.f32.mrf.mxu0
        %v2345 = vadd.f32 %v2201, %v2344
        %2346 = vmatmul.bf16.gmra.mxu0 %v449
        %v2347 = vpop.f32.mrf.mxu0
        %v2348 = vadd.f32 %v2204, %v2347
        %v2349 = vpop.f32.mrf.mxu0
        %v2350 = vadd.f32 %v2206, %v2349
        %2351 = vmatmul.bf16.gmra.mxu0 %v1165
        %v2352 = vpop.f32.mrf.mxu0
        %v2353 = vadd.f32 %v2209, %v2352
        %v2354 = vpop.f32.mrf.mxu0
        %v2355 = vadd.f32 %v2211, %v2354
        %2356 = vmatmul.bf16.gmra.mxu0 %v1171
        %v2357 = vpop.f32.mrf.mxu0
        %v2358 = vadd.f32 %v2214, %v2357
        %v2359 = vpop.f32.mrf.mxu0
        %v2360 = vadd.f32 %v2216, %v2359
        %2361 = vmatmul.bf16.gmra.mxu0 %v453
        %v2362 = vpop.f32.mrf.mxu0
        %v2363 = vadd.f32 %v2219, %v2362
        %v2364 = vpop.f32.mrf.mxu0
        %v2365 = vadd.f32 %v2221, %v2364
        %2366 = vmatmul.bf16.gmra.mxu0 %v1181
        %v2367 = vpop.f32.mrf.mxu0
        %v2368 = vadd.f32 %v2224, %v2367
        %v2369 = vpop.f32.mrf.mxu0
        %v2370 = vadd.f32 %v2226, %v2369
        %2371 = vmatmul.bf16.gmra.mxu0 %v1187
        %v2372 = vpop.f32.mrf.mxu0
        %v2373 = vadd.f32 %v2229, %v2372
        %v2374 = vpop.f32.mrf.mxu0
        %v2375 = vadd.f32 %v2231, %v2374
        %2376 = vmatmul.bf16.gmra.mxu0 %v457
        %v2377 = vpop.f32.mrf.mxu0
        %v2378 = vadd.f32 %v2234, %v2377
        %v2379 = vpop.f32.mrf.mxu0
        %v2380 = vadd.f32 %v2236, %v2379
        %2381 = vmatmul.bf16.gmra.mxu0 %v1197
        %v2382 = vpop.f32.mrf.mxu0
        %v2383 = vadd.f32 %v2239, %v2382
        %v2384 = vpop.f32.mrf.mxu0
        %v2385 = vadd.f32 %v2241, %v2384
        %2386 = vmatmul.bf16.gmra.mxu0 %v1203
        %v2387 = vpop.f32.mrf.mxu0
        %v2388 = vadd.f32 %v2244, %v2387
        %v2389 = vpop.f32.mrf.mxu0
        %v2390 = vadd.f32 %v2246, %v2389
        %2391 = vmatmul.bf16.gmra.mxu0 %v461
        %v2392 = vpop.f32.mrf.mxu0
        %v2393 = vadd.f32 %v2249, %v2392
        %v2394 = vpop.f32.mrf.mxu0
        %v2395 = vadd.f32 %v2251, %v2394
        %2396 = vmatmul.bf16.gmra.mxu0 %v1213
        %v2397 = vpop.f32.mrf.mxu0
        %v2398 = vadd.f32 %v2254, %v2397
        %v2399 = vpop.f32.mrf.mxu0
        %v2400 = vadd.f32 %v2256, %v2399
        %2401 = vmatmul.bf16.gmra.mxu0 %v1219
        %v2402 = vpop.f32.mrf.mxu0
        %v2403 = vadd.f32 %v2259, %v2402
        %v2404 = vpop.f32.mrf.mxu0
        %v2405 = vadd.f32 %v2261, %v2404
        %2406 = vmatmul.bf16.gmra.mxu0 %v465
        %v2407 = vpop.f32.mrf.mxu0
        %v2408 = vadd.f32 %v2264, %v2407
        %v2409 = vpop.f32.mrf.mxu0
        %v2410 = vadd.f32 %v2266, %v2409
        %2411 = vmatmul.bf16.gmra.mxu0 %v1229
        %v2412 = vpop.f32.mrf.mxu0
        %v2413 = vadd.f32 %v2269, %v2412
        %v2414 = vpop.f32.mrf.mxu0
        %v2415 = vadd.f32 %v2271, %v2414
        %2416 = vmatmul.bf16.gmra.mxu0 %v1235
        %v2417 = vpop.f32.mrf.mxu0
        %v2418 = vadd.f32 %v2274, %v2417
        %v2419 = vpop.f32.mrf.mxu0
        %v2420 = vadd.f32 %v2276, %v2419
        %2421 = vmatmul.bf16.gmra.mxu0 %v469
        %v2422 = vpop.f32.mrf.mxu0
        %v2423 = vadd.f32 %v2279, %v2422
        %v2424 = vpop.f32.mrf.mxu0
        %v2425 = vadd.f32 %v2281, %v2424
        %2426 = vmatmul.bf16.gmra.mxu0 %v1245
        %v2427 = vpop.f32.mrf.mxu0
        %v2428 = vadd.f32 %v2284, %v2427
        %v2429 = vpop.f32.mrf.mxu0
        %v2430 = vadd.f32 %v2286, %v2429
        %2431 = vmatmul.bf16.gmra.mxu0 %v1251
        %v2432 = vpop.f32.mrf.mxu0
        %v2433 = vadd.f32 %v2289, %v2432
        %v2434 = vpop.f32.mrf.mxu0
        %v2435 = vadd.f32 %v2291, %v2434
        %2436 = vmatmul.bf16.gmra.mxu0 %v473
        %v2437 = vpop.f32.mrf.mxu0
        %v2438 = vadd.f32 %v2294, %v2437
        %v2439 = vpop.f32.mrf.mxu0
        %v2440 = vadd.f32 %v2296, %v2439
        %2441 = vmatmul.bf16.gmra.mxu0 %v1261
        %v2442 = vpop.f32.mrf.mxu0
        %v2443 = vadd.f32 %v2299, %v2442
        %v2444 = vpop.f32.mrf.mxu0
        %v2445 = vadd.f32 %v2301, %v2444
        %2446 = vmatmul.bf16.gmra.mxu0 %v1267
        %v2447 = vpop.f32.mrf.mxu0
        %v2448 = vadd.f32 %v2304, %v2447
        %v2449 = vpop.f32.mrf.mxu0
        %v2450 = vadd.f32 %v2306, %v2449
        %2451 = vdwg.mxu0
        %2452 = vmatpush.bf16.msra.mxu0 %v1771
        %2453 = vmatpush.bf16.msra.mxu0 %v1770
        %2454 = vmatpush.bf16.msra.mxu0 %v1769
        %2455 = vmatpush.bf16.msra.mxu0 %v1768
        %2456 = vmatpush.bf16.msra.mxu0 %v1767
        %2457 = vmatpush.bf16.msra.mxu0 %v1766
        %2458 = vmatpush.bf16.msra.mxu0 %v1765
        %2459 = vmatpush.bf16.msra.mxu0 %v1764
        %2460 = vmatmul.bf16.gmra.mxu0 %v1123
        %v2461 = vpop.f32.mrf.mxu0
        %v2462 = vadd.f32 %v2318, %v2461
        %v2463 = vpop.f32.mrf.mxu0
        %v2464 = vadd.f32 %v2320, %v2463
        %2465 = vmatmul.bf16.gmra.mxu0 %v1131
        %v2466 = vpop.f32.mrf.mxu0
        %v2467 = vadd.f32 %v2323, %v2466
        %v2468 = vpop.f32.mrf.mxu0
        %v2469 = vadd.f32 %v2325, %v2468
        %2470 = vmatmul.bf16.gmra.mxu0 %v1140
        %v2471 = vpop.f32.mrf.mxu0
        %v2472 = vadd.f32 %v2328, %v2471
        %v2473 = vpop.f32.mrf.mxu0
        %v2474 = vadd.f32 %v2330, %v2473
        %2475 = vmatmul.bf16.gmra.mxu0 %v1145
        %v2476 = vpop.f32.mrf.mxu0
        %v2477 = vadd.f32 %v2333, %v2476
        %v2478 = vpop.f32.mrf.mxu0
        %v2479 = vadd.f32 %v2335, %v2478
        %2480 = vmatmul.bf16.gmra.mxu0 %v1150
        %v2481 = vpop.f32.mrf.mxu0
        %v2482 = vadd.f32 %v2338, %v2481
        %v2483 = vpop.f32.mrf.mxu0
        %v2484 = vadd.f32 %v2340, %v2483
        %2485 = vmatmul.bf16.gmra.mxu0 %v1156
        %v2486 = vpop.f32.mrf.mxu0
        %v2487 = vadd.f32 %v2343, %v2486
        %v2488 = vpop.f32.mrf.mxu0
        %v2489 = vadd.f32 %v2345, %v2488
        %2490 = vmatmul.bf16.gmra.mxu0 %v1161
        %v2491 = vpop.f32.mrf.mxu0
        %v2492 = vadd.f32 %v2348, %v2491
        %v2493 = vpop.f32.mrf.mxu0
        %v2494 = vadd.f32 %v2350, %v2493
        %2495 = vmatmul.bf16.gmra.mxu0 %v1166
        %v2496 = vpop.f32.mrf.mxu0
        %v2497 = vadd.f32 %v2353, %v2496
        %v2498 = vpop.f32.mrf.mxu0
        %v2499 = vadd.f32 %v2355, %v2498
        %2500 = vmatmul.bf16.gmra.mxu0 %v1172
        %v2501 = vpop.f32.mrf.mxu0
        %v2502 = vadd.f32 %v2358, %v2501
        %v2503 = vpop.f32.mrf.mxu0
        %v2504 = vadd.f32 %v2360, %v2503
        %2505 = vmatmul.bf16.gmra.mxu0 %v1177
        %v2506 = vpop.f32.mrf.mxu0
        %v2507 = vadd.f32 %v2363, %v2506
        %v2508 = vpop.f32.mrf.mxu0
        %v2509 = vadd.f32 %v2365, %v2508
        %2510 = vmatmul.bf16.gmra.mxu0 %v1182
        %v2511 = vpop.f32.mrf.mxu0
        %v2512 = vadd.f32 %v2368, %v2511
        %v2513 = vpop.f32.mrf.mxu0
        %v2514 = vadd.f32 %v2370, %v2513
        %2515 = vmatmul.bf16.gmra.mxu0 %v1188
        %v2516 = vpop.f32.mrf.mxu0
        %v2517 = vadd.f32 %v2373, %v2516
        %v2518 = vpop.f32.mrf.mxu0
        %v2519 = vadd.f32 %v2375, %v2518
        %2520 = vmatmul.bf16.gmra.mxu0 %v1193
        %v2521 = vpop.f32.mrf.mxu0
        %v2522 = vadd.f32 %v2378, %v2521
        %v2523 = vpop.f32.mrf.mxu0
        %v2524 = vadd.f32 %v2380, %v2523
        %2525 = vmatmul.bf16.gmra.mxu0 %v1198
        %v2526 = vpop.f32.mrf.mxu0
        %v2527 = vadd.f32 %v2383, %v2526
        %v2528 = vpop.f32.mrf.mxu0
        %v2529 = vadd.f32 %v2385, %v2528
        %2530 = vmatmul.bf16.gmra.mxu0 %v1204
        %v2531 = vpop.f32.mrf.mxu0
        %v2532 = vadd.f32 %v2388, %v2531
        %v2533 = vpop.f32.mrf.mxu0
        %v2534 = vadd.f32 %v2390, %v2533
        %2535 = vmatmul.bf16.gmra.mxu0 %v1209
        %v2536 = vpop.f32.mrf.mxu0
        %v2537 = vadd.f32 %v2393, %v2536
        %v2538 = vpop.f32.mrf.mxu0
        %v2539 = vadd.f32 %v2395, %v2538
        %2540 = vmatmul.bf16.gmra.mxu0 %v1214
        %v2541 = vpop.f32.mrf.mxu0
        %v2542 = vadd.f32 %v2398, %v2541
        %v2543 = vpop.f32.mrf.mxu0
        %v2544 = vadd.f32 %v2400, %v2543
        %2545 = vmatmul.bf16.gmra.mxu0 %v1220
        %v2546 = vpop.f32.mrf.mxu0
        %v2547 = vadd.f32 %v2403, %v2546
        %v2548 = vpop.f32.mrf.mxu0
        %v2549 = vadd.f32 %v2405, %v2548
        %2550 = vmatmul.bf16.gmra.mxu0 %v1225
        %v2551 = vpop.f32.mrf.mxu0
        %v2552 = vadd.f32 %v2408, %v2551
        %v2553 = vpop.f32.mrf.mxu0
        %v2554 = vadd.f32 %v2410, %v2553
        %2555 = vmatmul.bf16.gmra.mxu0 %v1230
        %v2556 = vpop.f32.mrf.mxu0
        %v2557 = vadd.f32 %v2413, %v2556
        %v2558 = vpop.f32.mrf.mxu0
        %v2559 = vadd.f32 %v2415, %v2558
        %2560 = vmatmul.bf16.gmra.mxu0 %v1236
        %v2561 = vpop.f32.mrf.mxu0
        %v2562 = vadd.f32 %v2418, %v2561
        %v2563 = vpop.f32.mrf.mxu0
        %v2564 = vadd.f32 %v2420, %v2563
        %2565 = vmatmul.bf16.gmra.mxu0 %v1241
        %v2566 = vpop.f32.mrf.mxu0
        %v2567 = vadd.f32 %v2423, %v2566
        %v2568 = vpop.f32.mrf.mxu0
        %v2569 = vadd.f32 %v2425, %v2568
        %2570 = vmatmul.bf16.gmra.mxu0 %v1246
        %v2571 = vpop.f32.mrf.mxu0
        %v2572 = vadd.f32 %v2428, %v2571
        %v2573 = vpop.f32.mrf.mxu0
        %v2574 = vadd.f32 %v2430, %v2573
        %2575 = vmatmul.bf16.gmra.mxu0 %v1252
        %v2576 = vpop.f32.mrf.mxu0
        %v2577 = vadd.f32 %v2433, %v2576
        %v2578 = vpop.f32.mrf.mxu0
        %v2579 = vadd.f32 %v2435, %v2578
        %2580 = vmatmul.bf16.gmra.mxu0 %v1257
        %v2581 = vpop.f32.mrf.mxu0
        %v2582 = vadd.f32 %v2438, %v2581
        %v2583 = vpop.f32.mrf.mxu0
        %v2584 = vadd.f32 %v2440, %v2583
        %2585 = vmatmul.bf16.gmra.mxu0 %v1262
        %v2586 = vpop.f32.mrf.mxu0
        %v2587 = vadd.f32 %v2443, %v2586
        %v2588 = vpop.f32.mrf.mxu0
        %v2589 = vadd.f32 %v2445, %v2588
        %2590 = vmatmul.bf16.gmra.mxu0 %v1268
        %v2591 = vpop.f32.mrf.mxu0
        %v2592 = vadd.f32 %v2448, %v2591
        %v2593 = vpop.f32.mrf.mxu0
        %v2594 = vadd.f32 %v2450, %v2593
        %2595 = vdwg.mxu0
        %2596 = vmatpush.bf16.msra.mxu0 %v1779
        %2597 = vmatpush.bf16.msra.mxu0 %v1778
        %2598 = vmatpush.bf16.msra.mxu0 %v1777
        %2599 = vmatpush.bf16.msra.mxu0 %v1776
        %2600 = vmatpush.bf16.msra.mxu0 %v1775
        %2601 = vmatpush.bf16.msra.mxu0 %v1774
        %2602 = vmatpush.bf16.msra.mxu0 %v1773
        %2603 = vmatpush.bf16.msra.mxu0 %v1772
        %2604 = vmatmul.bf16.gmra.mxu0 %v1124
        %v2605 = vpop.f32.mrf.mxu0
        %v2606 = vadd.f32 %v2462, %v2605
        %v2607 = vpop.f32.mrf.mxu0
        %v2608 = vadd.f32 %v2464, %v2607
        %2609 = vmatmul.bf16.gmra.mxu0 %v1132
        %v2610 = vpop.f32.mrf.mxu0
        %v2611 = vadd.f32 %v2467, %v2610
        %v2612 = vpop.f32.mrf.mxu0
        %v2613 = vadd.f32 %v2469, %v2612
        %2614 = vmatmul.bf16.gmra.mxu0 %v1141
        %v2615 = vpop.f32.mrf.mxu0
        %v2616 = vadd.f32 %v2472, %v2615
        %v2617 = vpop.f32.mrf.mxu0
        %v2618 = vadd.f32 %v2474, %v2617
        %2619 = vmatmul.bf16.gmra.mxu0 %v1146
        %v2620 = vpop.f32.mrf.mxu0
        %v2621 = vadd.f32 %v2477, %v2620
        %v2622 = vpop.f32.mrf.mxu0
        %v2623 = vadd.f32 %v2479, %v2622
        %2624 = vmatmul.bf16.gmra.mxu0 %v1151
        %v2625 = vpop.f32.mrf.mxu0
        %v2626 = vadd.f32 %v2482, %v2625
        %v2627 = vpop.f32.mrf.mxu0
        %v2628 = vadd.f32 %v2484, %v2627
        %2629 = vmatmul.bf16.gmra.mxu0 %v1157
        %v2630 = vpop.f32.mrf.mxu0
        %v2631 = vadd.f32 %v2487, %v2630
        %v2632 = vpop.f32.mrf.mxu0
        %v2633 = vadd.f32 %v2489, %v2632
        %2634 = vmatmul.bf16.gmra.mxu0 %v1162
        %v2635 = vpop.f32.mrf.mxu0
        %v2636 = vadd.f32 %v2492, %v2635
        %v2637 = vpop.f32.mrf.mxu0
        %v2638 = vadd.f32 %v2494, %v2637
        %2639 = vmatmul.bf16.gmra.mxu0 %v1167
        %v2640 = vpop.f32.mrf.mxu0
        %v2641 = vadd.f32 %v2497, %v2640
        %v2642 = vpop.f32.mrf.mxu0
        %v2643 = vadd.f32 %v2499, %v2642
        %2644 = vmatmul.bf16.gmra.mxu0 %v1173
        %v2645 = vpop.f32.mrf.mxu0
        %v2646 = vadd.f32 %v2502, %v2645
        %v2647 = vpop.f32.mrf.mxu0
        %v2648 = vadd.f32 %v2504, %v2647
        %2649 = vmatmul.bf16.gmra.mxu0 %v1178
        %v2650 = vpop.f32.mrf.mxu0
        %v2651 = vadd.f32 %v2507, %v2650
        %v2652 = vpop.f32.mrf.mxu0
        %v2653 = vadd.f32 %v2509, %v2652
        %2654 = vmatmul.bf16.gmra.mxu0 %v1183
        %v2655 = vpop.f32.mrf.mxu0
        %v2656 = vadd.f32 %v2512, %v2655
        %v2657 = vpop.f32.mrf.mxu0
        %v2658 = vadd.f32 %v2514, %v2657
        %2659 = vmatmul.bf16.gmra.mxu0 %v1189
        %v2660 = vpop.f32.mrf.mxu0
        %v2661 = vadd.f32 %v2517, %v2660
        %v2662 = vpop.f32.mrf.mxu0
        %v2663 = vadd.f32 %v2519, %v2662
        %2664 = vmatmul.bf16.gmra.mxu0 %v1194
        %v2665 = vpop.f32.mrf.mxu0
        %v2666 = vadd.f32 %v2522, %v2665
        %v2667 = vpop.f32.mrf.mxu0
        %v2668 = vadd.f32 %v2524, %v2667
        %2669 = vmatmul.bf16.gmra.mxu0 %v1199
        %v2670 = vpop.f32.mrf.mxu0
        %v2671 = vadd.f32 %v2527, %v2670
        %v2672 = vpop.f32.mrf.mxu0
        %v2673 = vadd.f32 %v2529, %v2672
        %2674 = vmatmul.bf16.gmra.mxu0 %v1205
        %v2675 = vpop.f32.mrf.mxu0
        %v2676 = vadd.f32 %v2532, %v2675
        %v2677 = vpop.f32.mrf.mxu0
        %v2678 = vadd.f32 %v2534, %v2677
        %2679 = vmatmul.bf16.gmra.mxu0 %v1210
        %v2680 = vpop.f32.mrf.mxu0
        %v2681 = vadd.f32 %v2537, %v2680
        %v2682 = vpop.f32.mrf.mxu0
        %v2683 = vadd.f32 %v2539, %v2682
        %2684 = vmatmul.bf16.gmra.mxu0 %v1215
        %v2685 = vpop.f32.mrf.mxu0
        %v2686 = vadd.f32 %v2542, %v2685
        %v2687 = vpop.f32.mrf.mxu0
        %v2688 = vadd.f32 %v2544, %v2687
        %2689 = vmatmul.bf16.gmra.mxu0 %v1221
        %v2690 = vpop.f32.mrf.mxu0
        %v2691 = vadd.f32 %v2547, %v2690
        %v2692 = vpop.f32.mrf.mxu0
        %v2693 = vadd.f32 %v2549, %v2692
        %2694 = vmatmul.bf16.gmra.mxu0 %v1226
        %v2695 = vpop.f32.mrf.mxu0
        %v2696 = vadd.f32 %v2552, %v2695
        %v2697 = vpop.f32.mrf.mxu0
        %v2698 = vadd.f32 %v2554, %v2697
        %2699 = vmatmul.bf16.gmra.mxu0 %v1231
        %v2700 = vpop.f32.mrf.mxu0
        %v2701 = vadd.f32 %v2557, %v2700
        %v2702 = vpop.f32.mrf.mxu0
        %v2703 = vadd.f32 %v2559, %v2702
        %2704 = vmatmul.bf16.gmra.mxu0 %v1237
        %v2705 = vpop.f32.mrf.mxu0
        %v2706 = vadd.f32 %v2562, %v2705
        %v2707 = vpop.f32.mrf.mxu0
        %v2708 = vadd.f32 %v2564, %v2707
        %2709 = vmatmul.bf16.gmra.mxu0 %v1242
        %v2710 = vpop.f32.mrf.mxu0
        %v2711 = vadd.f32 %v2567, %v2710
        %v2712 = vpop.f32.mrf.mxu0
        %v2713 = vadd.f32 %v2569, %v2712
        %2714 = vmatmul.bf16.gmra.mxu0 %v1247
        %v2715 = vpop.f32.mrf.mxu0
        %v2716 = vadd.f32 %v2572, %v2715
        %v2717 = vpop.f32.mrf.mxu0
        %v2718 = vadd.f32 %v2574, %v2717
        %2719 = vmatmul.bf16.gmra.mxu0 %v1253
        %v2720 = vpop.f32.mrf.mxu0
        %v2721 = vadd.f32 %v2577, %v2720
        %v2722 = vpop.f32.mrf.mxu0
        %v2723 = vadd.f32 %v2579, %v2722
        %2724 = vmatmul.bf16.gmra.mxu0 %v1258
        %v2725 = vpop.f32.mrf.mxu0
        %v2726 = vadd.f32 %v2582, %v2725
        %v2727 = vpop.f32.mrf.mxu0
        %v2728 = vadd.f32 %v2584, %v2727
        %2729 = vmatmul.bf16.gmra.mxu0 %v1263
        %v2730 = vpop.f32.mrf.mxu0
        %v2731 = vadd.f32 %v2587, %v2730
        %v2732 = vpop.f32.mrf.mxu0
        %v2733 = vadd.f32 %v2589, %v2732
        %2734 = vmatmul.bf16.gmra.mxu0 %v1269
        %v2735 = vpop.f32.mrf.mxu0
        %v2736 = vadd.f32 %v2592, %v2735
        %v2737 = vpop.f32.mrf.mxu0
        %v2738 = vadd.f32 %v2594, %v2737
        %2739 = vdwg.mxu0
        %2740 = vmatpush.bf16.msra.mxu0 %v1787
        %2741 = vmatpush.bf16.msra.mxu0 %v1786
        %2742 = vmatpush.bf16.msra.mxu0 %v1785
        %2743 = vmatpush.bf16.msra.mxu0 %v1784
        %2744 = vmatpush.bf16.msra.mxu0 %v1783
        %2745 = vmatpush.bf16.msra.mxu0 %v1782
        %2746 = vmatpush.bf16.msra.mxu0 %v1781
        %2747 = vmatpush.bf16.msra.mxu0 %v1780
        %2748 = vmatmul.bf16.gmra.mxu0 %v443
        %v2749 = vpop.f32.mrf.mxu0
        %v2750 = vadd.f32 %v2606, %v2749
        %v2751 = vpop.f32.mrf.mxu0
        %v2752 = vadd.f32 %v2608, %v2751
        %2753 = vmatmul.bf16.gmra.mxu0 %v1133
        %v2754 = vpop.f32.mrf.mxu0
        %v2755 = vadd.f32 %v2611, %v2754
        %v2756 = vpop.f32.mrf.mxu0
        %v2757 = vadd.f32 %v2613, %v2756
        %2758 = vmatmul.bf16.gmra.mxu0 %v1142
        %v2759 = vpop.f32.mrf.mxu0
        %v2760 = vadd.f32 %v2616, %v2759
        %v2761 = vpop.f32.mrf.mxu0
        %v2762 = vadd.f32 %v2618, %v2761
        %2763 = vmatmul.bf16.gmra.mxu0 %v447
        %v2764 = vpop.f32.mrf.mxu0
        %v2765 = vadd.f32 %v2621, %v2764
        %v2766 = vpop.f32.mrf.mxu0
        %v2767 = vadd.f32 %v2623, %v2766
        %2768 = vmatmul.bf16.gmra.mxu0 %v1152
        %v2769 = vpop.f32.mrf.mxu0
        %v2770 = vadd.f32 %v2626, %v2769
        %v2771 = vpop.f32.mrf.mxu0
        %v2772 = vadd.f32 %v2628, %v2771
        %2773 = vmatmul.bf16.gmra.mxu0 %v1158
        %v2774 = vpop.f32.mrf.mxu0
        %v2775 = vadd.f32 %v2631, %v2774
        %v2776 = vpop.f32.mrf.mxu0
        %v2777 = vadd.f32 %v2633, %v2776
        %2778 = vmatmul.bf16.gmra.mxu0 %v451
        %v2779 = vpop.f32.mrf.mxu0
        %v2780 = vadd.f32 %v2636, %v2779
        %v2781 = vpop.f32.mrf.mxu0
        %v2782 = vadd.f32 %v2638, %v2781
        %2783 = vmatmul.bf16.gmra.mxu0 %v1168
        %v2784 = vpop.f32.mrf.mxu0
        %v2785 = vadd.f32 %v2641, %v2784
        %v2786 = vpop.f32.mrf.mxu0
        %v2787 = vadd.f32 %v2643, %v2786
        %2788 = vmatmul.bf16.gmra.mxu0 %v1174
        %v2789 = vpop.f32.mrf.mxu0
        %v2790 = vadd.f32 %v2646, %v2789
        %v2791 = vpop.f32.mrf.mxu0
        %v2792 = vadd.f32 %v2648, %v2791
        %2793 = vmatmul.bf16.gmra.mxu0 %v455
        %v2794 = vpop.f32.mrf.mxu0
        %v2795 = vadd.f32 %v2651, %v2794
        %v2796 = vpop.f32.mrf.mxu0
        %v2797 = vadd.f32 %v2653, %v2796
        %2798 = vmatmul.bf16.gmra.mxu0 %v1184
        %v2799 = vpop.f32.mrf.mxu0
        %v2800 = vadd.f32 %v2656, %v2799
        %v2801 = vpop.f32.mrf.mxu0
        %v2802 = vadd.f32 %v2658, %v2801
        %2803 = vmatmul.bf16.gmra.mxu0 %v1190
        %v2804 = vpop.f32.mrf.mxu0
        %v2805 = vadd.f32 %v2661, %v2804
        %v2806 = vpop.f32.mrf.mxu0
        %v2807 = vadd.f32 %v2663, %v2806
        %2808 = vmatmul.bf16.gmra.mxu0 %v459
        %v2809 = vpop.f32.mrf.mxu0
        %v2810 = vadd.f32 %v2666, %v2809
        %v2811 = vpop.f32.mrf.mxu0
        %v2812 = vadd.f32 %v2668, %v2811
        %2813 = vmatmul.bf16.gmra.mxu0 %v1200
        %v2814 = vpop.f32.mrf.mxu0
        %v2815 = vadd.f32 %v2671, %v2814
        %v2816 = vpop.f32.mrf.mxu0
        %v2817 = vadd.f32 %v2673, %v2816
        %2818 = vmatmul.bf16.gmra.mxu0 %v1206
        %v2819 = vpop.f32.mrf.mxu0
        %v2820 = vadd.f32 %v2676, %v2819
        %v2821 = vpop.f32.mrf.mxu0
        %v2822 = vadd.f32 %v2678, %v2821
        %2823 = vmatmul.bf16.gmra.mxu0 %v463
        %v2824 = vpop.f32.mrf.mxu0
        %v2825 = vadd.f32 %v2681, %v2824
        %v2826 = vpop.f32.mrf.mxu0
        %v2827 = vadd.f32 %v2683, %v2826
        %2828 = vmatmul.bf16.gmra.mxu0 %v1216
        %v2829 = vpop.f32.mrf.mxu0
        %v2830 = vadd.f32 %v2686, %v2829
        %v2831 = vpop.f32.mrf.mxu0
        %v2832 = vadd.f32 %v2688, %v2831
        %2833 = vmatmul.bf16.gmra.mxu0 %v1222
        %v2834 = vpop.f32.mrf.mxu0
        %v2835 = vadd.f32 %v2691, %v2834
        %v2836 = vpop.f32.mrf.mxu0
        %v2837 = vadd.f32 %v2693, %v2836
        %2838 = vmatmul.bf16.gmra.mxu0 %v467
        %v2839 = vpop.f32.mrf.mxu0
        %v2840 = vadd.f32 %v2696, %v2839
        %v2841 = vpop.f32.mrf.mxu0
        %v2842 = vadd.f32 %v2698, %v2841
        %2843 = vmatmul.bf16.gmra.mxu0 %v1232
        %v2844 = vpop.f32.mrf.mxu0
        %v2845 = vadd.f32 %v2701, %v2844
        %v2846 = vpop.f32.mrf.mxu0
        %v2847 = vadd.f32 %v2703, %v2846
        %2848 = vmatmul.bf16.gmra.mxu0 %v1238
        %v2849 = vpop.f32.mrf.mxu0
        %v2850 = vadd.f32 %v2706, %v2849
        %v2851 = vpop.f32.mrf.mxu0
        %v2852 = vadd.f32 %v2708, %v2851
        %2853 = vmatmul.bf16.gmra.mxu0 %v471
        %v2854 = vpop.f32.mrf.mxu0
        %v2855 = vadd.f32 %v2711, %v2854
        %v2856 = vpop.f32.mrf.mxu0
        %v2857 = vadd.f32 %v2713, %v2856
        %2858 = vmatmul.bf16.gmra.mxu0 %v1248
        %v2859 = vpop.f32.mrf.mxu0
        %v2860 = vadd.f32 %v2716, %v2859
        %v2861 = vpop.f32.mrf.mxu0
        %v2862 = vadd.f32 %v2718, %v2861
        %2863 = vmatmul.bf16.gmra.mxu0 %v1254
        %v2864 = vpop.f32.mrf.mxu0
        %v2865 = vadd.f32 %v2721, %v2864
        %v2866 = vpop.f32.mrf.mxu0
        %v2867 = vadd.f32 %v2723, %v2866
        %2868 = vmatmul.bf16.gmra.mxu0 %v809
        %v2869 = vpop.f32.mrf.mxu0
        %v2870 = vadd.f32 %v2726, %v2869
        %v2871 = vpop.f32.mrf.mxu0
        %v2872 = vadd.f32 %v2728, %v2871
        %2873 = vmatmul.bf16.gmra.mxu0 %v1264
        %v2874 = vpop.f32.mrf.mxu0
        %v2875 = vadd.f32 %v2731, %v2874
        %v2876 = vpop.f32.mrf.mxu0
        %v2877 = vadd.f32 %v2733, %v2876
        %2878 = vmatmul.bf16.gmra.mxu0 %v1270
        %v2879 = vpop.f32.mrf.mxu0
        %v2880 = vadd.f32 %v2736, %v2879
        %v2881 = vpop.f32.mrf.mxu0
        %v2882 = vadd.f32 %v2738, %v2881
        %2883 = vdwg.mxu0
        %2884 = vmatpush.bf16.msra.mxu0 %v1795
        %2885 = vmatpush.bf16.msra.mxu0 %v1794
        %2886 = vmatpush.bf16.msra.mxu0 %v1793
        %2887 = vmatpush.bf16.msra.mxu0 %v1792
        %2888 = vmatpush.bf16.msra.mxu0 %v1791
        %2889 = vmatpush.bf16.msra.mxu0 %v1790
        %2890 = vmatpush.bf16.msra.mxu0 %v1789
        %2891 = vmatpush.bf16.msra.mxu0 %v1788
        %2892 = vmatmul.bf16.gmra.mxu0 %v1125
        %v2893 = vpop.f32.mrf.mxu0
        %v2894 = vadd.f32 %v2750, %v2893
        %v2895 = vpop.f32.mrf.mxu0
        %v2896 = vadd.f32 %v2752, %v2895
        %2897 = vmatmul.bf16.gmra.mxu0 %v1134
        %v2898 = vpop.f32.mrf.mxu0
        %v2899 = vadd.f32 %v2755, %v2898
        %v2900 = vpop.f32.mrf.mxu0
        %v2901 = vadd.f32 %v2757, %v2900
        %2902 = vmatmul.bf16.gmra.mxu0 %v1143
        %v2903 = vpop.f32.mrf.mxu0
        %v2904 = vadd.f32 %v2760, %v2903
        %v2905 = vpop.f32.mrf.mxu0
        %v2906 = vadd.f32 %v2762, %v2905
        %2907 = vmatmul.bf16.gmra.mxu0 %v1147
        %v2908 = vpop.f32.mrf.mxu0
        %v2909 = vadd.f32 %v2765, %v2908
        %v2910 = vpop.f32.mrf.mxu0
        %v2911 = vadd.f32 %v2767, %v2910
        %2912 = vmatmul.bf16.gmra.mxu0 %v1153
        %v2913 = vpop.f32.mrf.mxu0
        %v2914 = vadd.f32 %v2770, %v2913
        %v2915 = vpop.f32.mrf.mxu0
        %v2916 = vadd.f32 %v2772, %v2915
        %2917 = vmatmul.bf16.gmra.mxu0 %v1159
        %v2918 = vpop.f32.mrf.mxu0
        %v2919 = vadd.f32 %v2775, %v2918
        %v2920 = vpop.f32.mrf.mxu0
        %v2921 = vadd.f32 %v2777, %v2920
        %2922 = vmatmul.bf16.gmra.mxu0 %v1163
        %v2923 = vpop.f32.mrf.mxu0
        %v2924 = vadd.f32 %v2780, %v2923
        %v2925 = vpop.f32.mrf.mxu0
        %v2926 = vadd.f32 %v2782, %v2925
        %2927 = vmatmul.bf16.gmra.mxu0 %v1169
        %v2928 = vpop.f32.mrf.mxu0
        %v2929 = vadd.f32 %v2785, %v2928
        %v2930 = vpop.f32.mrf.mxu0
        %v2931 = vadd.f32 %v2787, %v2930
        %2932 = vmatmul.bf16.gmra.mxu0 %v1175
        %v2933 = vpop.f32.mrf.mxu0
        %v2934 = vadd.f32 %v2790, %v2933
        %v2935 = vpop.f32.mrf.mxu0
        %v2936 = vadd.f32 %v2792, %v2935
        %2937 = vmatmul.bf16.gmra.mxu0 %v1179
        %v2938 = vpop.f32.mrf.mxu0
        %v2939 = vadd.f32 %v2795, %v2938
        %v2940 = vpop.f32.mrf.mxu0
        %v2941 = vadd.f32 %v2797, %v2940
        %2942 = vmatmul.bf16.gmra.mxu0 %v1185
        %v2943 = vpop.f32.mrf.mxu0
        %v2944 = vadd.f32 %v2800, %v2943
        %v2945 = vpop.f32.mrf.mxu0
        %v2946 = vadd.f32 %v2802, %v2945
        %2947 = vmatmul.bf16.gmra.mxu0 %v1191
        %v2948 = vpop.f32.mrf.mxu0
        %v2949 = vadd.f32 %v2805, %v2948
        %v2950 = vpop.f32.mrf.mxu0
        %v2951 = vadd.f32 %v2807, %v2950
        %2952 = vmatmul.bf16.gmra.mxu0 %v1195
        %v2953 = vpop.f32.mrf.mxu0
        %v2954 = vadd.f32 %v2810, %v2953
        %v2955 = vpop.f32.mrf.mxu0
        %v2956 = vadd.f32 %v2812, %v2955
        %2957 = vmatmul.bf16.gmra.mxu0 %v1201
        %v2958 = vpop.f32.mrf.mxu0
        %v2959 = vadd.f32 %v2815, %v2958
        %v2960 = vpop.f32.mrf.mxu0
        %v2961 = vadd.f32 %v2817, %v2960
        %2962 = vmatmul.bf16.gmra.mxu0 %v1207
        %v2963 = vpop.f32.mrf.mxu0
        %v2964 = vadd.f32 %v2820, %v2963
        %v2965 = vpop.f32.mrf.mxu0
        %v2966 = vadd.f32 %v2822, %v2965
        %2967 = vmatmul.bf16.gmra.mxu0 %v1211
        %v2968 = vpop.f32.mrf.mxu0
        %v2969 = vadd.f32 %v2825, %v2968
        %v2970 = vpop.f32.mrf.mxu0
        %v2971 = vadd.f32 %v2827, %v2970
        %2972 = vmatmul.bf16.gmra.mxu0 %v1217
        %v2973 = vpop.f32.mrf.mxu0
        %v2974 = vadd.f32 %v2830, %v2973
        %v2975 = vpop.f32.mrf.mxu0
        %v2976 = vadd.f32 %v2832, %v2975
        %2977 = vmatmul.bf16.gmra.mxu0 %v1223
        %v2978 = vpop.f32.mrf.mxu0
        %v2979 = vadd.f32 %v2835, %v2978
        %v2980 = vpop.f32.mrf.mxu0
        %v2981 = vadd.f32 %v2837, %v2980
        %2982 = vmatmul.bf16.gmra.mxu0 %v1227
        %v2983 = vpop.f32.mrf.mxu0
        %v2984 = vadd.f32 %v2840, %v2983
        %v2985 = vpop.f32.mrf.mxu0
        %v2986 = vadd.f32 %v2842, %v2985
        %2987 = vmatmul.bf16.gmra.mxu0 %v1233
        %v2988 = vpop.f32.mrf.mxu0
        %v2989 = vadd.f32 %v2845, %v2988
        %v2990 = vpop.f32.mrf.mxu0
        %v2991 = vadd.f32 %v2847, %v2990
        %2992 = vmatmul.bf16.gmra.mxu0 %v1239
        %v2993 = vpop.f32.mrf.mxu0
        %v2994 = vadd.f32 %v2850, %v2993
        %v2995 = vpop.f32.mrf.mxu0
        %v2996 = vadd.f32 %v2852, %v2995
        %2997 = vmatmul.bf16.gmra.mxu0 %v1243
        %v2998 = vpop.f32.mrf.mxu0
        %v2999 = vadd.f32 %v2855, %v2998
        %v3000 = vpop.f32.mrf.mxu0
        %v3001 = vadd.f32 %v2857, %v3000
        %3002 = vmatmul.bf16.gmra.mxu0 %v1249
        %v3003 = vpop.f32.mrf.mxu0
        %v3004 = vadd.f32 %v2860, %v3003
        %v3005 = vpop.f32.mrf.mxu0
        %v3006 = vadd.f32 %v2862, %v3005
        %3007 = vmatmul.bf16.gmra.mxu0 %v1255
        %v3008 = vpop.f32.mrf.mxu0
        %v3009 = vadd.f32 %v2865, %v3008
        %v3010 = vpop.f32.mrf.mxu0
        %v3011 = vadd.f32 %v2867, %v3010
        %3012 = vmatmul.bf16.gmra.mxu0 %v1259
        %v3013 = vpop.f32.mrf.mxu0
        %v3014 = vadd.f32 %v2870, %v3013
        %v3015 = vpop.f32.mrf.mxu0
        %v3016 = vadd.f32 %v2872, %v3015
        %3017 = vmatmul.bf16.gmra.mxu0 %v1265
        %v3018 = vpop.f32.mrf.mxu0
        %v3019 = vadd.f32 %v2875, %v3018
        %v3020 = vpop.f32.mrf.mxu0
        %v3021 = vadd.f32 %v2877, %v3020
        %3022 = vmatmul.bf16.gmra.mxu0 %v1271
        %v3023 = vpop.f32.mrf.mxu0
        %v3024 = vadd.f32 %v2880, %v3023
        %v3025 = vpop.f32.mrf.mxu0
        %v3026 = vadd.f32 %v2882, %v3025
        %3027 = vdwg.mxu0
        %3028 = vmatpush.bf16.msra.mxu0 %v1803
        %3029 = vmatpush.bf16.msra.mxu0 %v1802
        %3030 = vmatpush.bf16.msra.mxu0 %v1801
        %3031 = vmatpush.bf16.msra.mxu0 %v1800
        %3032 = vmatpush.bf16.msra.mxu0 %v1799
        %3033 = vmatpush.bf16.msra.mxu0 %v1798
        %3034 = vmatpush.bf16.msra.mxu0 %v1797
        %3035 = vmatpush.bf16.msra.mxu0 %v1796
        %3036 = vmatmul.bf16.gmra.mxu0 %v1126
        %v3037 = vpop.f32.mrf.mxu0
        %v3038 = vadd.f32 %v2894, %v3037
        %v3039 = vpop.f32.mrf.mxu0
        %v3040 = vadd.f32 %v2896, %v3039
        %3041 = vmatmul.bf16.gmra.mxu0 %v1135
        %v3042 = vpop.f32.mrf.mxu0
        %v3043 = vadd.f32 %v2899, %v3042
        %v3044 = vpop.f32.mrf.mxu0
        %v3045 = vadd.f32 %v2901, %v3044
        %3046 = vmatmul.bf16.gmra.mxu0 %v1144
        %v3047 = vpop.f32.mrf.mxu0
        %v3048 = vadd.f32 %v2904, %v3047
        %v3049 = vpop.f32.mrf.mxu0
        %v3050 = vadd.f32 %v2906, %v3049
        %3051 = vmatmul.bf16.gmra.mxu0 %v1148
        %v3052 = vpop.f32.mrf.mxu0
        %v3053 = vadd.f32 %v2909, %v3052
        %v3054 = vpop.f32.mrf.mxu0
        %v3055 = vadd.f32 %v2911, %v3054
        %3056 = vmatmul.bf16.gmra.mxu0 %v1154
        %v3057 = vpop.f32.mrf.mxu0
        %v3058 = vadd.f32 %v2914, %v3057
        %v3059 = vpop.f32.mrf.mxu0
        %v3060 = vadd.f32 %v2916, %v3059
        %3061 = vmatmul.bf16.gmra.mxu0 %v1160
        %v3062 = vpop.f32.mrf.mxu0
        %v3063 = vadd.f32 %v2919, %v3062
        %v3064 = vpop.f32.mrf.mxu0
        %v3065 = vadd.f32 %v2921, %v3064
        %3066 = vmatmul.bf16.gmra.mxu0 %v1164
        %v3067 = vpop.f32.mrf.mxu0
        %v3068 = vadd.f32 %v2924, %v3067
        %v3069 = vpop.f32.mrf.mxu0
        %v3070 = vadd.f32 %v2926, %v3069
        %3071 = vmatmul.bf16.gmra.mxu0 %v1170
        %v3072 = vpop.f32.mrf.mxu0
        %v3073 = vadd.f32 %v2929, %v3072
        %v3074 = vpop.f32.mrf.mxu0
        %v3075 = vadd.f32 %v2931, %v3074
        %3076 = vmatmul.bf16.gmra.mxu0 %v1176
        %v3077 = vpop.f32.mrf.mxu0
        %v3078 = vadd.f32 %v2934, %v3077
        %v3079 = vpop.f32.mrf.mxu0
        %v3080 = vadd.f32 %v2936, %v3079
        %3081 = vmatmul.bf16.gmra.mxu0 %v1180
        %v3082 = vpop.f32.mrf.mxu0
        %v3083 = vadd.f32 %v2939, %v3082
        %v3084 = vpop.f32.mrf.mxu0
        %v3085 = vadd.f32 %v2941, %v3084
        %3086 = vmatmul.bf16.gmra.mxu0 %v1186
        %v3087 = vpop.f32.mrf.mxu0
        %v3088 = vadd.f32 %v2944, %v3087
        %v3089 = vpop.f32.mrf.mxu0
        %v3090 = vadd.f32 %v2946, %v3089
        %3091 = vmatmul.bf16.gmra.mxu0 %v1192
        %v3092 = vpop.f32.mrf.mxu0
        %v3093 = vadd.f32 %v2949, %v3092
        %v3094 = vpop.f32.mrf.mxu0
        %v3095 = vadd.f32 %v2951, %v3094
        %3096 = vmatmul.bf16.gmra.mxu0 %v1196
        %v3097 = vpop.f32.mrf.mxu0
        %v3098 = vadd.f32 %v2954, %v3097
        %v3099 = vpop.f32.mrf.mxu0
        %v3100 = vadd.f32 %v2956, %v3099
        %3101 = vmatmul.bf16.gmra.mxu0 %v1202
        %v3102 = vpop.f32.mrf.mxu0
        %v3103 = vadd.f32 %v2959, %v3102
        %v3104 = vpop.f32.mrf.mxu0
        %v3105 = vadd.f32 %v2961, %v3104
        %3106 = vmatmul.bf16.gmra.mxu0 %v1208
        %v3107 = vpop.f32.mrf.mxu0
        %v3108 = vadd.f32 %v2964, %v3107
        %v3109 = vpop.f32.mrf.mxu0
        %v3110 = vadd.f32 %v2966, %v3109
        %3111 = vmatmul.bf16.gmra.mxu0 %v1212
        %v3112 = vpop.f32.mrf.mxu0
        %v3113 = vadd.f32 %v2969, %v3112
        %v3114 = vpop.f32.mrf.mxu0
        %v3115 = vadd.f32 %v2971, %v3114
        %3116 = vmatmul.bf16.gmra.mxu0 %v1218
        %v3117 = vpop.f32.mrf.mxu0
        %v3118 = vadd.f32 %v2974, %v3117
        %v3119 = vpop.f32.mrf.mxu0
        %v3120 = vadd.f32 %v2976, %v3119
        %3121 = vmatmul.bf16.gmra.mxu0 %v1224
        %v3122 = vpop.f32.mrf.mxu0
        %v3123 = vadd.f32 %v2979, %v3122
        %v3124 = vpop.f32.mrf.mxu0
        %v3125 = vadd.f32 %v2981, %v3124
        %3126 = vmatmul.bf16.gmra.mxu0 %v1228
        %v3127 = vpop.f32.mrf.mxu0
        %v3128 = vadd.f32 %v2984, %v3127
        %v3129 = vpop.f32.mrf.mxu0
        %v3130 = vadd.f32 %v2986, %v3129
        %3131 = vmatmul.bf16.gmra.mxu0 %v1234
        %v3132 = vpop.f32.mrf.mxu0
        %v3133 = vadd.f32 %v2989, %v3132
        %v3134 = vpop.f32.mrf.mxu0
        %v3135 = vadd.f32 %v2991, %v3134
        %3136 = vmatmul.bf16.gmra.mxu0 %v1240
        %v3137 = vpop.f32.mrf.mxu0
        %v3138 = vadd.f32 %v2994, %v3137
        %v3139 = vpop.f32.mrf.mxu0
        %v3140 = vadd.f32 %v2996, %v3139
        %3141 = vmatmul.bf16.gmra.mxu0 %v1244
        %v3142 = vpop.f32.mrf.mxu0
        %v3143 = vadd.f32 %v2999, %v3142
        %v3144 = vpop.f32.mrf.mxu0
        %v3145 = vadd.f32 %v3001, %v3144
        %3146 = vmatmul.bf16.gmra.mxu0 %v1250
        %v3147 = vpop.f32.mrf.mxu0
        %v3148 = vadd.f32 %v3004, %v3147
        %v3149 = vpop.f32.mrf.mxu0
        %v3150 = vadd.f32 %v3006, %v3149
        %3151 = vmatmul.bf16.gmra.mxu0 %v1256
        %v3152 = vpop.f32.mrf.mxu0
        %v3153 = vadd.f32 %v3009, %v3152
        %v3154 = vpop.f32.mrf.mxu0
        %v3155 = vadd.f32 %v3011, %v3154
        %3156 = vmatmul.bf16.gmra.mxu0 %v1260
        %v3157 = vpop.f32.mrf.mxu0
        %v3158 = vadd.f32 %v3014, %v3157
        %v3159 = vpop.f32.mrf.mxu0
        %v3160 = vadd.f32 %v3016, %v3159
        %3161 = vmatmul.bf16.gmra.mxu0 %v1266
        %v3162 = vpop.f32.mrf.mxu0
        %v3163 = vadd.f32 %v3019, %v3162
        %v3164 = vpop.f32.mrf.mxu0
        %v3165 = vadd.f32 %v3021, %v3164
        %3166 = vmatmul.bf16.gmra.mxu0 %v1272
        %v3167 = vpop.f32.mrf.mxu0
        %v3168 = vadd.f32 %v3024, %v3167
        %v3169 = vpop.f32.mrf.mxu0
        %v3170 = vadd.f32 %v3026, %v3169
        %3171 = vdwg.mxu0
        %s3172 = ssub.s32 %s211, 1
        %v3173 = vstv %s3172
        %v3174 = vadd.s32 %v3173, 1
        %v3175 = vadd.s32 %v3173, 2
        %v3176 = vadd.s32 %v3173, 3
        %v3177 = vadd.s32 %v3173, 4
        %v3178 = vadd.s32 %v3173, 5
        %v3179 = vadd.s32 %v3173, 6
        %v3180 = vadd.s32 %v3173, 7
        %v3181 = vadd.s32 %v3173, 8
        %v3182 = vadd.s32 %v3173, 9
        %v3183 = vadd.s32 %v3173, 10
        %v3184 = vadd.s32 %v3173, 11
        %v3185 = vadd.s32 %v3173, 12
        %v3186 = vadd.s32 %v3173, 13
        %v3187 = vadd.s32 %v3173, 14
        %v3188 = vadd.s32 %v3173, 15
        %v3189 = vadd.s32 %v3173, 16
        %v3190 = vadd.s32 %v3173, 17
        %v3191 = vlaneseq
        %v3192 = vshrl.u32 %v3191, 7
        %v3193 = vadd.s32 %v3192, 8
        %v3194 = vadd.s32 %v3192, 16
        %v3195 = vsub.s32 %v3192, 1
        %v3196 = vsub.s32 %v3193, 1
        %v3197 = vsub.s32 %v3194, 1
        %vm3198 = vcmp.ge.s32.totalorder %v3173, 0
        %vm3199 = vcmp.ge.s32.totalorder %v3174, 0
        %vm3200 = vcmp.ge.s32.totalorder %v3175, 0
        %vm3201 = vcmp.ge.s32.totalorder %v3176, 0
        %vm3202 = vcmp.ge.s32.totalorder %v3177, 0
        %vm3203 = vcmp.ge.s32.totalorder %v3178, 0
        %vm3204 = vcmp.ge.s32.totalorder %v3179, 0
        %vm3205 = vcmp.ge.s32.totalorder %v3180, 0
        %vm3206 = vcmp.ge.s32.totalorder %v3181, 0
        %vm3207 = vcmp.ge.s32.totalorder %v3182, 0
        %vm3208 = vcmp.ge.s32.totalorder %v3183, 0
        %vm3209 = vcmp.ge.s32.totalorder %v3184, 0
        %vm3210 = vcmp.ge.s32.totalorder %v3185, 0
        %vm3211 = vcmp.ge.s32.totalorder %v3186, 0
        %vm3212 = vcmp.ge.s32.totalorder %v3187, 0
        %vm3213 = vcmp.ge.s32.totalorder %v3188, 0
        %vm3214 = vcmp.ge.s32.totalorder %v3189, 0
        %vm3215 = vcmp.ge.s32.totalorder %v3190, 0
        %vm3216 = vcmp.lt.s32.totalorder %v3173, 16
        %vm3217 = vcmp.lt.s32.totalorder %v3174, 16
        %vm3218 = vcmp.lt.s32.totalorder %v3175, 16
        %vm3219 = vcmp.lt.s32.totalorder %v3176, 16
        %vm3220 = vcmp.lt.s32.totalorder %v3177, 16
        %vm3221 = vcmp.lt.s32.totalorder %v3178, 16
        %vm3222 = vcmp.lt.s32.totalorder %v3179, 16
        %vm3223 = vcmp.lt.s32.totalorder %v3180, 16
        %vm3224 = vcmp.lt.s32.totalorder %v3181, 16
        %vm3225 = vcmp.lt.s32.totalorder %v3182, 16
        %vm3226 = vcmp.lt.s32.totalorder %v3183, 16
        %vm3227 = vcmp.lt.s32.totalorder %v3184, 16
        %vm3228 = vcmp.lt.s32.totalorder %v3185, 16
        %vm3229 = vcmp.lt.s32.totalorder %v3186, 16
        %vm3230 = vcmp.lt.s32.totalorder %v3187, 16
        %vm3231 = vcmp.lt.s32.totalorder %v3188, 16
        %vm3232 = vcmp.lt.s32.totalorder %v3189, 16
        %vm3233 = vcmp.lt.s32.totalorder %v3190, 16
        %vm3234 = vmand %vm3198, %vm3216
        %vm3235 = vmand %vm3199, %vm3217
        %vm3236 = vmand %vm3200, %vm3218
        %vm3237 = vmand %vm3201, %vm3219
        %vm3238 = vmand %vm3202, %vm3220
        %vm3239 = vmand %vm3203, %vm3221
        %vm3240 = vmand %vm3204, %vm3222
        %vm3241 = vmand %vm3205, %vm3223
        %vm3242 = vmand %vm3206, %vm3224
        %vm3243 = vmand %vm3207, %vm3225
        %vm3244 = vmand %vm3208, %vm3226
        %vm3245 = vmand %vm3209, %vm3227
        %vm3246 = vmand %vm3210, %vm3228
        %vm3247 = vmand %vm3211, %vm3229
        %vm3248 = vmand %vm3212, %vm3230
        %vm3249 = vmand %vm3213, %vm3231
        %vm3250 = vmand %vm3214, %vm3232
        %vm3251 = vmand %vm3215, %vm3233
        %vm3252 = vcmp.ge.s32.totalorder %v3195, 0
        %vm3253 = vcmp.ge.s32.totalorder %v3196, 0
        %vm3254 = vcmp.ge.s32.totalorder %v3197, 0
        %vm3255 = vmand %vm3234, %vm3252
        %vm3256 = vmand %vm3234, %vm3253
        %vm3257 = vmand %vm3234, %vm3254
        %vm3258 = vmand %vm3235, %vm3252
        %vm3259 = vmand %vm3235, %vm3253
        %vm3260 = vmand %vm3235, %vm3254
        %vm3261 = vmand %vm3236, %vm3252
        %vm3262 = vmand %vm3236, %vm3253
        %vm3263 = vmand %vm3236, %vm3254
        %vm3264 = vmand %vm3237, %vm3252
        %vm3265 = vmand %vm3237, %vm3253
        %vm3266 = vmand %vm3237, %vm3254
        %vm3267 = vmand %vm3238, %vm3252
        %vm3268 = vmand %vm3238, %vm3253
        %vm3269 = vmand %vm3238, %vm3254
        %vm3270 = vmand %vm3239, %vm3252
        %vm3271 = vmand %vm3239, %vm3253
        %vm3272 = vmand %vm3239, %vm3254
        %vm3273 = vmand %vm3240, %vm3252
        %vm3274 = vmand %vm3240, %vm3253
        %vm3275 = vmand %vm3240, %vm3254
        %vm3276 = vmand %vm3241, %vm3252
        %vm3277 = vmand %vm3241, %vm3253
        %vm3278 = vmand %vm3241, %vm3254
        %vm3279 = vmand %vm3242, %vm3252
        %vm3280 = vmand %vm3242, %vm3253
        %vm3281 = vmand %vm3242, %vm3254
        %vm3282 = vmand %vm3243, %vm3252
        %vm3283 = vmand %vm3243, %vm3253
        %vm3284 = vmand %vm3243, %vm3254
        %vm3285 = vmand %vm3244, %vm3252
        %vm3286 = vmand %vm3244, %vm3253
        %vm3287 = vmand %vm3244, %vm3254
        %vm3288 = vmand %vm3245, %vm3252
        %vm3289 = vmand %vm3245, %vm3253
        %vm3290 = vmand %vm3245, %vm3254
        %vm3291 = vmand %vm3246, %vm3252
        %vm3292 = vmand %vm3246, %vm3253
        %vm3293 = vmand %vm3246, %vm3254
        %vm3294 = vmand %vm3247, %vm3252
        %vm3295 = vmand %vm3247, %vm3253
        %vm3296 = vmand %vm3247, %vm3254
        %vm3297 = vmand %vm3248, %vm3252
        %vm3298 = vmand %vm3248, %vm3253
        %vm3299 = vmand %vm3248, %vm3254
        %vm3300 = vmand %vm3249, %vm3252
        %vm3301 = vmand %vm3249, %vm3253
        %vm3302 = vmand %vm3249, %vm3254
        %vm3303 = vmand %vm3250, %vm3252
        %vm3304 = vmand %vm3250, %vm3253
        %vm3305 = vmand %vm3250, %vm3254
        %vm3306 = vmand %vm3251, %vm3252
        %vm3307 = vmand %vm3251, %vm3253
        %vm3308 = vmand %vm3251, %vm3254
        %vm3309 = vcmp.lt.s32.totalorder %v3195, 16
        %vm3310 = vcmp.lt.s32.totalorder %v3196, 16
        %vm3311 = vcmp.lt.s32.totalorder %v3197, 16
        %vm3312 = vmand %vm3255, %vm3309
        %vm3313 = vmand %vm3256, %vm3310
        %vm3314 = vmand %vm3257, %vm3311
        %vm3315 = vmand %vm3258, %vm3309
        %vm3316 = vmand %vm3259, %vm3310
        %vm3317 = vmand %vm3260, %vm3311
        %vm3318 = vmand %vm3261, %vm3309
        %vm3319 = vmand %vm3262, %vm3310
        %vm3320 = vmand %vm3263, %vm3311
        %vm3321 = vmand %vm3264, %vm3309
        %vm3322 = vmand %vm3265, %vm3310
        %vm3323 = vmand %vm3266, %vm3311
        %vm3324 = vmand %vm3267, %vm3309
        %vm3325 = vmand %vm3268, %vm3310
        %vm3326 = vmand %vm3269, %vm3311
        %vm3327 = vmand %vm3270, %vm3309
        %vm3328 = vmand %vm3271, %vm3310
        %vm3329 = vmand %vm3272, %vm3311
        %vm3330 = vmand %vm3273, %vm3309
        %vm3331 = vmand %vm3274, %vm3310
        %vm3332 = vmand %vm3275, %vm3311
        %vm3333 = vmand %vm3276, %vm3309
        %vm3334 = vmand %vm3277, %vm3310
        %vm3335 = vmand %vm3278, %vm3311
        %vm3336 = vmand %vm3279, %vm3309
        %vm3337 = vmand %vm3280, %vm3310
        %vm3338 = vmand %vm3281, %vm3311
        %vm3339 = vmand %vm3282, %vm3309
        %vm3340 = vmand %vm3283, %vm3310
        %vm3341 = vmand %vm3284, %vm3311
        %vm3342 = vmand %vm3285, %vm3309
        %vm3343 = vmand %vm3286, %vm3310
        %vm3344 = vmand %vm3287, %vm3311
        %vm3345 = vmand %vm3288, %vm3309
        %vm3346 = vmand %vm3289, %vm3310
        %vm3347 = vmand %vm3290, %vm3311
        %vm3348 = vmand %vm3291, %vm3309
        %vm3349 = vmand %vm3292, %vm3310
        %vm3350 = vmand %vm3293, %vm3311
        %vm3351 = vmand %vm3294, %vm3309
        %vm3352 = vmand %vm3295, %vm3310
        %vm3353 = vmand %vm3296, %vm3311
        %vm3354 = vmand %vm3297, %vm3309
        %vm3355 = vmand %vm3298, %vm3310
        %vm3356 = vmand %vm3299, %vm3311
        %vm3357 = vmand %vm3300, %vm3309
        %vm3358 = vmand %vm3301, %vm3310
        %vm3359 = vmand %vm3302, %vm3311
        %vm3360 = vmand %vm3303, %vm3309
        %vm3361 = vmand %vm3304, %vm3310
        %vm3362 = vmand %vm3305, %vm3311
        %vm3363 = vmand %vm3306, %vm3309
        %vm3364 = vmand %vm3307, %vm3310
        %vm3365 = vmand %vm3308, %vm3311
        %v3366 = vmax.f32 %v3038, 0.0
        %v3367 = vmax.f32 %v3040, 0.0
        %v3368 = vmax.f32 %v3043, 0.0
        %v3369 = vmax.f32 %v3045, 0.0
        %v3370 = vmax.f32 %v3048, 0.0
        %v3371 = vmax.f32 %v3050, 0.0
        %v3372 = vmax.f32 %v3053, 0.0
        %v3373 = vmax.f32 %v3055, 0.0
        %v3374 = vmax.f32 %v3058, 0.0
        %v3375 = vmax.f32 %v3060, 0.0
        %v3376 = vmax.f32 %v3063, 0.0
        %v3377 = vmax.f32 %v3065, 0.0
        %v3378 = vmax.f32 %v3068, 0.0
        %v3379 = vmax.f32 %v3070, 0.0
        %v3380 = vmax.f32 %v3073, 0.0
        %v3381 = vmax.f32 %v3075, 0.0
        %v3382 = vmax.f32 %v3078, 0.0
        %v3383 = vmax.f32 %v3080, 0.0
        %v3384 = vmax.f32 %v3083, 0.0
        %v3385 = vmax.f32 %v3085, 0.0
        %v3386 = vmax.f32 %v3088, 0.0
        %v3387 = vmax.f32 %v3090, 0.0
        %v3388 = vmax.f32 %v3093, 0.0
        %v3389 = vmax.f32 %v3095, 0.0
        %v3390 = vmax.f32 %v3098, 0.0
        %v3391 = vmax.f32 %v3100, 0.0
        %v3392 = vmax.f32 %v3103, 0.0
        %v3393 = vmax.f32 %v3105, 0.0
        %v3394 = vmax.f32 %v3108, 0.0
        %v3395 = vmax.f32 %v3110, 0.0
        %v3396 = vmax.f32 %v3113, 0.0
        %v3397 = vmax.f32 %v3115, 0.0
        %v3398 = vmax.f32 %v3118, 0.0
        %v3399 = vmax.f32 %v3120, 0.0
        %v3400 = vmax.f32 %v3123, 0.0
        %v3401 = vmax.f32 %v3125, 0.0
        %v3402 = vmax.f32 %v3128, 0.0
        %v3403 = vmax.f32 %v3130, 0.0
        %v3404 = vmax.f32 %v3133, 0.0
        %v3405 = vmax.f32 %v3135, 0.0
        %v3406 = vmax.f32 %v3138, 0.0
        %v3407 = vmax.f32 %v3140, 0.0
        %v3408 = vmax.f32 %v3143, 0.0
        %v3409 = vmax.f32 %v3145, 0.0
        %v3410 = vmax.f32 %v3148, 0.0
        %v3411 = vmax.f32 %v3150, 0.0
        %v3412 = vmax.f32 %v3153, 0.0
        %v3413 = vmax.f32 %v3155, 0.0
        %v3414 = vmax.f32 %v3158, 0.0
        %v3415 = vmax.f32 %v3160, 0.0
        %v3416 = vmax.f32 %v3163, 0.0
        %v3417 = vmax.f32 %v3165, 0.0
        %v3418 = vmax.f32 %v3168, 0.0
        %v3419 = vmax.f32 %v3170, 0.0
        %v3420 = vsel %vm3312, 1, 0
        %v3421 = vsel %vm3313, 1, 0
        %v3422 = vsel %vm3314, 1, 0
        %v3423 = vsel %vm3315, 1, 0
        %v3424 = vsel %vm3316, 1, 0
        %v3425 = vsel %vm3317, 1, 0
        %v3426 = vsel %vm3318, 1, 0
        %v3427 = vsel %vm3319, 1, 0
        %v3428 = vsel %vm3320, 1, 0
        %v3429 = vsel %vm3321, 1, 0
        %v3430 = vsel %vm3322, 1, 0
        %v3431 = vsel %vm3323, 1, 0
        %v3432 = vsel %vm3324, 1, 0
        %v3433 = vsel %vm3325, 1, 0
        %v3434 = vsel %vm3326, 1, 0
        %v3435 = vsel %vm3327, 1, 0
        %v3436 = vsel %vm3328, 1, 0
        %v3437 = vsel %vm3329, 1, 0
        %v3438 = vsel %vm3330, 1, 0
        %v3439 = vsel %vm3331, 1, 0
        %v3440 = vsel %vm3332, 1, 0
        %v3441 = vsel %vm3333, 1, 0
        %v3442 = vsel %vm3334, 1, 0
        %v3443 = vsel %vm3335, 1, 0
        %v3444 = vsel %vm3336, 1, 0
        %v3445 = vsel %vm3337, 1, 0
        %v3446 = vsel %vm3338, 1, 0
        %v3447 = vsel %vm3339, 1, 0
        %v3448 = vsel %vm3340, 1, 0
        %v3449 = vsel %vm3341, 1, 0
        %v3450 = vsel %vm3342, 1, 0
        %v3451 = vsel %vm3343, 1, 0
        %v3452 = vsel %vm3344, 1, 0
        %v3453 = vsel %vm3345, 1, 0
        %v3454 = vsel %vm3346, 1, 0
        %v3455 = vsel %vm3347, 1, 0
        %v3456 = vsel %vm3348, 1, 0
        %v3457 = vsel %vm3349, 1, 0
        %v3458 = vsel %vm3350, 1, 0
        %v3459 = vsel %vm3351, 1, 0
        %v3460 = vsel %vm3352, 1, 0
        %v3461 = vsel %vm3353, 1, 0
        %v3462 = vsel %vm3354, 1, 0
        %v3463 = vsel %vm3355, 1, 0
        %v3464 = vsel %vm3356, 1, 0
        %v3465 = vsel %vm3357, 1, 0
        %v3466 = vsel %vm3358, 1, 0
        %v3467 = vsel %vm3359, 1, 0
        %v3468 = vsel %vm3360, 1, 0
        %v3469 = vsel %vm3361, 1, 0
        %v3470 = vsel %vm3362, 1, 0
        %v3471 = vsel %vm3363, 1, 0
        %v3472 = vsel %vm3364, 1, 0
        %v3473 = vsel %vm3365, 1, 0
        %vm3474 = vcmp.eq.s32.totalorder %v3420, 1
        %vm3475 = vcmp.eq.s32.totalorder %v3421, 1
        %vm3476 = vcmp.eq.s32.totalorder %v3422, 1
        %vm3477 = vcmp.eq.s32.totalorder %v3423, 1
        %vm3478 = vcmp.eq.s32.totalorder %v3424, 1
        %vm3479 = vcmp.eq.s32.totalorder %v3425, 1
        %vm3480 = vcmp.eq.s32.totalorder %v3426, 1
        %vm3481 = vcmp.eq.s32.totalorder %v3427, 1
        %vm3482 = vcmp.eq.s32.totalorder %v3428, 1
        %vm3483 = vcmp.eq.s32.totalorder %v3429, 1
        %vm3484 = vcmp.eq.s32.totalorder %v3430, 1
        %vm3485 = vcmp.eq.s32.totalorder %v3431, 1
        %vm3486 = vcmp.eq.s32.totalorder %v3432, 1
        %vm3487 = vcmp.eq.s32.totalorder %v3433, 1
        %vm3488 = vcmp.eq.s32.totalorder %v3434, 1
        %vm3489 = vcmp.eq.s32.totalorder %v3435, 1
        %vm3490 = vcmp.eq.s32.totalorder %v3436, 1
        %vm3491 = vcmp.eq.s32.totalorder %v3437, 1
        %vm3492 = vcmp.eq.s32.totalorder %v3438, 1
        %vm3493 = vcmp.eq.s32.totalorder %v3439, 1
        %vm3494 = vcmp.eq.s32.totalorder %v3440, 1
        %vm3495 = vcmp.eq.s32.totalorder %v3441, 1
        %vm3496 = vcmp.eq.s32.totalorder %v3442, 1
        %vm3497 = vcmp.eq.s32.totalorder %v3443, 1
        %vm3498 = vcmp.eq.s32.totalorder %v3444, 1
        %vm3499 = vcmp.eq.s32.totalorder %v3445, 1
        %vm3500 = vcmp.eq.s32.totalorder %v3446, 1
        %vm3501 = vcmp.eq.s32.totalorder %v3447, 1
        %vm3502 = vcmp.eq.s32.totalorder %v3448, 1
        %vm3503 = vcmp.eq.s32.totalorder %v3449, 1
        %vm3504 = vcmp.eq.s32.totalorder %v3450, 1
        %vm3505 = vcmp.eq.s32.totalorder %v3451, 1
        %vm3506 = vcmp.eq.s32.totalorder %v3452, 1
        %vm3507 = vcmp.eq.s32.totalorder %v3453, 1
        %vm3508 = vcmp.eq.s32.totalorder %v3454, 1
        %vm3509 = vcmp.eq.s32.totalorder %v3455, 1
        %vm3510 = vcmp.eq.s32.totalorder %v3456, 1
        %vm3511 = vcmp.eq.s32.totalorder %v3457, 1
        %vm3512 = vcmp.eq.s32.totalorder %v3458, 1
        %vm3513 = vcmp.eq.s32.totalorder %v3459, 1
        %vm3514 = vcmp.eq.s32.totalorder %v3460, 1
        %vm3515 = vcmp.eq.s32.totalorder %v3461, 1
        %vm3516 = vcmp.eq.s32.totalorder %v3462, 1
        %vm3517 = vcmp.eq.s32.totalorder %v3463, 1
        %vm3518 = vcmp.eq.s32.totalorder %v3464, 1
        %vm3519 = vcmp.eq.s32.totalorder %v3465, 1
        %vm3520 = vcmp.eq.s32.totalorder %v3466, 1
        %vm3521 = vcmp.eq.s32.totalorder %v3467, 1
        %vm3522 = vcmp.eq.s32.totalorder %v3468, 1
        %vm3523 = vcmp.eq.s32.totalorder %v3469, 1
        %vm3524 = vcmp.eq.s32.totalorder %v3470, 1
        %vm3525 = vcmp.eq.s32.totalorder %v3471, 1
        %vm3526 = vcmp.eq.s32.totalorder %v3472, 1
        %vm3527 = vcmp.eq.s32.totalorder %v3473, 1
        %v3528 = vsel %vm3474, %v3366, 0.0
        %v3529 = vsel %vm3475, %v3367, 0.0
        %v3530 = vsel %vm3476, %v3368, 0.0
        %v3531 = vsel %vm3477, %v3369, 0.0
        %v3532 = vsel %vm3478, %v3370, 0.0
        %v3533 = vsel %vm3479, %v3371, 0.0
        %v3534 = vsel %vm3480, %v3372, 0.0
        %v3535 = vsel %vm3481, %v3373, 0.0
        %v3536 = vsel %vm3482, %v3374, 0.0
        %v3537 = vsel %vm3483, %v3375, 0.0
        %v3538 = vsel %vm3484, %v3376, 0.0
        %v3539 = vsel %vm3485, %v3377, 0.0
        %v3540 = vsel %vm3486, %v3378, 0.0
        %v3541 = vsel %vm3487, %v3379, 0.0
        %v3542 = vsel %vm3488, %v3380, 0.0
        %v3543 = vsel %vm3489, %v3381, 0.0
        %v3544 = vsel %vm3490, %v3382, 0.0
        %v3545 = vsel %vm3491, %v3383, 0.0
        %v3546 = vsel %vm3492, %v3384, 0.0
        %v3547 = vsel %vm3493, %v3385, 0.0
        %v3548 = vsel %vm3494, %v3386, 0.0
        %v3549 = vsel %vm3495, %v3387, 0.0
        %v3550 = vsel %vm3496, %v3388, 0.0
        %v3551 = vsel %vm3497, %v3389, 0.0
        %v3552 = vsel %vm3498, %v3390, 0.0
        %v3553 = vsel %vm3499, %v3391, 0.0
        %v3554 = vsel %vm3500, %v3392, 0.0
        %v3555 = vsel %vm3501, %v3393, 0.0
        %v3556 = vsel %vm3502, %v3394, 0.0
        %v3557 = vsel %vm3503, %v3395, 0.0
        %v3558 = vsel %vm3504, %v3396, 0.0
        %v3559 = vsel %vm3505, %v3397, 0.0
        %v3560 = vsel %vm3506, %v3398, 0.0
        %v3561 = vsel %vm3507, %v3399, 0.0
        %v3562 = vsel %vm3508, %v3400, 0.0
        %v3563 = vsel %vm3509, %v3401, 0.0
        %v3564 = vsel %vm3510, %v3402, 0.0
        %v3565 = vsel %vm3511, %v3403, 0.0
        %v3566 = vsel %vm3512, %v3404, 0.0
        %v3567 = vsel %vm3513, %v3405, 0.0
        %v3568 = vsel %vm3514, %v3406, 0.0
        %v3569 = vsel %vm3515, %v3407, 0.0
        %v3570 = vsel %vm3516, %v3408, 0.0
        %v3571 = vsel %vm3517, %v3409, 0.0
        %v3572 = vsel %vm3518, %v3410, 0.0
        %v3573 = vsel %vm3519, %v3411, 0.0
        %v3574 = vsel %vm3520, %v3412, 0.0
        %v3575 = vsel %vm3521, %v3413, 0.0
        %v3576 = vsel %vm3522, %v3414, 0.0
        %v3577 = vsel %vm3523, %v3415, 0.0
        %v3578 = vsel %vm3524, %v3416, 0.0
        %v3579 = vsel %vm3525, %v3417, 0.0
        %v3580 = vsel %vm3526, %v3418, 0.0
        %v3581 = vsel %vm3527, %v3419, 0.0
        %v3582 = vpack.c.bf16 %v3528, %v3528
        %v3583 = vpack.c.bf16 %v3529, %v3529
        %v3584 = vpack.c.bf16 %v3530, %v3530
        %v3585 = vpack.c.bf16 %v3531, %v3531
        %v3586 = vpack.c.bf16 %v3532, %v3532
        %v3587 = vpack.c.bf16 %v3533, %v3533
        %v3588 = vpack.c.bf16 %v3534, %v3534
        %v3589 = vpack.c.bf16 %v3535, %v3535
        %v3590 = vpack.c.bf16 %v3536, %v3536
        %v3591 = vpack.c.bf16 %v3537, %v3537
        %v3592 = vpack.c.bf16 %v3538, %v3538
        %v3593 = vpack.c.bf16 %v3539, %v3539
        %v3594 = vpack.c.bf16 %v3540, %v3540
        %v3595 = vpack.c.bf16 %v3541, %v3541
        %v3596 = vpack.c.bf16 %v3542, %v3542
        %v3597 = vpack.c.bf16 %v3543, %v3543
        %v3598 = vpack.c.bf16 %v3544, %v3544
        %v3599 = vpack.c.bf16 %v3545, %v3545
        %v3600 = vpack.c.bf16 %v3546, %v3546
        %v3601 = vpack.c.bf16 %v3547, %v3547
        %v3602 = vpack.c.bf16 %v3548, %v3548
        %v3603 = vpack.c.bf16 %v3549, %v3549
        %v3604 = vpack.c.bf16 %v3550, %v3550
        %v3605 = vpack.c.bf16 %v3551, %v3551
        %v3606 = vpack.c.bf16 %v3552, %v3552
        %v3607 = vpack.c.bf16 %v3553, %v3553
        %v3608 = vpack.c.bf16 %v3554, %v3554
        %v3609 = vpack.c.bf16 %v3555, %v3555
        %v3610 = vpack.c.bf16 %v3556, %v3556
        %v3611 = vpack.c.bf16 %v3557, %v3557
        %v3612 = vpack.c.bf16 %v3558, %v3558
        %v3613 = vpack.c.bf16 %v3559, %v3559
        %v3614 = vpack.c.bf16 %v3560, %v3560
        %v3615 = vpack.c.bf16 %v3561, %v3561
        %v3616 = vpack.c.bf16 %v3562, %v3562
        %v3617 = vpack.c.bf16 %v3563, %v3563
        %v3618 = vpack.c.bf16 %v3564, %v3564
        %v3619 = vpack.c.bf16 %v3565, %v3565
        %v3620 = vpack.c.bf16 %v3566, %v3566
        %v3621 = vpack.c.bf16 %v3567, %v3567
        %v3622 = vpack.c.bf16 %v3568, %v3568
        %v3623 = vpack.c.bf16 %v3569, %v3569
        %v3624 = vpack.c.bf16 %v3570, %v3570
        %v3625 = vpack.c.bf16 %v3571, %v3571
        %v3626 = vpack.c.bf16 %v3572, %v3572
        %v3627 = vpack.c.bf16 %v3573, %v3573
        %v3628 = vpack.c.bf16 %v3574, %v3574
        %v3629 = vpack.c.bf16 %v3575, %v3575
        %v3630 = vpack.c.bf16 %v3576, %v3576
        %v3631 = vpack.c.bf16 %v3577, %v3577
        %v3632 = vpack.c.bf16 %v3578, %v3578
        %v3633 = vpack.c.bf16 %v3579, %v3579
        %v3634 = vpack.c.bf16 %v3580, %v3580
        %v3635 = vpack.c.bf16 %v3581, %v3581
        %v3668 = vunpack.c.l.b16 %v3582
        %v3669 = vunpack.c.l.b16 %v3583
        %v3670 = vunpack.c.l.b16 %v3585
        %v3671 = vunpack.c.l.b16 %v3586
        %v3672 = vunpack.c.l.b16 %v3588
        %v3673 = vunpack.c.l.b16 %v3589
        %v3674 = vunpack.c.l.b16 %v3591
        %v3675 = vunpack.c.l.b16 %v3592
        %v3676 = vunpack.c.l.b16 %v3594
        %v3677 = vunpack.c.l.b16 %v3595
        %v3678 = vunpack.c.l.b16 %v3597
        %v3679 = vunpack.c.l.b16 %v3598
        %v3680 = vunpack.c.l.b16 %v3600
        %v3681 = vunpack.c.l.b16 %v3601
        %v3682 = vunpack.c.l.b16 %v3603
        %v3683 = vunpack.c.l.b16 %v3604
        %v3684 = vunpack.c.l.b16 %v3606
        %v3685 = vunpack.c.l.b16 %v3607
        %v3686 = vunpack.c.l.b16 %v3609
        %v3687 = vunpack.c.l.b16 %v3610
        %v3688 = vunpack.c.l.b16 %v3612
        %v3689 = vunpack.c.l.b16 %v3613
        %v3690 = vunpack.c.l.b16 %v3615
        %v3691 = vunpack.c.l.b16 %v3616
        %v3692 = vunpack.c.l.b16 %v3618
        %v3693 = vunpack.c.l.b16 %v3619
        %v3694 = vunpack.c.l.b16 %v3621
        %v3695 = vunpack.c.l.b16 %v3622
        %v3696 = vunpack.c.l.b16 %v3624
        %v3697 = vunpack.c.l.b16 %v3625
        %v3698 = vunpack.c.l.b16 %v3627
        %v3699 = vunpack.c.l.b16 %v3628
        %v3700 = vpack.c.b16 %v3669, %v3668
        %v3701 = vpack.c.b16 %v3671, %v3670
        %v3702 = vpack.c.b16 %v3673, %v3672
        %v3703 = vpack.c.b16 %v3675, %v3674
        %v3704 = vpack.c.b16 %v3677, %v3676
        %v3705 = vpack.c.b16 %v3679, %v3678
        %v3706 = vpack.c.b16 %v3681, %v3680
        %v3707 = vpack.c.b16 %v3683, %v3682
        %v3708 = vpack.c.b16 %v3685, %v3684
        %v3709 = vpack.c.b16 %v3687, %v3686
        %v3710 = vpack.c.b16 %v3689, %v3688
        %v3711 = vpack.c.b16 %v3691, %v3690
        %v3712 = vpack.c.b16 %v3693, %v3692
        %v3713 = vpack.c.b16 %v3695, %v3694
        %v3714 = vpack.c.b16 %v3697, %v3696
        %v3715 = vpack.c.b16 %v3699, %v3698
        %v3748 = vunpack.c.l.b16 %v3584
        %v3749 = vunpack.c.l.b16 %v3587
        %v3750 = vunpack.c.l.b16 %v3590
        %v3751 = vunpack.c.l.b16 %v3593
        %v3752 = vunpack.c.l.b16 %v3596
        %v3753 = vunpack.c.l.b16 %v3599
        %v3754 = vunpack.c.l.b16 %v3602
        %v3755 = vunpack.c.l.b16 %v3605
        %v3756 = vunpack.c.l.b16 %v3608
        %v3757 = vunpack.c.l.b16 %v3611
        %v3758 = vunpack.c.l.b16 %v3614
        %v3759 = vunpack.c.l.b16 %v3617
        %v3760 = vunpack.c.l.b16 %v3620
        %v3761 = vunpack.c.l.b16 %v3623
        %v3762 = vunpack.c.l.b16 %v3626
        %v3763 = vunpack.c.l.b16 %v3629
        %v3764 = vpack.c.b16 %v3748, %v3748
        %v3765 = vpack.c.b16 %v3749, %v3749
        %v3766 = vpack.c.b16 %v3750, %v3750
        %v3767 = vpack.c.b16 %v3751, %v3751
        %v3768 = vpack.c.b16 %v3752, %v3752
        %v3769 = vpack.c.b16 %v3753, %v3753
        %v3770 = vpack.c.b16 %v3754, %v3754
        %v3771 = vpack.c.b16 %v3755, %v3755
        %v3772 = vpack.c.b16 %v3756, %v3756
        %v3773 = vpack.c.b16 %v3757, %v3757
        %v3774 = vpack.c.b16 %v3758, %v3758
        %v3775 = vpack.c.b16 %v3759, %v3759
        %v3776 = vpack.c.b16 %v3760, %v3760
        %v3777 = vpack.c.b16 %v3761, %v3761
        %v3778 = vpack.c.b16 %v3762, %v3762
        %v3779 = vpack.c.b16 %v3763, %v3763
        %v3781 = vshrl.u32 %v3700, 16
        %v3783 = vshll.u32 %v3700, 16
        %v3785 = vrot.slane %v3783, 1
        %v3786 = vor.u32 %v3781, %v3785
        %v3788 = vshll.u32 %v3764, 16
        %v3790 = vrot.slane %v3788, 1
        %v3791 = vsel %vm475, %v3786, %v3790
        %v3793 = vshrl.u32 %v3701, 16
        %v3795 = vshll.u32 %v3701, 16
        %v3797 = vrot.slane %v3795, 1
        %v3798 = vor.u32 %v3793, %v3797
        %v3800 = vshll.u32 %v3765, 16
        %v3802 = vrot.slane %v3800, 1
        %v3803 = vsel %vm475, %v3798, %v3802
        %v3805 = vshrl.u32 %v3702, 16
        %v3807 = vshll.u32 %v3702, 16
        %v3809 = vrot.slane %v3807, 1
        %v3810 = vor.u32 %v3805, %v3809
        %v3812 = vshll.u32 %v3766, 16
        %v3814 = vrot.slane %v3812, 1
        %v3815 = vsel %vm475, %v3810, %v3814
        %v3817 = vshrl.u32 %v3703, 16
        %v3819 = vshll.u32 %v3703, 16
        %v3821 = vrot.slane %v3819, 1
        %v3822 = vor.u32 %v3817, %v3821
        %v3824 = vshll.u32 %v3767, 16
        %v3826 = vrot.slane %v3824, 1
        %v3827 = vsel %vm475, %v3822, %v3826
        %v3829 = vshrl.u32 %v3704, 16
        %v3831 = vshll.u32 %v3704, 16
        %v3833 = vrot.slane %v3831, 1
        %v3834 = vor.u32 %v3829, %v3833
        %v3836 = vshll.u32 %v3768, 16
        %v3838 = vrot.slane %v3836, 1
        %v3839 = vsel %vm475, %v3834, %v3838
        %v3841 = vshrl.u32 %v3705, 16
        %v3843 = vshll.u32 %v3705, 16
        %v3845 = vrot.slane %v3843, 1
        %v3846 = vor.u32 %v3841, %v3845
        %v3848 = vshll.u32 %v3769, 16
        %v3850 = vrot.slane %v3848, 1
        %v3851 = vsel %vm475, %v3846, %v3850
        %v3853 = vshrl.u32 %v3706, 16
        %v3855 = vshll.u32 %v3706, 16
        %v3857 = vrot.slane %v3855, 1
        %v3858 = vor.u32 %v3853, %v3857
        %v3860 = vshll.u32 %v3770, 16
        %v3862 = vrot.slane %v3860, 1
        %v3863 = vsel %vm475, %v3858, %v3862
        %v3865 = vshrl.u32 %v3707, 16
        %v3867 = vshll.u32 %v3707, 16
        %v3869 = vrot.slane %v3867, 1
        %v3870 = vor.u32 %v3865, %v3869
        %v3872 = vshll.u32 %v3771, 16
        %v3874 = vrot.slane %v3872, 1
        %v3875 = vsel %vm475, %v3870, %v3874
        %v3877 = vshrl.u32 %v3708, 16
        %v3879 = vshll.u32 %v3708, 16
        %v3881 = vrot.slane %v3879, 1
        %v3882 = vor.u32 %v3877, %v3881
        %v3884 = vshll.u32 %v3772, 16
        %v3886 = vrot.slane %v3884, 1
        %v3887 = vsel %vm475, %v3882, %v3886
        %v3889 = vshrl.u32 %v3709, 16
        %v3891 = vshll.u32 %v3709, 16
        %v3893 = vrot.slane %v3891, 1
        %v3894 = vor.u32 %v3889, %v3893
        %v3896 = vshll.u32 %v3773, 16
        %v3898 = vrot.slane %v3896, 1
        %v3899 = vsel %vm475, %v3894, %v3898
        %v3901 = vshrl.u32 %v3710, 16
        %v3903 = vshll.u32 %v3710, 16
        %v3905 = vrot.slane %v3903, 1
        %v3906 = vor.u32 %v3901, %v3905
        %v3908 = vshll.u32 %v3774, 16
        %v3910 = vrot.slane %v3908, 1
        %v3911 = vsel %vm475, %v3906, %v3910
        %v3913 = vshrl.u32 %v3711, 16
        %v3915 = vshll.u32 %v3711, 16
        %v3917 = vrot.slane %v3915, 1
        %v3918 = vor.u32 %v3913, %v3917
        %v3920 = vshll.u32 %v3775, 16
        %v3922 = vrot.slane %v3920, 1
        %v3923 = vsel %vm475, %v3918, %v3922
        %v3925 = vshrl.u32 %v3712, 16
        %v3927 = vshll.u32 %v3712, 16
        %v3929 = vrot.slane %v3927, 1
        %v3930 = vor.u32 %v3925, %v3929
        %v3932 = vshll.u32 %v3776, 16
        %v3934 = vrot.slane %v3932, 1
        %v3935 = vsel %vm475, %v3930, %v3934
        %v3937 = vshrl.u32 %v3713, 16
        %v3939 = vshll.u32 %v3713, 16
        %v3941 = vrot.slane %v3939, 1
        %v3942 = vor.u32 %v3937, %v3941
        %v3944 = vshll.u32 %v3777, 16
        %v3946 = vrot.slane %v3944, 1
        %v3947 = vsel %vm475, %v3942, %v3946
        %v3949 = vshrl.u32 %v3714, 16
        %v3951 = vshll.u32 %v3714, 16
        %v3953 = vrot.slane %v3951, 1
        %v3954 = vor.u32 %v3949, %v3953
        %v3956 = vshll.u32 %v3778, 16
        %v3958 = vrot.slane %v3956, 1
        %v3959 = vsel %vm475, %v3954, %v3958
        %v3961 = vshrl.u32 %v3715, 16
        %v3963 = vshll.u32 %v3715, 16
        %v3965 = vrot.slane %v3963, 1
        %v3966 = vor.u32 %v3961, %v3965
        %v3968 = vshll.u32 %v3779, 16
        %v3970 = vrot.slane %v3968, 1
        %v3971 = vsel %vm475, %v3966, %v3970
        %v3988 = vrot.slane %v3700, 1
        %v3989 = vrot.slane %v3764, 1
        %v3990 = vsel %vm746, %v3988, %v3989
        %v3991 = vrot.slane %v3701, 1
        %v3992 = vrot.slane %v3765, 1
        %v3993 = vsel %vm746, %v3991, %v3992
        %v3994 = vrot.slane %v3702, 1
        %v3995 = vrot.slane %v3766, 1
        %v3996 = vsel %vm746, %v3994, %v3995
        %v3997 = vrot.slane %v3703, 1
        %v3998 = vrot.slane %v3767, 1
        %v3999 = vsel %vm746, %v3997, %v3998
        %v4000 = vrot.slane %v3704, 1
        %v4001 = vrot.slane %v3768, 1
        %v4002 = vsel %vm746, %v4000, %v4001
        %v4003 = vrot.slane %v3705, 1
        %v4004 = vrot.slane %v3769, 1
        %v4005 = vsel %vm746, %v4003, %v4004
        %v4006 = vrot.slane %v3706, 1
        %v4007 = vrot.slane %v3770, 1
        %v4008 = vsel %vm746, %v4006, %v4007
        %v4009 = vrot.slane %v3707, 1
        %v4010 = vrot.slane %v3771, 1
        %v4011 = vsel %vm746, %v4009, %v4010
        %v4012 = vrot.slane %v3708, 1
        %v4013 = vrot.slane %v3772, 1
        %v4014 = vsel %vm746, %v4012, %v4013
        %v4015 = vrot.slane %v3709, 1
        %v4016 = vrot.slane %v3773, 1
        %v4017 = vsel %vm746, %v4015, %v4016
        %v4018 = vrot.slane %v3710, 1
        %v4019 = vrot.slane %v3774, 1
        %v4020 = vsel %vm746, %v4018, %v4019
        %v4021 = vrot.slane %v3711, 1
        %v4022 = vrot.slane %v3775, 1
        %v4023 = vsel %vm746, %v4021, %v4022
        %v4024 = vrot.slane %v3712, 1
        %v4025 = vrot.slane %v3776, 1
        %v4026 = vsel %vm746, %v4024, %v4025
        %v4027 = vrot.slane %v3713, 1
        %v4028 = vrot.slane %v3777, 1
        %v4029 = vsel %vm746, %v4027, %v4028
        %v4030 = vrot.slane %v3714, 1
        %v4031 = vrot.slane %v3778, 1
        %v4032 = vsel %vm746, %v4030, %v4031
        %v4033 = vrot.slane %v3715, 1
        %v4034 = vrot.slane %v3779, 1
        %v4035 = vsel %vm746, %v4033, %v4034
        %v4054 = vunpack.c.l.b16 %v3630
        %v4055 = vunpack.c.l.b16 %v3631
        %v4056 = vpack.c.b16 %v4055, %v4054
        %v4059 = vunpack.c.l.b16 %v3632
        %v4060 = vpack.c.b16 %v4059, %v4059
        %v4062 = vshrl.u32 %v4056, 16
        %v4064 = vshll.u32 %v4056, 16
        %v4066 = vrot.slane %v4064, 1
        %v4067 = vor.u32 %v4062, %v4066
        %v4069 = vshll.u32 %v4060, 16
        %v4071 = vrot.slane %v4069, 1
        %v4072 = vsel %vm475, %v4067, %v4071
        %v4074 = vrot.slane %v4056, 1
        %v4075 = vrot.slane %v4060, 1
        %v4076 = vsel %vm746, %v4074, %v4075
        %v4080 = vunpack.c.l.b16 %v3633
        %v4081 = vunpack.c.l.b16 %v3634
        %v4082 = vpack.c.b16 %v4081, %v4080
        %v4085 = vunpack.c.l.b16 %v3635
        %v4086 = vpack.c.b16 %v4085, %v4085
        %v4088 = vshrl.u32 %v4082, 16
        %v4090 = vshll.u32 %v4082, 16
        %v4092 = vrot.slane %v4090, 1
        %v4093 = vor.u32 %v4088, %v4092
        %v4095 = vshll.u32 %v4086, 16
        %v4097 = vrot.slane %v4095, 1
        %v4098 = vsel %vm475, %v4093, %v4097
        %v4100 = vrot.slane %v4082, 1
        %v4101 = vrot.slane %v4086, 1
        %v4102 = vsel %vm746, %v4100, %v4101
        %v4104 = vld [vmem:[%s2] sm:$0xf]
        %v4105 = vld [vmem:[%s2 + $0x4] sm:$0xf]
        %v4106 = vld [vmem:[%s2 + $0x8] sm:$0xf]
        %v4107 = vld [vmem:[%s2 + $0xc] sm:$0xf]
        %v4108 = vld [vmem:[%s2 + $0x10] sm:$0xf]
        %v4109 = vld [vmem:[%s2 + $0x14] sm:$0xf]
        %v4110 = vld [vmem:[%s2 + $0x18] sm:$0xf]
        %v4111 = vld [vmem:[%s2 + $0x1c] sm:$0xf]
        %v4112 = vld [vmem:[%s2 + $0x20] sm:$0xf]
        %v4113 = vld [vmem:[%s2 + $0x24] sm:$0xf]
        %v4114 = vld [vmem:[%s2 + $0x28] sm:$0xf]
        %v4115 = vld [vmem:[%s2 + $0x2c] sm:$0xf]
        %v4116 = vld [vmem:[%s2 + $0x30] sm:$0xf]
        %v4117 = vld [vmem:[%s2 + $0x34] sm:$0xf]
        %v4118 = vld [vmem:[%s2 + $0x38] sm:$0xf]
        %v4119 = vld [vmem:[%s2 + $0x3c] sm:$0xf]
        %v4120 = vld [vmem:[%s2 + $0x40] sm:$0xf]
        %v4121 = vld [vmem:[%s2 + $0x44] sm:$0xf]
        %v4122 = vld [vmem:[%s2 + $0x48] sm:$0xf]
        %v4123 = vld [vmem:[%s2 + $0x4c] sm:$0xf]
        %v4124 = vld [vmem:[%s2 + $0x50] sm:$0xf]
        %v4125 = vld [vmem:[%s2 + $0x54] sm:$0xf]
        %v4126 = vld [vmem:[%s2 + $0x58] sm:$0xf]
        %v4127 = vld [vmem:[%s2 + $0x5c] sm:$0xf]
        %v4128 = vld [vmem:[%s2 + $0x60] sm:$0xf]
        %v4129 = vld [vmem:[%s2 + $0x64] sm:$0xf]
        %v4130 = vld [vmem:[%s2 + $0x68] sm:$0xf]
        %v4131 = vld [vmem:[%s2 + $0x6c] sm:$0xf]
        %v4132 = vld [vmem:[%s2 + $0x70] sm:$0xf]
        %v4133 = vld [vmem:[%s2 + $0x74] sm:$0xf]
        %v4134 = vld [vmem:[%s2 + $0x78] sm:$0xf]
        %v4135 = vld [vmem:[%s2 + $0x7c] sm:$0xf]
        %v4136 = vld [vmem:[%s2 + $0x80] sm:$0xf]
        %v4137 = vld [vmem:[%s2 + $0x84] sm:$0xf]
        %v4138 = vld [vmem:[%s2 + $0x88] sm:$0xf]
        %v4139 = vld [vmem:[%s2 + $0x8c] sm:$0xf]
        %v4140 = vld [vmem:[%s2 + $0x90] sm:$0xf]
        %v4141 = vld [vmem:[%s2 + $0x94] sm:$0xf]
        %v4142 = vld [vmem:[%s2 + $0x98] sm:$0xf]
        %v4143 = vld [vmem:[%s2 + $0x9c] sm:$0xf]
        %v4144 = vld [vmem:[%s2 + $0xa0] sm:$0xf]
        %v4145 = vld [vmem:[%s2 + $0xa4] sm:$0xf]
        %v4146 = vld [vmem:[%s2 + $0xa8] sm:$0xf]
        %v4147 = vld [vmem:[%s2 + $0xac] sm:$0xf]
        %v4148 = vld [vmem:[%s2 + $0xb0] sm:$0xf]
        %v4149 = vld [vmem:[%s2 + $0xb4] sm:$0xf]
        %v4150 = vld [vmem:[%s2 + $0xb8] sm:$0xf]
        %v4151 = vld [vmem:[%s2 + $0xbc] sm:$0xf]
        %v4152 = vld [vmem:[%s2 + $0xc0] sm:$0xf]
        %v4153 = vld [vmem:[%s2 + $0xc4] sm:$0xf]
        %v4154 = vld [vmem:[%s2 + $0xc8] sm:$0xf]
        %v4155 = vld [vmem:[%s2 + $0xcc] sm:$0xf]
        %v4156 = vld [vmem:[%s2 + $0xd0] sm:$0xf]
        %v4157 = vld [vmem:[%s2 + $0xd4] sm:$0xf]
        %v4158 = vld [vmem:[%s2 + $0xd8] sm:$0xf]
        %v4159 = vld [vmem:[%s2 + $0xdc] sm:$0xf]
        %v4160 = vld [vmem:[%s2 + $0xe0] sm:$0xf]
        %v4161 = vld [vmem:[%s2 + $0xe4] sm:$0xf]
        %v4162 = vld [vmem:[%s2 + $0xe8] sm:$0xf]
        %v4163 = vld [vmem:[%s2 + $0xec] sm:$0xf]
        %v4164 = vld [vmem:[%s2 + $0xf0] sm:$0xf]
        %v4165 = vld [vmem:[%s2 + $0xf4] sm:$0xf]
        %v4166 = vld [vmem:[%s2 + $0xf8] sm:$0xf]
        %v4167 = vld [vmem:[%s2 + $0xfc] sm:$0xf]
        %v4168 = vld [vmem:[%s2 + $0x100] sm:$0xf]
        %v4169 = vld [vmem:[%s2 + $0x104] sm:$0xf]
        %v4170 = vld [vmem:[%s2 + $0x108] sm:$0xf]
        %v4171 = vld [vmem:[%s2 + $0x10c] sm:$0xf]
        %v4172 = vld [vmem:[%s2 + $0x110] sm:$0xf]
        %v4173 = vld [vmem:[%s2 + $0x114] sm:$0xf]
        %v4174 = vld [vmem:[%s2 + $0x118] sm:$0xf]
        %v4175 = vld [vmem:[%s2 + $0x11c] sm:$0xf]
        %v4176 = vld [vmem:[%s2 + $0x120] sm:$0xf]
        %v4177 = vld [vmem:[%s2 + $0x124] sm:$0xf]
        %v4178 = vld [vmem:[%s2 + $0x128] sm:$0xf]
        %v4179 = vld [vmem:[%s2 + $0x12c] sm:$0xf]
        %v4180 = vld [vmem:[%s2 + $0x130] sm:$0xf]
        %v4181 = vld [vmem:[%s2 + $0x134] sm:$0xf]
        %v4182 = vld [vmem:[%s2 + $0x138] sm:$0xf]
        %v4183 = vld [vmem:[%s2 + $0x13c] sm:$0xf]
        %v4184 = vld [vmem:[%s2 + $0x140] sm:$0xf]
        %v4185 = vld [vmem:[%s2 + $0x144] sm:$0xf]
        %v4186 = vld [vmem:[%s2 + $0x148] sm:$0xf]
        %v4187 = vld [vmem:[%s2 + $0x14c] sm:$0xf]
        %v4188 = vld [vmem:[%s2 + $0x150] sm:$0xf]
        %v4189 = vld [vmem:[%s2 + $0x154] sm:$0xf]
        %v4190 = vld [vmem:[%s2 + $0x158] sm:$0xf]
        %v4191 = vld [vmem:[%s2 + $0x15c] sm:$0xf]
        %v4192 = vld [vmem:[%s2 + $0x160] sm:$0xf]
        %v4193 = vld [vmem:[%s2 + $0x164] sm:$0xf]
        %v4194 = vld [vmem:[%s2 + $0x168] sm:$0xf]
        %v4195 = vld [vmem:[%s2 + $0x16c] sm:$0xf]
        %v4196 = vld [vmem:[%s2 + $0x170] sm:$0xf]
        %v4197 = vld [vmem:[%s2 + $0x174] sm:$0xf]
        %v4198 = vld [vmem:[%s2 + $0x178] sm:$0xf]
        %v4199 = vld [vmem:[%s2 + $0x17c] sm:$0xf]
        %v4200 = vld [vmem:[%s2 + $0x180] sm:$0xf]
        %v4201 = vld [vmem:[%s2 + $0x184] sm:$0xf]
        %v4202 = vld [vmem:[%s2 + $0x188] sm:$0xf]
        %v4203 = vld [vmem:[%s2 + $0x18c] sm:$0xf]
        %v4204 = vld [vmem:[%s2 + $0x190] sm:$0xf]
        %v4205 = vld [vmem:[%s2 + $0x194] sm:$0xf]
        %v4206 = vld [vmem:[%s2 + $0x198] sm:$0xf]
        %v4207 = vld [vmem:[%s2 + $0x19c] sm:$0xf]
        %v4208 = vld [vmem:[%s2 + $0x1a0] sm:$0xf]
        %v4209 = vld [vmem:[%s2 + $0x1a4] sm:$0xf]
        %v4210 = vld [vmem:[%s2 + $0x1a8] sm:$0xf]
        %v4211 = vld [vmem:[%s2 + $0x1ac] sm:$0xf]
        %v4212 = vld [vmem:[%s2 + $0x1b0] sm:$0xf]
        %v4213 = vld [vmem:[%s2 + $0x1b4] sm:$0xf]
        %v4214 = vld [vmem:[%s2 + $0x1b8] sm:$0xf]
        %v4215 = vld [vmem:[%s2 + $0x1bc] sm:$0xf]
        %v4216 = vld [vmem:[%s2 + $0x1c0] sm:$0xf]
        %v4217 = vld [vmem:[%s2 + $0x1c4] sm:$0xf]
        %v4218 = vld [vmem:[%s2 + $0x1c8] sm:$0xf]
        %v4219 = vld [vmem:[%s2 + $0x1cc] sm:$0xf]
        %v4220 = vld [vmem:[%s2 + $0x1d0] sm:$0xf]
        %v4221 = vld [vmem:[%s2 + $0x1d4] sm:$0xf]
        %v4222 = vld [vmem:[%s2 + $0x1d8] sm:$0xf]
        %v4223 = vld [vmem:[%s2 + $0x1dc] sm:$0xf]
        %v4224 = vld [vmem:[%s2 + $0x1e0] sm:$0xf]
        %v4225 = vld [vmem:[%s2 + $0x1e4] sm:$0xf]
        %v4226 = vld [vmem:[%s2 + $0x1e8] sm:$0xf]
        %v4227 = vld [vmem:[%s2 + $0x1ec] sm:$0xf]
        %v4228 = vld [vmem:[%s2 + $0x1f0] sm:$0xf]
        %v4229 = vld [vmem:[%s2 + $0x1f4] sm:$0xf]
        %v4230 = vld [vmem:[%s2 + $0x1f8] sm:$0xf]
        %v4231 = vld [vmem:[%s2 + $0x1fc] sm:$0xf]
        %v4232 = vld [vmem:[%s2 + $0x200] sm:$0xf]
        %v4233 = vld [vmem:[%s2 + $0x204] sm:$0xf]
        %v4234 = vld [vmem:[%s2 + $0x208] sm:$0xf]
        %v4235 = vld [vmem:[%s2 + $0x20c] sm:$0xf]
        %v4236 = vld [vmem:[%s2 + $0x210] sm:$0xf]
        %v4237 = vld [vmem:[%s2 + $0x214] sm:$0xf]
        %v4238 = vld [vmem:[%s2 + $0x218] sm:$0xf]
        %v4239 = vld [vmem:[%s2 + $0x21c] sm:$0xf]
        %v4240 = vld [vmem:[%s2 + $0x220] sm:$0xf]
        %v4241 = vld [vmem:[%s2 + $0x224] sm:$0xf]
        %v4242 = vld [vmem:[%s2 + $0x228] sm:$0xf]
        %v4243 = vld [vmem:[%s2 + $0x22c] sm:$0xf]
        %v4244 = vld [vmem:[%s2 + $0x230] sm:$0xf]
        %v4245 = vld [vmem:[%s2 + $0x234] sm:$0xf]
        %v4246 = vld [vmem:[%s2 + $0x238] sm:$0xf]
        %v4247 = vld [vmem:[%s2 + $0x23c] sm:$0xf]
        %vm4248 = vcmask 1042432
        %vm4249 = vcmask 1046532
        %vm4250 = vmor %vm4248, %vm4249
        %v4251 = vrot.slane %v223, 5
        %v4252 = vrot.slane %v4251, 4
        %v4253 = vrot.slane %v224, 5
        %v4254 = vsel %vm4250, %v4252, %v4253
        %v4255 = vrot.slane %v4253, 4
        %v4256 = vrot.slane %v225, 5
        %v4257 = vsel %vm4250, %v4255, %v4256
        %v4258 = vrot.slane %v227, 5
        %v4259 = vrot.slane %v4258, 4
        %v4260 = vrot.slane %v228, 5
        %v4261 = vsel %vm4250, %v4259, %v4260
        %v4262 = vrot.slane %v4260, 4
        %v4263 = vrot.slane %v229, 5
        %v4264 = vsel %vm4250, %v4262, %v4263
        %v4265 = vrot.slane %v231, 5
        %v4266 = vrot.slane %v4265, 4
        %v4267 = vrot.slane %v232, 5
        %v4268 = vsel %vm4250, %v4266, %v4267
        %v4269 = vrot.slane %v4267, 4
        %v4270 = vrot.slane %v233, 5
        %v4271 = vsel %vm4250, %v4269, %v4270
        %v4272 = vrot.slane %v235, 5
        %v4273 = vrot.slane %v4272, 4
        %v4274 = vrot.slane %v236, 5
        %v4275 = vsel %vm4250, %v4273, %v4274
        %v4276 = vrot.slane %v4274, 4
        %v4277 = vrot.slane %v237, 5
        %v4278 = vsel %vm4250, %v4276, %v4277
        %v4279 = vrot.slane %v239, 5
        %v4280 = vrot.slane %v4279, 4
        %v4281 = vrot.slane %v240, 5
        %v4282 = vsel %vm4250, %v4280, %v4281
        %v4283 = vrot.slane %v4281, 4
        %v4284 = vrot.slane %v241, 5
        %v4285 = vsel %vm4250, %v4283, %v4284
        %v4286 = vrot.slane %v243, 5
        %v4287 = vrot.slane %v4286, 4
        %v4288 = vrot.slane %v244, 5
        %v4289 = vsel %vm4250, %v4287, %v4288
        %v4290 = vrot.slane %v4288, 4
        %v4291 = vrot.slane %v245, 5
        %v4292 = vsel %vm4250, %v4290, %v4291
        %v4293 = vrot.slane %v247, 5
        %v4294 = vrot.slane %v4293, 4
        %v4295 = vrot.slane %v248, 5
        %v4296 = vsel %vm4250, %v4294, %v4295
        %v4297 = vrot.slane %v4295, 4
        %v4298 = vrot.slane %v249, 5
        %v4299 = vsel %vm4250, %v4297, %v4298
        %v4300 = vrot.slane %v251, 5
        %v4301 = vrot.slane %v4300, 4
        %v4302 = vrot.slane %v252, 5
        %v4303 = vsel %vm4250, %v4301, %v4302
        %v4304 = vrot.slane %v4302, 4
        %v4305 = vrot.slane %v253, 5
        %v4306 = vsel %vm4250, %v4304, %v4305
        %v4307 = vrot.slane %v255, 5
        %v4308 = vrot.slane %v4307, 4
        %v4309 = vrot.slane %v256, 5
        %v4310 = vsel %vm4250, %v4308, %v4309
        %v4311 = vrot.slane %v4309, 4
        %v4312 = vrot.slane %v257, 5
        %v4313 = vsel %vm4250, %v4311, %v4312
        %v4314 = vrot.slane %v259, 5
        %v4315 = vrot.slane %v4314, 4
        %v4316 = vrot.slane %v260, 5
        %v4317 = vsel %vm4250, %v4315, %v4316
        %v4318 = vrot.slane %v4316, 4
        %v4319 = vrot.slane %v261, 5
        %v4320 = vsel %vm4250, %v4318, %v4319
        %v4321 = vrot.slane %v263, 5
        %v4322 = vrot.slane %v4321, 4
        %v4323 = vrot.slane %v264, 5
        %v4324 = vsel %vm4250, %v4322, %v4323
        %v4325 = vrot.slane %v4323, 4
        %v4326 = vrot.slane %v265, 5
        %v4327 = vsel %vm4250, %v4325, %v4326
        %v4328 = vrot.slane %v267, 5
        %v4329 = vrot.slane %v4328, 4
        %v4330 = vrot.slane %v268, 5
        %v4331 = vsel %vm4250, %v4329, %v4330
        %v4332 = vrot.slane %v4330, 4
        %v4333 = vrot.slane %v269, 5
        %v4334 = vsel %vm4250, %v4332, %v4333
        %v4335 = vrot.slane %v271, 5
        %v4336 = vrot.slane %v4335, 4
        %v4337 = vrot.slane %v272, 5
        %v4338 = vsel %vm4250, %v4336, %v4337
        %v4339 = vrot.slane %v4337, 4
        %v4340 = vrot.slane %v273, 5
        %v4341 = vsel %vm4250, %v4339, %v4340
        %v4342 = vrot.slane %v275, 5
        %v4343 = vrot.slane %v4342, 4
        %v4344 = vrot.slane %v276, 5
        %v4345 = vsel %vm4250, %v4343, %v4344
        %v4346 = vrot.slane %v4344, 4
        %v4347 = vrot.slane %v277, 5
        %v4348 = vsel %vm4250, %v4346, %v4347
        %v4349 = vrot.slane %v279, 5
        %v4350 = vrot.slane %v4349, 4
        %v4351 = vrot.slane %v280, 5
        %v4352 = vsel %vm4250, %v4350, %v4351
        %v4353 = vrot.slane %v4351, 4
        %v4354 = vrot.slane %v281, 5
        %v4355 = vsel %vm4250, %v4353, %v4354
        %v4356 = vrot.slane %v283, 5
        %v4357 = vrot.slane %v4356, 4
        %v4358 = vrot.slane %v284, 5
        %v4359 = vsel %vm4250, %v4357, %v4358
        %v4360 = vrot.slane %v4358, 4
        %v4361 = vrot.slane %v285, 5
        %v4362 = vsel %vm4250, %v4360, %v4361
        %v4363 = vld [vmem:[%s3] sm:$0xf]
        %v4364 = vld [vmem:[%s3 + $0x4] sm:$0xf]
        %v4365 = vld [vmem:[%s3 + $0x8] sm:$0xf]
        %v4366 = vld [vmem:[%s3 + $0xc] sm:$0xf]
        %v4367 = vld [vmem:[%s3 + $0x10] sm:$0xf]
        %v4368 = vld [vmem:[%s3 + $0x14] sm:$0xf]
        %v4369 = vld [vmem:[%s3 + $0x18] sm:$0xf]
        %v4370 = vld [vmem:[%s3 + $0x1c] sm:$0xf]
        %v4371 = vld [vmem:[%s3 + $0x20] sm:$0xf]
        %v4372 = vld [vmem:[%s3 + $0x24] sm:$0xf]
        %v4373 = vld [vmem:[%s3 + $0x28] sm:$0xf]
        %v4374 = vld [vmem:[%s3 + $0x2c] sm:$0xf]
        %v4375 = vld [vmem:[%s3 + $0x30] sm:$0xf]
        %v4376 = vld [vmem:[%s3 + $0x34] sm:$0xf]
        %v4377 = vld [vmem:[%s3 + $0x38] sm:$0xf]
        %v4378 = vld [vmem:[%s3 + $0x3c] sm:$0xf]
        %v4379 = vunpack.c.l.b16 %v4254
        %v4380 = vunpack.c.l.b16 %v4257
        %v4381 = vunpack.c.l.b16 %v4261
        %v4382 = vunpack.c.l.b16 %v4264
        %v4383 = vunpack.c.l.b16 %v4268
        %v4384 = vunpack.c.l.b16 %v4271
        %v4385 = vunpack.c.l.b16 %v4275
        %v4386 = vunpack.c.l.b16 %v4278
        %v4387 = vunpack.c.l.b16 %v4282
        %v4388 = vunpack.c.l.b16 %v4285
        %v4389 = vunpack.c.l.b16 %v4289
        %v4390 = vunpack.c.l.b16 %v4292
        %v4391 = vunpack.c.l.b16 %v4296
        %v4392 = vunpack.c.l.b16 %v4299
        %v4393 = vunpack.c.l.b16 %v4303
        %v4394 = vunpack.c.l.b16 %v4306
        %v4395 = vunpack.c.l.b16 %v4310
        %v4396 = vunpack.c.l.b16 %v4313
        %v4397 = vunpack.c.l.b16 %v4317
        %v4398 = vunpack.c.l.b16 %v4320
        %v4399 = vunpack.c.l.b16 %v4324
        %v4400 = vunpack.c.l.b16 %v4327
        %v4401 = vunpack.c.l.b16 %v4331
        %v4402 = vunpack.c.l.b16 %v4334
        %v4403 = vunpack.c.l.b16 %v4338
        %v4404 = vunpack.c.l.b16 %v4341
        %v4405 = vunpack.c.l.b16 %v4345
        %v4406 = vunpack.c.l.b16 %v4348
        %v4407 = vunpack.c.l.b16 %v4352
        %v4408 = vunpack.c.l.b16 %v4355
        %v4409 = vunpack.c.l.b16 %v4359
        %v4410 = vunpack.c.l.b16 %v4362
        %v4411 = vpack.c.b16 %v4380, %v4379
        %v4412 = vpack.c.b16 %v4382, %v4381
        %v4413 = vpack.c.b16 %v4384, %v4383
        %v4414 = vpack.c.b16 %v4386, %v4385
        %v4415 = vpack.c.b16 %v4388, %v4387
        %v4416 = vpack.c.b16 %v4390, %v4389
        %v4417 = vpack.c.b16 %v4392, %v4391
        %v4418 = vpack.c.b16 %v4394, %v4393
        %v4419 = vpack.c.b16 %v4396, %v4395
        %v4420 = vpack.c.b16 %v4398, %v4397
        %v4421 = vpack.c.b16 %v4400, %v4399
        %v4422 = vpack.c.b16 %v4402, %v4401
        %v4423 = vpack.c.b16 %v4404, %v4403
        %v4424 = vpack.c.b16 %v4406, %v4405
        %v4425 = vpack.c.b16 %v4408, %v4407
        %v4426 = vpack.c.b16 %v4410, %v4409
        %v4459 = vunpack.c.l.b16 %v4363
        %v4460 = vunpack.c.l.b16 %v4364
        %v4461 = vunpack.c.l.b16 %v4365
        %v4462 = vunpack.c.l.b16 %v4366
        %v4463 = vunpack.c.l.b16 %v4367
        %v4464 = vunpack.c.l.b16 %v4368
        %v4465 = vunpack.c.l.b16 %v4369
        %v4466 = vunpack.c.l.b16 %v4370
        %v4467 = vunpack.c.l.b16 %v4371
        %v4468 = vunpack.c.l.b16 %v4372
        %v4469 = vunpack.c.l.b16 %v4373
        %v4470 = vunpack.c.l.b16 %v4374
        %v4471 = vunpack.c.l.b16 %v4375
        %v4472 = vunpack.c.l.b16 %v4376
        %v4473 = vunpack.c.l.b16 %v4377
        %v4474 = vunpack.c.l.b16 %v4378
        %v4475 = vpack.c.b16 %v4460, %v4459
        %v4476 = vpack.c.b16 %v4462, %v4461
        %v4477 = vpack.c.b16 %v4464, %v4463
        %v4478 = vpack.c.b16 %v4466, %v4465
        %v4479 = vpack.c.b16 %v4468, %v4467
        %v4480 = vpack.c.b16 %v4470, %v4469
        %v4481 = vpack.c.b16 %v4472, %v4471
        %v4482 = vpack.c.b16 %v4474, %v4473
        %4491 = vmatpush.bf16.msra.mxu0 %v4482
        %4492 = vmatpush.bf16.msra.mxu0 %v4481
        %4493 = vmatpush.bf16.msra.mxu0 %v4480
        %4494 = vmatpush.bf16.msra.mxu0 %v4479
        %4495 = vmatpush.bf16.msra.mxu0 %v4478
        %4496 = vmatpush.bf16.msra.mxu0 %v4477
        %4497 = vmatpush.bf16.msra.mxu0 %v4476
        %4498 = vmatpush.bf16.msra.mxu0 %v4475
        %4499 = vmatmul.bf16.gmra.mxu0 %v4411
        %v4500 = vpop.f32.mrf.mxu0
        %v4501 = vadd.f32 0.0, %v4500
        %v4502 = vpop.f32.mrf.mxu0
        %v4503 = vadd.f32 0.0, %v4502
        %4504 = vmatmul.bf16.gmra.mxu0 %v4412
        %v4505 = vpop.f32.mrf.mxu0
        %v4506 = vadd.f32 0.0, %v4505
        %v4507 = vpop.f32.mrf.mxu0
        %v4508 = vadd.f32 0.0, %v4507
        %4509 = vmatmul.bf16.gmra.mxu0 %v4413
        %v4510 = vpop.f32.mrf.mxu0
        %v4511 = vadd.f32 0.0, %v4510
        %v4512 = vpop.f32.mrf.mxu0
        %v4513 = vadd.f32 0.0, %v4512
        %4514 = vmatmul.bf16.gmra.mxu0 %v4414
        %v4515 = vpop.f32.mrf.mxu0
        %v4516 = vadd.f32 0.0, %v4515
        %v4517 = vpop.f32.mrf.mxu0
        %v4518 = vadd.f32 0.0, %v4517
        %4519 = vmatmul.bf16.gmra.mxu0 %v4415
        %v4520 = vpop.f32.mrf.mxu0
        %v4521 = vadd.f32 0.0, %v4520
        %v4522 = vpop.f32.mrf.mxu0
        %v4523 = vadd.f32 0.0, %v4522
        %4524 = vmatmul.bf16.gmra.mxu0 %v4416
        %v4525 = vpop.f32.mrf.mxu0
        %v4526 = vadd.f32 0.0, %v4525
        %v4527 = vpop.f32.mrf.mxu0
        %v4528 = vadd.f32 0.0, %v4527
        %4529 = vmatmul.bf16.gmra.mxu0 %v4417
        %v4530 = vpop.f32.mrf.mxu0
        %v4531 = vadd.f32 0.0, %v4530
        %v4532 = vpop.f32.mrf.mxu0
        %v4533 = vadd.f32 0.0, %v4532
        %4534 = vmatmul.bf16.gmra.mxu0 %v4418
        %v4535 = vpop.f32.mrf.mxu0
        %v4536 = vadd.f32 0.0, %v4535
        %v4537 = vpop.f32.mrf.mxu0
        %v4538 = vadd.f32 0.0, %v4537
        %4539 = vmatmul.bf16.gmra.mxu0 %v4419
        %v4540 = vpop.f32.mrf.mxu0
        %v4541 = vadd.f32 0.0, %v4540
        %v4542 = vpop.f32.mrf.mxu0
        %v4543 = vadd.f32 0.0, %v4542
        %4544 = vmatmul.bf16.gmra.mxu0 %v4420
        %v4545 = vpop.f32.mrf.mxu0
        %v4546 = vadd.f32 0.0, %v4545
        %v4547 = vpop.f32.mrf.mxu0
        %v4548 = vadd.f32 0.0, %v4547
        %4549 = vmatmul.bf16.gmra.mxu0 %v4421
        %v4550 = vpop.f32.mrf.mxu0
        %v4551 = vadd.f32 0.0, %v4550
        %v4552 = vpop.f32.mrf.mxu0
        %v4553 = vadd.f32 0.0, %v4552
        %4554 = vmatmul.bf16.gmra.mxu0 %v4422
        %v4555 = vpop.f32.mrf.mxu0
        %v4556 = vadd.f32 0.0, %v4555
        %v4557 = vpop.f32.mrf.mxu0
        %v4558 = vadd.f32 0.0, %v4557
        %4559 = vmatmul.bf16.gmra.mxu0 %v4423
        %v4560 = vpop.f32.mrf.mxu0
        %v4561 = vadd.f32 0.0, %v4560
        %v4562 = vpop.f32.mrf.mxu0
        %v4563 = vadd.f32 0.0, %v4562
        %4564 = vmatmul.bf16.gmra.mxu0 %v4424
        %v4565 = vpop.f32.mrf.mxu0
        %v4566 = vadd.f32 0.0, %v4565
        %v4567 = vpop.f32.mrf.mxu0
        %v4568 = vadd.f32 0.0, %v4567
        %4569 = vmatmul.bf16.gmra.mxu0 %v4425
        %v4570 = vpop.f32.mrf.mxu0
        %v4571 = vadd.f32 0.0, %v4570
        %v4572 = vpop.f32.mrf.mxu0
        %v4573 = vadd.f32 0.0, %v4572
        %4574 = vmatmul.bf16.gmra.mxu0 %v4426
        %v4575 = vpop.f32.mrf.mxu0
        %v4576 = vadd.f32 0.0, %v4575
        %v4577 = vpop.f32.mrf.mxu0
        %v4578 = vadd.f32 0.0, %v4577
        %4579 = vdwg.mxu0
        %v4724 = vunpack.c.l.b16 %v4104
        %v4725 = vunpack.c.l.b16 %v4105
        %v4726 = vunpack.c.l.b16 %v4106
        %v4727 = vunpack.c.l.b16 %v4107
        %v4728 = vunpack.c.l.b16 %v4108
        %v4729 = vunpack.c.l.b16 %v4109
        %v4730 = vunpack.c.l.b16 %v4110
        %v4731 = vunpack.c.l.b16 %v4111
        %v4732 = vunpack.c.l.b16 %v4112
        %v4733 = vunpack.c.l.b16 %v4113
        %v4734 = vunpack.c.l.b16 %v4114
        %v4735 = vunpack.c.l.b16 %v4115
        %v4736 = vunpack.c.l.b16 %v4116
        %v4737 = vunpack.c.l.b16 %v4117
        %v4738 = vunpack.c.l.b16 %v4118
        %v4739 = vunpack.c.l.b16 %v4119
        %v4740 = vunpack.c.l.b16 %v4120
        %v4741 = vunpack.c.l.b16 %v4121
        %v4742 = vunpack.c.l.b16 %v4122
        %v4743 = vunpack.c.l.b16 %v4123
        %v4744 = vunpack.c.l.b16 %v4124
        %v4745 = vunpack.c.l.b16 %v4125
        %v4746 = vunpack.c.l.b16 %v4126
        %v4747 = vunpack.c.l.b16 %v4127
        %v4748 = vunpack.c.l.b16 %v4128
        %v4749 = vunpack.c.l.b16 %v4129
        %v4750 = vunpack.c.l.b16 %v4130
        %v4751 = vunpack.c.l.b16 %v4131
        %v4752 = vunpack.c.l.b16 %v4132
        %v4753 = vunpack.c.l.b16 %v4133
        %v4754 = vunpack.c.l.b16 %v4134
        %v4755 = vunpack.c.l.b16 %v4135
        %v4756 = vunpack.c.l.b16 %v4136
        %v4757 = vunpack.c.l.b16 %v4137
        %v4758 = vunpack.c.l.b16 %v4138
        %v4759 = vunpack.c.l.b16 %v4139
        %v4760 = vunpack.c.l.b16 %v4140
        %v4761 = vunpack.c.l.b16 %v4141
        %v4762 = vunpack.c.l.b16 %v4142
        %v4763 = vunpack.c.l.b16 %v4143
        %v4764 = vunpack.c.l.b16 %v4144
        %v4765 = vunpack.c.l.b16 %v4145
        %v4766 = vunpack.c.l.b16 %v4146
        %v4767 = vunpack.c.l.b16 %v4147
        %v4768 = vunpack.c.l.b16 %v4148
        %v4769 = vunpack.c.l.b16 %v4149
        %v4770 = vunpack.c.l.b16 %v4150
        %v4771 = vunpack.c.l.b16 %v4151
        %v4772 = vunpack.c.l.b16 %v4152
        %v4773 = vunpack.c.l.b16 %v4153
        %v4774 = vunpack.c.l.b16 %v4154
        %v4775 = vunpack.c.l.b16 %v4155
        %v4776 = vunpack.c.l.b16 %v4156
        %v4777 = vunpack.c.l.b16 %v4157
        %v4778 = vunpack.c.l.b16 %v4158
        %v4779 = vunpack.c.l.b16 %v4159
        %v4780 = vunpack.c.l.b16 %v4160
        %v4781 = vunpack.c.l.b16 %v4161
        %v4782 = vunpack.c.l.b16 %v4162
        %v4783 = vunpack.c.l.b16 %v4163
        %v4784 = vunpack.c.l.b16 %v4164
        %v4785 = vunpack.c.l.b16 %v4165
        %v4786 = vunpack.c.l.b16 %v4166
        %v4787 = vunpack.c.l.b16 %v4167
        %v4788 = vunpack.c.l.b16 %v4168
        %v4789 = vunpack.c.l.b16 %v4169
        %v4790 = vunpack.c.l.b16 %v4170
        %v4791 = vunpack.c.l.b16 %v4171
        %v4792 = vunpack.c.l.b16 %v4172
        %v4793 = vunpack.c.l.b16 %v4173
        %v4794 = vunpack.c.l.b16 %v4174
        %v4795 = vunpack.c.l.b16 %v4175
        %v4796 = vunpack.c.l.b16 %v4176
        %v4797 = vunpack.c.l.b16 %v4177
        %v4798 = vunpack.c.l.b16 %v4178
        %v4799 = vunpack.c.l.b16 %v4179
        %v4800 = vunpack.c.l.b16 %v4180
        %v4801 = vunpack.c.l.b16 %v4181
        %v4802 = vunpack.c.l.b16 %v4182
        %v4803 = vunpack.c.l.b16 %v4183
        %v4804 = vunpack.c.l.b16 %v4184
        %v4805 = vunpack.c.l.b16 %v4185
        %v4806 = vunpack.c.l.b16 %v4186
        %v4807 = vunpack.c.l.b16 %v4187
        %v4808 = vunpack.c.l.b16 %v4188
        %v4809 = vunpack.c.l.b16 %v4189
        %v4810 = vunpack.c.l.b16 %v4190
        %v4811 = vunpack.c.l.b16 %v4191
        %v4812 = vunpack.c.l.b16 %v4192
        %v4813 = vunpack.c.l.b16 %v4193
        %v4814 = vunpack.c.l.b16 %v4194
        %v4815 = vunpack.c.l.b16 %v4195
        %v4816 = vunpack.c.l.b16 %v4196
        %v4817 = vunpack.c.l.b16 %v4197
        %v4818 = vunpack.c.l.b16 %v4198
        %v4819 = vunpack.c.l.b16 %v4199
        %v4820 = vunpack.c.l.b16 %v4200
        %v4821 = vunpack.c.l.b16 %v4201
        %v4822 = vunpack.c.l.b16 %v4202
        %v4823 = vunpack.c.l.b16 %v4203
        %v4824 = vunpack.c.l.b16 %v4204
        %v4825 = vunpack.c.l.b16 %v4205
        %v4826 = vunpack.c.l.b16 %v4206
        %v4827 = vunpack.c.l.b16 %v4207
        %v4828 = vunpack.c.l.b16 %v4208
        %v4829 = vunpack.c.l.b16 %v4209
        %v4830 = vunpack.c.l.b16 %v4210
        %v4831 = vunpack.c.l.b16 %v4211
        %v4832 = vunpack.c.l.b16 %v4212
        %v4833 = vunpack.c.l.b16 %v4213
        %v4834 = vunpack.c.l.b16 %v4214
        %v4835 = vunpack.c.l.b16 %v4215
        %v4836 = vunpack.c.l.b16 %v4216
        %v4837 = vunpack.c.l.b16 %v4217
        %v4838 = vunpack.c.l.b16 %v4218
        %v4839 = vunpack.c.l.b16 %v4219
        %v4840 = vunpack.c.l.b16 %v4220
        %v4841 = vunpack.c.l.b16 %v4221
        %v4842 = vunpack.c.l.b16 %v4222
        %v4843 = vunpack.c.l.b16 %v4223
        %v4844 = vunpack.c.l.b16 %v4224
        %v4845 = vunpack.c.l.b16 %v4225
        %v4846 = vunpack.c.l.b16 %v4226
        %v4847 = vunpack.c.l.b16 %v4227
        %v4848 = vunpack.c.l.b16 %v4228
        %v4849 = vunpack.c.l.b16 %v4229
        %v4850 = vunpack.c.l.b16 %v4230
        %v4851 = vunpack.c.l.b16 %v4231
        %v4852 = vunpack.c.l.b16 %v4232
        %v4853 = vunpack.c.l.b16 %v4233
        %v4854 = vunpack.c.l.b16 %v4234
        %v4855 = vunpack.c.l.b16 %v4235
        %v4856 = vunpack.c.l.b16 %v4236
        %v4857 = vunpack.c.l.b16 %v4237
        %v4858 = vunpack.c.l.b16 %v4238
        %v4859 = vunpack.c.l.b16 %v4239
        %v4860 = vunpack.c.l.b16 %v4240
        %v4861 = vunpack.c.l.b16 %v4241
        %v4862 = vunpack.c.l.b16 %v4242
        %v4863 = vunpack.c.l.b16 %v4243
        %v4864 = vunpack.c.l.b16 %v4244
        %v4865 = vunpack.c.l.b16 %v4245
        %v4866 = vunpack.c.l.b16 %v4246
        %v4867 = vunpack.c.l.b16 %v4247
        %v4868 = vpack.c.b16 %v4725, %v4724
        %v4869 = vpack.c.b16 %v4727, %v4726
        %v4870 = vpack.c.b16 %v4729, %v4728
        %v4871 = vpack.c.b16 %v4731, %v4730
        %v4872 = vpack.c.b16 %v4733, %v4732
        %v4873 = vpack.c.b16 %v4735, %v4734
        %v4874 = vpack.c.b16 %v4737, %v4736
        %v4875 = vpack.c.b16 %v4739, %v4738
        %v4876 = vpack.c.b16 %v4741, %v4740
        %v4877 = vpack.c.b16 %v4743, %v4742
        %v4878 = vpack.c.b16 %v4745, %v4744
        %v4879 = vpack.c.b16 %v4747, %v4746
        %v4880 = vpack.c.b16 %v4749, %v4748
        %v4881 = vpack.c.b16 %v4751, %v4750
        %v4882 = vpack.c.b16 %v4753, %v4752
        %v4883 = vpack.c.b16 %v4755, %v4754
        %v4884 = vpack.c.b16 %v4757, %v4756
        %v4885 = vpack.c.b16 %v4759, %v4758
        %v4886 = vpack.c.b16 %v4761, %v4760
        %v4887 = vpack.c.b16 %v4763, %v4762
        %v4888 = vpack.c.b16 %v4765, %v4764
        %v4889 = vpack.c.b16 %v4767, %v4766
        %v4890 = vpack.c.b16 %v4769, %v4768
        %v4891 = vpack.c.b16 %v4771, %v4770
        %v4892 = vpack.c.b16 %v4773, %v4772
        %v4893 = vpack.c.b16 %v4775, %v4774
        %v4894 = vpack.c.b16 %v4777, %v4776
        %v4895 = vpack.c.b16 %v4779, %v4778
        %v4896 = vpack.c.b16 %v4781, %v4780
        %v4897 = vpack.c.b16 %v4783, %v4782
        %v4898 = vpack.c.b16 %v4785, %v4784
        %v4899 = vpack.c.b16 %v4787, %v4786
        %v4900 = vpack.c.b16 %v4789, %v4788
        %v4901 = vpack.c.b16 %v4791, %v4790
        %v4902 = vpack.c.b16 %v4793, %v4792
        %v4903 = vpack.c.b16 %v4795, %v4794
        %v4904 = vpack.c.b16 %v4797, %v4796
        %v4905 = vpack.c.b16 %v4799, %v4798
        %v4906 = vpack.c.b16 %v4801, %v4800
        %v4907 = vpack.c.b16 %v4803, %v4802
        %v4908 = vpack.c.b16 %v4805, %v4804
        %v4909 = vpack.c.b16 %v4807, %v4806
        %v4910 = vpack.c.b16 %v4809, %v4808
        %v4911 = vpack.c.b16 %v4811, %v4810
        %v4912 = vpack.c.b16 %v4813, %v4812
        %v4913 = vpack.c.b16 %v4815, %v4814
        %v4914 = vpack.c.b16 %v4817, %v4816
        %v4915 = vpack.c.b16 %v4819, %v4818
        %v4916 = vpack.c.b16 %v4821, %v4820
        %v4917 = vpack.c.b16 %v4823, %v4822
        %v4918 = vpack.c.b16 %v4825, %v4824
        %v4919 = vpack.c.b16 %v4827, %v4826
        %v4920 = vpack.c.b16 %v4829, %v4828
        %v4921 = vpack.c.b16 %v4831, %v4830
        %v4922 = vpack.c.b16 %v4833, %v4832
        %v4923 = vpack.c.b16 %v4835, %v4834
        %v4924 = vpack.c.b16 %v4837, %v4836
        %v4925 = vpack.c.b16 %v4839, %v4838
        %v4926 = vpack.c.b16 %v4841, %v4840
        %v4927 = vpack.c.b16 %v4843, %v4842
        %v4928 = vpack.c.b16 %v4845, %v4844
        %v4929 = vpack.c.b16 %v4847, %v4846
        %v4930 = vpack.c.b16 %v4849, %v4848
        %v4931 = vpack.c.b16 %v4851, %v4850
        %v4932 = vpack.c.b16 %v4853, %v4852
        %v4933 = vpack.c.b16 %v4855, %v4854
        %v4934 = vpack.c.b16 %v4857, %v4856
        %v4935 = vpack.c.b16 %v4859, %v4858
        %v4936 = vpack.c.b16 %v4861, %v4860
        %v4937 = vpack.c.b16 %v4863, %v4862
        %v4938 = vpack.c.b16 %v4865, %v4864
        %v4939 = vpack.c.b16 %v4867, %v4866
        %5012 = vmatpush.bf16.msra.mxu0 %v4875
        %5013 = vmatpush.bf16.msra.mxu0 %v4874
        %5014 = vmatpush.bf16.msra.mxu0 %v4873
        %5015 = vmatpush.bf16.msra.mxu0 %v4872
        %5016 = vmatpush.bf16.msra.mxu0 %v4871
        %5017 = vmatpush.bf16.msra.mxu0 %v4870
        %5018 = vmatpush.bf16.msra.mxu0 %v4869
        %5019 = vmatpush.bf16.msra.mxu0 %v4868
        %5020 = vmatmul.bf16.gmra.mxu0 %v3700
        %v5021 = vpop.f32.mrf.mxu0
        %v5022 = vadd.f32 %v4501, %v5021
        %v5023 = vpop.f32.mrf.mxu0
        %v5024 = vadd.f32 %v4503, %v5023
        %5025 = vmatmul.bf16.gmra.mxu0 %v3701
        %v5026 = vpop.f32.mrf.mxu0
        %v5027 = vadd.f32 %v4506, %v5026
        %v5028 = vpop.f32.mrf.mxu0
        %v5029 = vadd.f32 %v4508, %v5028
        %5030 = vmatmul.bf16.gmra.mxu0 %v3702
        %v5031 = vpop.f32.mrf.mxu0
        %v5032 = vadd.f32 %v4511, %v5031
        %v5033 = vpop.f32.mrf.mxu0
        %v5034 = vadd.f32 %v4513, %v5033
        %5035 = vmatmul.bf16.gmra.mxu0 %v3703
        %v5036 = vpop.f32.mrf.mxu0
        %v5037 = vadd.f32 %v4516, %v5036
        %v5038 = vpop.f32.mrf.mxu0
        %v5039 = vadd.f32 %v4518, %v5038
        %5040 = vmatmul.bf16.gmra.mxu0 %v3704
        %v5041 = vpop.f32.mrf.mxu0
        %v5042 = vadd.f32 %v4521, %v5041
        %v5043 = vpop.f32.mrf.mxu0
        %v5044 = vadd.f32 %v4523, %v5043
        %5045 = vmatmul.bf16.gmra.mxu0 %v3705
        %v5046 = vpop.f32.mrf.mxu0
        %v5047 = vadd.f32 %v4526, %v5046
        %v5048 = vpop.f32.mrf.mxu0
        %v5049 = vadd.f32 %v4528, %v5048
        %5050 = vmatmul.bf16.gmra.mxu0 %v3706
        %v5051 = vpop.f32.mrf.mxu0
        %v5052 = vadd.f32 %v4531, %v5051
        %v5053 = vpop.f32.mrf.mxu0
        %v5054 = vadd.f32 %v4533, %v5053
        %5055 = vmatmul.bf16.gmra.mxu0 %v3707
        %v5056 = vpop.f32.mrf.mxu0
        %v5057 = vadd.f32 %v4536, %v5056
        %v5058 = vpop.f32.mrf.mxu0
        %v5059 = vadd.f32 %v4538, %v5058
        %5060 = vmatmul.bf16.gmra.mxu0 %v3708
        %v5061 = vpop.f32.mrf.mxu0
        %v5062 = vadd.f32 %v4541, %v5061
        %v5063 = vpop.f32.mrf.mxu0
        %v5064 = vadd.f32 %v4543, %v5063
        %5065 = vmatmul.bf16.gmra.mxu0 %v3709
        %v5066 = vpop.f32.mrf.mxu0
        %v5067 = vadd.f32 %v4546, %v5066
        %v5068 = vpop.f32.mrf.mxu0
        %v5069 = vadd.f32 %v4548, %v5068
        %5070 = vmatmul.bf16.gmra.mxu0 %v3710
        %v5071 = vpop.f32.mrf.mxu0
        %v5072 = vadd.f32 %v4551, %v5071
        %v5073 = vpop.f32.mrf.mxu0
        %v5074 = vadd.f32 %v4553, %v5073
        %5075 = vmatmul.bf16.gmra.mxu0 %v3711
        %v5076 = vpop.f32.mrf.mxu0
        %v5077 = vadd.f32 %v4556, %v5076
        %v5078 = vpop.f32.mrf.mxu0
        %v5079 = vadd.f32 %v4558, %v5078
        %5080 = vmatmul.bf16.gmra.mxu0 %v3712
        %v5081 = vpop.f32.mrf.mxu0
        %v5082 = vadd.f32 %v4561, %v5081
        %v5083 = vpop.f32.mrf.mxu0
        %v5084 = vadd.f32 %v4563, %v5083
        %5085 = vmatmul.bf16.gmra.mxu0 %v3713
        %v5086 = vpop.f32.mrf.mxu0
        %v5087 = vadd.f32 %v4566, %v5086
        %v5088 = vpop.f32.mrf.mxu0
        %v5089 = vadd.f32 %v4568, %v5088
        %5090 = vmatmul.bf16.gmra.mxu0 %v3714
        %v5091 = vpop.f32.mrf.mxu0
        %v5092 = vadd.f32 %v4571, %v5091
        %v5093 = vpop.f32.mrf.mxu0
        %v5094 = vadd.f32 %v4573, %v5093
        %5095 = vmatmul.bf16.gmra.mxu0 %v3715
        %v5096 = vpop.f32.mrf.mxu0
        %v5097 = vadd.f32 %v4576, %v5096
        %v5098 = vpop.f32.mrf.mxu0
        %v5099 = vadd.f32 %v4578, %v5098
        %5100 = vdwg.mxu0
        %5101 = vmatpush.bf16.msra.mxu0 %v4883
        %5102 = vmatpush.bf16.msra.mxu0 %v4882
        %5103 = vmatpush.bf16.msra.mxu0 %v4881
        %5104 = vmatpush.bf16.msra.mxu0 %v4880
        %5105 = vmatpush.bf16.msra.mxu0 %v4879
        %5106 = vmatpush.bf16.msra.mxu0 %v4878
        %5107 = vmatpush.bf16.msra.mxu0 %v4877
        %5108 = vmatpush.bf16.msra.mxu0 %v4876
        %5109 = vmatmul.bf16.gmra.mxu0 %v3791
        %v5110 = vpop.f32.mrf.mxu0
        %v5111 = vadd.f32 %v5022, %v5110
        %v5112 = vpop.f32.mrf.mxu0
        %v5113 = vadd.f32 %v5024, %v5112
        %5114 = vmatmul.bf16.gmra.mxu0 %v3803
        %v5115 = vpop.f32.mrf.mxu0
        %v5116 = vadd.f32 %v5027, %v5115
        %v5117 = vpop.f32.mrf.mxu0
        %v5118 = vadd.f32 %v5029, %v5117
        %5119 = vmatmul.bf16.gmra.mxu0 %v3815
        %v5120 = vpop.f32.mrf.mxu0
        %v5121 = vadd.f32 %v5032, %v5120
        %v5122 = vpop.f32.mrf.mxu0
        %v5123 = vadd.f32 %v5034, %v5122
        %5124 = vmatmul.bf16.gmra.mxu0 %v3827
        %v5125 = vpop.f32.mrf.mxu0
        %v5126 = vadd.f32 %v5037, %v5125
        %v5127 = vpop.f32.mrf.mxu0
        %v5128 = vadd.f32 %v5039, %v5127
        %5129 = vmatmul.bf16.gmra.mxu0 %v3839
        %v5130 = vpop.f32.mrf.mxu0
        %v5131 = vadd.f32 %v5042, %v5130
        %v5132 = vpop.f32.mrf.mxu0
        %v5133 = vadd.f32 %v5044, %v5132
        %5134 = vmatmul.bf16.gmra.mxu0 %v3851
        %v5135 = vpop.f32.mrf.mxu0
        %v5136 = vadd.f32 %v5047, %v5135
        %v5137 = vpop.f32.mrf.mxu0
        %v5138 = vadd.f32 %v5049, %v5137
        %5139 = vmatmul.bf16.gmra.mxu0 %v3863
        %v5140 = vpop.f32.mrf.mxu0
        %v5141 = vadd.f32 %v5052, %v5140
        %v5142 = vpop.f32.mrf.mxu0
        %v5143 = vadd.f32 %v5054, %v5142
        %5144 = vmatmul.bf16.gmra.mxu0 %v3875
        %v5145 = vpop.f32.mrf.mxu0
        %v5146 = vadd.f32 %v5057, %v5145
        %v5147 = vpop.f32.mrf.mxu0
        %v5148 = vadd.f32 %v5059, %v5147
        %5149 = vmatmul.bf16.gmra.mxu0 %v3887
        %v5150 = vpop.f32.mrf.mxu0
        %v5151 = vadd.f32 %v5062, %v5150
        %v5152 = vpop.f32.mrf.mxu0
        %v5153 = vadd.f32 %v5064, %v5152
        %5154 = vmatmul.bf16.gmra.mxu0 %v3899
        %v5155 = vpop.f32.mrf.mxu0
        %v5156 = vadd.f32 %v5067, %v5155
        %v5157 = vpop.f32.mrf.mxu0
        %v5158 = vadd.f32 %v5069, %v5157
        %5159 = vmatmul.bf16.gmra.mxu0 %v3911
        %v5160 = vpop.f32.mrf.mxu0
        %v5161 = vadd.f32 %v5072, %v5160
        %v5162 = vpop.f32.mrf.mxu0
        %v5163 = vadd.f32 %v5074, %v5162
        %5164 = vmatmul.bf16.gmra.mxu0 %v3923
        %v5165 = vpop.f32.mrf.mxu0
        %v5166 = vadd.f32 %v5077, %v5165
        %v5167 = vpop.f32.mrf.mxu0
        %v5168 = vadd.f32 %v5079, %v5167
        %5169 = vmatmul.bf16.gmra.mxu0 %v3935
        %v5170 = vpop.f32.mrf.mxu0
        %v5171 = vadd.f32 %v5082, %v5170
        %v5172 = vpop.f32.mrf.mxu0
        %v5173 = vadd.f32 %v5084, %v5172
        %5174 = vmatmul.bf16.gmra.mxu0 %v3947
        %v5175 = vpop.f32.mrf.mxu0
        %v5176 = vadd.f32 %v5087, %v5175
        %v5177 = vpop.f32.mrf.mxu0
        %v5178 = vadd.f32 %v5089, %v5177
        %5179 = vmatmul.bf16.gmra.mxu0 %v3959
        %v5180 = vpop.f32.mrf.mxu0
        %v5181 = vadd.f32 %v5092, %v5180
        %v5182 = vpop.f32.mrf.mxu0
        %v5183 = vadd.f32 %v5094, %v5182
        %5184 = vmatmul.bf16.gmra.mxu0 %v3971
        %v5185 = vpop.f32.mrf.mxu0
        %v5186 = vadd.f32 %v5097, %v5185
        %v5187 = vpop.f32.mrf.mxu0
        %v5188 = vadd.f32 %v5099, %v5187
        %5189 = vdwg.mxu0
        %5190 = vmatpush.bf16.msra.mxu0 %v4891
        %5191 = vmatpush.bf16.msra.mxu0 %v4890
        %5192 = vmatpush.bf16.msra.mxu0 %v4889
        %5193 = vmatpush.bf16.msra.mxu0 %v4888
        %5194 = vmatpush.bf16.msra.mxu0 %v4887
        %5195 = vmatpush.bf16.msra.mxu0 %v4886
        %5196 = vmatpush.bf16.msra.mxu0 %v4885
        %5197 = vmatpush.bf16.msra.mxu0 %v4884
        %5198 = vmatmul.bf16.gmra.mxu0 %v3990
        %v5199 = vpop.f32.mrf.mxu0
        %v5200 = vadd.f32 %v5111, %v5199
        %v5201 = vpop.f32.mrf.mxu0
        %v5202 = vadd.f32 %v5113, %v5201
        %5203 = vmatmul.bf16.gmra.mxu0 %v3993
        %v5204 = vpop.f32.mrf.mxu0
        %v5205 = vadd.f32 %v5116, %v5204
        %v5206 = vpop.f32.mrf.mxu0
        %v5207 = vadd.f32 %v5118, %v5206
        %5208 = vmatmul.bf16.gmra.mxu0 %v3996
        %v5209 = vpop.f32.mrf.mxu0
        %v5210 = vadd.f32 %v5121, %v5209
        %v5211 = vpop.f32.mrf.mxu0
        %v5212 = vadd.f32 %v5123, %v5211
        %5213 = vmatmul.bf16.gmra.mxu0 %v3999
        %v5214 = vpop.f32.mrf.mxu0
        %v5215 = vadd.f32 %v5126, %v5214
        %v5216 = vpop.f32.mrf.mxu0
        %v5217 = vadd.f32 %v5128, %v5216
        %5218 = vmatmul.bf16.gmra.mxu0 %v4002
        %v5219 = vpop.f32.mrf.mxu0
        %v5220 = vadd.f32 %v5131, %v5219
        %v5221 = vpop.f32.mrf.mxu0
        %v5222 = vadd.f32 %v5133, %v5221
        %5223 = vmatmul.bf16.gmra.mxu0 %v4005
        %v5224 = vpop.f32.mrf.mxu0
        %v5225 = vadd.f32 %v5136, %v5224
        %v5226 = vpop.f32.mrf.mxu0
        %v5227 = vadd.f32 %v5138, %v5226
        %5228 = vmatmul.bf16.gmra.mxu0 %v4008
        %v5229 = vpop.f32.mrf.mxu0
        %v5230 = vadd.f32 %v5141, %v5229
        %v5231 = vpop.f32.mrf.mxu0
        %v5232 = vadd.f32 %v5143, %v5231
        %5233 = vmatmul.bf16.gmra.mxu0 %v4011
        %v5234 = vpop.f32.mrf.mxu0
        %v5235 = vadd.f32 %v5146, %v5234
        %v5236 = vpop.f32.mrf.mxu0
        %v5237 = vadd.f32 %v5148, %v5236
        %5238 = vmatmul.bf16.gmra.mxu0 %v4014
        %v5239 = vpop.f32.mrf.mxu0
        %v5240 = vadd.f32 %v5151, %v5239
        %v5241 = vpop.f32.mrf.mxu0
        %v5242 = vadd.f32 %v5153, %v5241
        %5243 = vmatmul.bf16.gmra.mxu0 %v4017
        %v5244 = vpop.f32.mrf.mxu0
        %v5245 = vadd.f32 %v5156, %v5244
        %v5246 = vpop.f32.mrf.mxu0
        %v5247 = vadd.f32 %v5158, %v5246
        %5248 = vmatmul.bf16.gmra.mxu0 %v4020
        %v5249 = vpop.f32.mrf.mxu0
        %v5250 = vadd.f32 %v5161, %v5249
        %v5251 = vpop.f32.mrf.mxu0
        %v5252 = vadd.f32 %v5163, %v5251
        %5253 = vmatmul.bf16.gmra.mxu0 %v4023
        %v5254 = vpop.f32.mrf.mxu0
        %v5255 = vadd.f32 %v5166, %v5254
        %v5256 = vpop.f32.mrf.mxu0
        %v5257 = vadd.f32 %v5168, %v5256
        %5258 = vmatmul.bf16.gmra.mxu0 %v4026
        %v5259 = vpop.f32.mrf.mxu0
        %v5260 = vadd.f32 %v5171, %v5259
        %v5261 = vpop.f32.mrf.mxu0
        %v5262 = vadd.f32 %v5173, %v5261
        %5263 = vmatmul.bf16.gmra.mxu0 %v4029
        %v5264 = vpop.f32.mrf.mxu0
        %v5265 = vadd.f32 %v5176, %v5264
        %v5266 = vpop.f32.mrf.mxu0
        %v5267 = vadd.f32 %v5178, %v5266
        %5268 = vmatmul.bf16.gmra.mxu0 %v4032
        %v5269 = vpop.f32.mrf.mxu0
        %v5270 = vadd.f32 %v5181, %v5269
        %v5271 = vpop.f32.mrf.mxu0
        %v5272 = vadd.f32 %v5183, %v5271
        %5273 = vmatmul.bf16.gmra.mxu0 %v4035
        %v5274 = vpop.f32.mrf.mxu0
        %v5275 = vadd.f32 %v5186, %v5274
        %v5276 = vpop.f32.mrf.mxu0
        %v5277 = vadd.f32 %v5188, %v5276
        %5278 = vdwg.mxu0
        %5279 = vmatpush.bf16.msra.mxu0 %v4899
        %5280 = vmatpush.bf16.msra.mxu0 %v4898
        %5281 = vmatpush.bf16.msra.mxu0 %v4897
        %5282 = vmatpush.bf16.msra.mxu0 %v4896
        %5283 = vmatpush.bf16.msra.mxu0 %v4895
        %5284 = vmatpush.bf16.msra.mxu0 %v4894
        %5285 = vmatpush.bf16.msra.mxu0 %v4893
        %5286 = vmatpush.bf16.msra.mxu0 %v4892
        %5287 = vmatmul.bf16.gmra.mxu0 %v3701
        %v5288 = vpop.f32.mrf.mxu0
        %v5289 = vadd.f32 %v5200, %v5288
        %v5290 = vpop.f32.mrf.mxu0
        %v5291 = vadd.f32 %v5202, %v5290
        %5292 = vmatmul.bf16.gmra.mxu0 %v3702
        %v5293 = vpop.f32.mrf.mxu0
        %v5294 = vadd.f32 %v5205, %v5293
        %v5295 = vpop.f32.mrf.mxu0
        %v5296 = vadd.f32 %v5207, %v5295
        %5297 = vmatmul.bf16.gmra.mxu0 %v3703
        %v5298 = vpop.f32.mrf.mxu0
        %v5299 = vadd.f32 %v5210, %v5298
        %v5300 = vpop.f32.mrf.mxu0
        %v5301 = vadd.f32 %v5212, %v5300
        %5302 = vmatmul.bf16.gmra.mxu0 %v3704
        %v5303 = vpop.f32.mrf.mxu0
        %v5304 = vadd.f32 %v5215, %v5303
        %v5305 = vpop.f32.mrf.mxu0
        %v5306 = vadd.f32 %v5217, %v5305
        %5307 = vmatmul.bf16.gmra.mxu0 %v3705
        %v5308 = vpop.f32.mrf.mxu0
        %v5309 = vadd.f32 %v5220, %v5308
        %v5310 = vpop.f32.mrf.mxu0
        %v5311 = vadd.f32 %v5222, %v5310
        %5312 = vmatmul.bf16.gmra.mxu0 %v3706
        %v5313 = vpop.f32.mrf.mxu0
        %v5314 = vadd.f32 %v5225, %v5313
        %v5315 = vpop.f32.mrf.mxu0
        %v5316 = vadd.f32 %v5227, %v5315
        %5317 = vmatmul.bf16.gmra.mxu0 %v3707
        %v5318 = vpop.f32.mrf.mxu0
        %v5319 = vadd.f32 %v5230, %v5318
        %v5320 = vpop.f32.mrf.mxu0
        %v5321 = vadd.f32 %v5232, %v5320
        %5322 = vmatmul.bf16.gmra.mxu0 %v3708
        %v5323 = vpop.f32.mrf.mxu0
        %v5324 = vadd.f32 %v5235, %v5323
        %v5325 = vpop.f32.mrf.mxu0
        %v5326 = vadd.f32 %v5237, %v5325
        %5327 = vmatmul.bf16.gmra.mxu0 %v3709
        %v5328 = vpop.f32.mrf.mxu0
        %v5329 = vadd.f32 %v5240, %v5328
        %v5330 = vpop.f32.mrf.mxu0
        %v5331 = vadd.f32 %v5242, %v5330
        %5332 = vmatmul.bf16.gmra.mxu0 %v3710
        %v5333 = vpop.f32.mrf.mxu0
        %v5334 = vadd.f32 %v5245, %v5333
        %v5335 = vpop.f32.mrf.mxu0
        %v5336 = vadd.f32 %v5247, %v5335
        %5337 = vmatmul.bf16.gmra.mxu0 %v3711
        %v5338 = vpop.f32.mrf.mxu0
        %v5339 = vadd.f32 %v5250, %v5338
        %v5340 = vpop.f32.mrf.mxu0
        %v5341 = vadd.f32 %v5252, %v5340
        %5342 = vmatmul.bf16.gmra.mxu0 %v3712
        %v5343 = vpop.f32.mrf.mxu0
        %v5344 = vadd.f32 %v5255, %v5343
        %v5345 = vpop.f32.mrf.mxu0
        %v5346 = vadd.f32 %v5257, %v5345
        %5347 = vmatmul.bf16.gmra.mxu0 %v3713
        %v5348 = vpop.f32.mrf.mxu0
        %v5349 = vadd.f32 %v5260, %v5348
        %v5350 = vpop.f32.mrf.mxu0
        %v5351 = vadd.f32 %v5262, %v5350
        %5352 = vmatmul.bf16.gmra.mxu0 %v3714
        %v5353 = vpop.f32.mrf.mxu0
        %v5354 = vadd.f32 %v5265, %v5353
        %v5355 = vpop.f32.mrf.mxu0
        %v5356 = vadd.f32 %v5267, %v5355
        %5357 = vmatmul.bf16.gmra.mxu0 %v3715
        %v5358 = vpop.f32.mrf.mxu0
        %v5359 = vadd.f32 %v5270, %v5358
        %v5360 = vpop.f32.mrf.mxu0
        %v5361 = vadd.f32 %v5272, %v5360
        %5362 = vmatmul.bf16.gmra.mxu0 %v4056
        %v5363 = vpop.f32.mrf.mxu0
        %v5364 = vadd.f32 %v5275, %v5363
        %v5365 = vpop.f32.mrf.mxu0
        %v5366 = vadd.f32 %v5277, %v5365
        %5367 = vdwg.mxu0
        %5368 = vmatpush.bf16.msra.mxu0 %v4907
        %5369 = vmatpush.bf16.msra.mxu0 %v4906
        %5370 = vmatpush.bf16.msra.mxu0 %v4905
        %5371 = vmatpush.bf16.msra.mxu0 %v4904
        %5372 = vmatpush.bf16.msra.mxu0 %v4903
        %5373 = vmatpush.bf16.msra.mxu0 %v4902
        %5374 = vmatpush.bf16.msra.mxu0 %v4901
        %5375 = vmatpush.bf16.msra.mxu0 %v4900
        %5376 = vmatmul.bf16.gmra.mxu0 %v3803
        %v5377 = vpop.f32.mrf.mxu0
        %v5378 = vadd.f32 %v5289, %v5377
        %v5379 = vpop.f32.mrf.mxu0
        %v5380 = vadd.f32 %v5291, %v5379
        %5381 = vmatmul.bf16.gmra.mxu0 %v3815
        %v5382 = vpop.f32.mrf.mxu0
        %v5383 = vadd.f32 %v5294, %v5382
        %v5384 = vpop.f32.mrf.mxu0
        %v5385 = vadd.f32 %v5296, %v5384
        %5386 = vmatmul.bf16.gmra.mxu0 %v3827
        %v5387 = vpop.f32.mrf.mxu0
        %v5388 = vadd.f32 %v5299, %v5387
        %v5389 = vpop.f32.mrf.mxu0
        %v5390 = vadd.f32 %v5301, %v5389
        %5391 = vmatmul.bf16.gmra.mxu0 %v3839
        %v5392 = vpop.f32.mrf.mxu0
        %v5393 = vadd.f32 %v5304, %v5392
        %v5394 = vpop.f32.mrf.mxu0
        %v5395 = vadd.f32 %v5306, %v5394
        %5396 = vmatmul.bf16.gmra.mxu0 %v3851
        %v5397 = vpop.f32.mrf.mxu0
        %v5398 = vadd.f32 %v5309, %v5397
        %v5399 = vpop.f32.mrf.mxu0
        %v5400 = vadd.f32 %v5311, %v5399
        %5401 = vmatmul.bf16.gmra.mxu0 %v3863
        %v5402 = vpop.f32.mrf.mxu0
        %v5403 = vadd.f32 %v5314, %v5402
        %v5404 = vpop.f32.mrf.mxu0
        %v5405 = vadd.f32 %v5316, %v5404
        %5406 = vmatmul.bf16.gmra.mxu0 %v3875
        %v5407 = vpop.f32.mrf.mxu0
        %v5408 = vadd.f32 %v5319, %v5407
        %v5409 = vpop.f32.mrf.mxu0
        %v5410 = vadd.f32 %v5321, %v5409
        %5411 = vmatmul.bf16.gmra.mxu0 %v3887
        %v5412 = vpop.f32.mrf.mxu0
        %v5413 = vadd.f32 %v5324, %v5412
        %v5414 = vpop.f32.mrf.mxu0
        %v5415 = vadd.f32 %v5326, %v5414
        %5416 = vmatmul.bf16.gmra.mxu0 %v3899
        %v5417 = vpop.f32.mrf.mxu0
        %v5418 = vadd.f32 %v5329, %v5417
        %v5419 = vpop.f32.mrf.mxu0
        %v5420 = vadd.f32 %v5331, %v5419
        %5421 = vmatmul.bf16.gmra.mxu0 %v3911
        %v5422 = vpop.f32.mrf.mxu0
        %v5423 = vadd.f32 %v5334, %v5422
        %v5424 = vpop.f32.mrf.mxu0
        %v5425 = vadd.f32 %v5336, %v5424
        %5426 = vmatmul.bf16.gmra.mxu0 %v3923
        %v5427 = vpop.f32.mrf.mxu0
        %v5428 = vadd.f32 %v5339, %v5427
        %v5429 = vpop.f32.mrf.mxu0
        %v5430 = vadd.f32 %v5341, %v5429
        %5431 = vmatmul.bf16.gmra.mxu0 %v3935
        %v5432 = vpop.f32.mrf.mxu0
        %v5433 = vadd.f32 %v5344, %v5432
        %v5434 = vpop.f32.mrf.mxu0
        %v5435 = vadd.f32 %v5346, %v5434
        %5436 = vmatmul.bf16.gmra.mxu0 %v3947
        %v5437 = vpop.f32.mrf.mxu0
        %v5438 = vadd.f32 %v5349, %v5437
        %v5439 = vpop.f32.mrf.mxu0
        %v5440 = vadd.f32 %v5351, %v5439
        %5441 = vmatmul.bf16.gmra.mxu0 %v3959
        %v5442 = vpop.f32.mrf.mxu0
        %v5443 = vadd.f32 %v5354, %v5442
        %v5444 = vpop.f32.mrf.mxu0
        %v5445 = vadd.f32 %v5356, %v5444
        %5446 = vmatmul.bf16.gmra.mxu0 %v3971
        %v5447 = vpop.f32.mrf.mxu0
        %v5448 = vadd.f32 %v5359, %v5447
        %v5449 = vpop.f32.mrf.mxu0
        %v5450 = vadd.f32 %v5361, %v5449
        %5451 = vmatmul.bf16.gmra.mxu0 %v4072
        %v5452 = vpop.f32.mrf.mxu0
        %v5453 = vadd.f32 %v5364, %v5452
        %v5454 = vpop.f32.mrf.mxu0
        %v5455 = vadd.f32 %v5366, %v5454
        %5456 = vdwg.mxu0
        %5457 = vmatpush.bf16.msra.mxu0 %v4915
        %5458 = vmatpush.bf16.msra.mxu0 %v4914
        %5459 = vmatpush.bf16.msra.mxu0 %v4913
        %5460 = vmatpush.bf16.msra.mxu0 %v4912
        %5461 = vmatpush.bf16.msra.mxu0 %v4911
        %5462 = vmatpush.bf16.msra.mxu0 %v4910
        %5463 = vmatpush.bf16.msra.mxu0 %v4909
        %5464 = vmatpush.bf16.msra.mxu0 %v4908
        %5465 = vmatmul.bf16.gmra.mxu0 %v3993
        %v5466 = vpop.f32.mrf.mxu0
        %v5467 = vadd.f32 %v5378, %v5466
        %v5468 = vpop.f32.mrf.mxu0
        %v5469 = vadd.f32 %v5380, %v5468
        %5470 = vmatmul.bf16.gmra.mxu0 %v3996
        %v5471 = vpop.f32.mrf.mxu0
        %v5472 = vadd.f32 %v5383, %v5471
        %v5473 = vpop.f32.mrf.mxu0
        %v5474 = vadd.f32 %v5385, %v5473
        %5475 = vmatmul.bf16.gmra.mxu0 %v3999
        %v5476 = vpop.f32.mrf.mxu0
        %v5477 = vadd.f32 %v5388, %v5476
        %v5478 = vpop.f32.mrf.mxu0
        %v5479 = vadd.f32 %v5390, %v5478
        %5480 = vmatmul.bf16.gmra.mxu0 %v4002
        %v5481 = vpop.f32.mrf.mxu0
        %v5482 = vadd.f32 %v5393, %v5481
        %v5483 = vpop.f32.mrf.mxu0
        %v5484 = vadd.f32 %v5395, %v5483
        %5485 = vmatmul.bf16.gmra.mxu0 %v4005
        %v5486 = vpop.f32.mrf.mxu0
        %v5487 = vadd.f32 %v5398, %v5486
        %v5488 = vpop.f32.mrf.mxu0
        %v5489 = vadd.f32 %v5400, %v5488
        %5490 = vmatmul.bf16.gmra.mxu0 %v4008
        %v5491 = vpop.f32.mrf.mxu0
        %v5492 = vadd.f32 %v5403, %v5491
        %v5493 = vpop.f32.mrf.mxu0
        %v5494 = vadd.f32 %v5405, %v5493
        %5495 = vmatmul.bf16.gmra.mxu0 %v4011
        %v5496 = vpop.f32.mrf.mxu0
        %v5497 = vadd.f32 %v5408, %v5496
        %v5498 = vpop.f32.mrf.mxu0
        %v5499 = vadd.f32 %v5410, %v5498
        %5500 = vmatmul.bf16.gmra.mxu0 %v4014
        %v5501 = vpop.f32.mrf.mxu0
        %v5502 = vadd.f32 %v5413, %v5501
        %v5503 = vpop.f32.mrf.mxu0
        %v5504 = vadd.f32 %v5415, %v5503
        %5505 = vmatmul.bf16.gmra.mxu0 %v4017
        %v5506 = vpop.f32.mrf.mxu0
        %v5507 = vadd.f32 %v5418, %v5506
        %v5508 = vpop.f32.mrf.mxu0
        %v5509 = vadd.f32 %v5420, %v5508
        %5510 = vmatmul.bf16.gmra.mxu0 %v4020
        %v5511 = vpop.f32.mrf.mxu0
        %v5512 = vadd.f32 %v5423, %v5511
        %v5513 = vpop.f32.mrf.mxu0
        %v5514 = vadd.f32 %v5425, %v5513
        %5515 = vmatmul.bf16.gmra.mxu0 %v4023
        %v5516 = vpop.f32.mrf.mxu0
        %v5517 = vadd.f32 %v5428, %v5516
        %v5518 = vpop.f32.mrf.mxu0
        %v5519 = vadd.f32 %v5430, %v5518
        %5520 = vmatmul.bf16.gmra.mxu0 %v4026
        %v5521 = vpop.f32.mrf.mxu0
        %v5522 = vadd.f32 %v5433, %v5521
        %v5523 = vpop.f32.mrf.mxu0
        %v5524 = vadd.f32 %v5435, %v5523
        %5525 = vmatmul.bf16.gmra.mxu0 %v4029
        %v5526 = vpop.f32.mrf.mxu0
        %v5527 = vadd.f32 %v5438, %v5526
        %v5528 = vpop.f32.mrf.mxu0
        %v5529 = vadd.f32 %v5440, %v5528
        %5530 = vmatmul.bf16.gmra.mxu0 %v4032
        %v5531 = vpop.f32.mrf.mxu0
        %v5532 = vadd.f32 %v5443, %v5531
        %v5533 = vpop.f32.mrf.mxu0
        %v5534 = vadd.f32 %v5445, %v5533
        %5535 = vmatmul.bf16.gmra.mxu0 %v4035
        %v5536 = vpop.f32.mrf.mxu0
        %v5537 = vadd.f32 %v5448, %v5536
        %v5538 = vpop.f32.mrf.mxu0
        %v5539 = vadd.f32 %v5450, %v5538
        %5540 = vmatmul.bf16.gmra.mxu0 %v4076
        %v5541 = vpop.f32.mrf.mxu0
        %v5542 = vadd.f32 %v5453, %v5541
        %v5543 = vpop.f32.mrf.mxu0
        %v5544 = vadd.f32 %v5455, %v5543
        %5545 = vdwg.mxu0
        %5546 = vmatpush.bf16.msra.mxu0 %v4923
        %5547 = vmatpush.bf16.msra.mxu0 %v4922
        %5548 = vmatpush.bf16.msra.mxu0 %v4921
        %5549 = vmatpush.bf16.msra.mxu0 %v4920
        %5550 = vmatpush.bf16.msra.mxu0 %v4919
        %5551 = vmatpush.bf16.msra.mxu0 %v4918
        %5552 = vmatpush.bf16.msra.mxu0 %v4917
        %5553 = vmatpush.bf16.msra.mxu0 %v4916
        %5554 = vmatmul.bf16.gmra.mxu0 %v3702
        %v5555 = vpop.f32.mrf.mxu0
        %v5556 = vadd.f32 %v5467, %v5555
        %v5557 = vpop.f32.mrf.mxu0
        %v5558 = vadd.f32 %v5469, %v5557
        %5559 = vmatmul.bf16.gmra.mxu0 %v3703
        %v5560 = vpop.f32.mrf.mxu0
        %v5561 = vadd.f32 %v5472, %v5560
        %v5562 = vpop.f32.mrf.mxu0
        %v5563 = vadd.f32 %v5474, %v5562
        %5564 = vmatmul.bf16.gmra.mxu0 %v3704
        %v5565 = vpop.f32.mrf.mxu0
        %v5566 = vadd.f32 %v5477, %v5565
        %v5567 = vpop.f32.mrf.mxu0
        %v5568 = vadd.f32 %v5479, %v5567
        %5569 = vmatmul.bf16.gmra.mxu0 %v3705
        %v5570 = vpop.f32.mrf.mxu0
        %v5571 = vadd.f32 %v5482, %v5570
        %v5572 = vpop.f32.mrf.mxu0
        %v5573 = vadd.f32 %v5484, %v5572
        %5574 = vmatmul.bf16.gmra.mxu0 %v3706
        %v5575 = vpop.f32.mrf.mxu0
        %v5576 = vadd.f32 %v5487, %v5575
        %v5577 = vpop.f32.mrf.mxu0
        %v5578 = vadd.f32 %v5489, %v5577
        %5579 = vmatmul.bf16.gmra.mxu0 %v3707
        %v5580 = vpop.f32.mrf.mxu0
        %v5581 = vadd.f32 %v5492, %v5580
        %v5582 = vpop.f32.mrf.mxu0
        %v5583 = vadd.f32 %v5494, %v5582
        %5584 = vmatmul.bf16.gmra.mxu0 %v3708
        %v5585 = vpop.f32.mrf.mxu0
        %v5586 = vadd.f32 %v5497, %v5585
        %v5587 = vpop.f32.mrf.mxu0
        %v5588 = vadd.f32 %v5499, %v5587
        %5589 = vmatmul.bf16.gmra.mxu0 %v3709
        %v5590 = vpop.f32.mrf.mxu0
        %v5591 = vadd.f32 %v5502, %v5590
        %v5592 = vpop.f32.mrf.mxu0
        %v5593 = vadd.f32 %v5504, %v5592
        %5594 = vmatmul.bf16.gmra.mxu0 %v3710
        %v5595 = vpop.f32.mrf.mxu0
        %v5596 = vadd.f32 %v5507, %v5595
        %v5597 = vpop.f32.mrf.mxu0
        %v5598 = vadd.f32 %v5509, %v5597
        %5599 = vmatmul.bf16.gmra.mxu0 %v3711
        %v5600 = vpop.f32.mrf.mxu0
        %v5601 = vadd.f32 %v5512, %v5600
        %v5602 = vpop.f32.mrf.mxu0
        %v5603 = vadd.f32 %v5514, %v5602
        %5604 = vmatmul.bf16.gmra.mxu0 %v3712
        %v5605 = vpop.f32.mrf.mxu0
        %v5606 = vadd.f32 %v5517, %v5605
        %v5607 = vpop.f32.mrf.mxu0
        %v5608 = vadd.f32 %v5519, %v5607
        %5609 = vmatmul.bf16.gmra.mxu0 %v3713
        %v5610 = vpop.f32.mrf.mxu0
        %v5611 = vadd.f32 %v5522, %v5610
        %v5612 = vpop.f32.mrf.mxu0
        %v5613 = vadd.f32 %v5524, %v5612
        %5614 = vmatmul.bf16.gmra.mxu0 %v3714
        %v5615 = vpop.f32.mrf.mxu0
        %v5616 = vadd.f32 %v5527, %v5615
        %v5617 = vpop.f32.mrf.mxu0
        %v5618 = vadd.f32 %v5529, %v5617
        %5619 = vmatmul.bf16.gmra.mxu0 %v3715
        %v5620 = vpop.f32.mrf.mxu0
        %v5621 = vadd.f32 %v5532, %v5620
        %v5622 = vpop.f32.mrf.mxu0
        %v5623 = vadd.f32 %v5534, %v5622
        %5624 = vmatmul.bf16.gmra.mxu0 %v4056
        %v5625 = vpop.f32.mrf.mxu0
        %v5626 = vadd.f32 %v5537, %v5625
        %v5627 = vpop.f32.mrf.mxu0
        %v5628 = vadd.f32 %v5539, %v5627
        %5629 = vmatmul.bf16.gmra.mxu0 %v4082
        %v5630 = vpop.f32.mrf.mxu0
        %v5631 = vadd.f32 %v5542, %v5630
        %v5632 = vpop.f32.mrf.mxu0
        %v5633 = vadd.f32 %v5544, %v5632
        %5634 = vdwg.mxu0
        %5635 = vmatpush.bf16.msra.mxu0 %v4931
        %5636 = vmatpush.bf16.msra.mxu0 %v4930
        %5637 = vmatpush.bf16.msra.mxu0 %v4929
        %5638 = vmatpush.bf16.msra.mxu0 %v4928
        %5639 = vmatpush.bf16.msra.mxu0 %v4927
        %5640 = vmatpush.bf16.msra.mxu0 %v4926
        %5641 = vmatpush.bf16.msra.mxu0 %v4925
        %5642 = vmatpush.bf16.msra.mxu0 %v4924
        %5643 = vmatmul.bf16.gmra.mxu0 %v3815
        %v5644 = vpop.f32.mrf.mxu0
        %v5645 = vadd.f32 %v5556, %v5644
        %v5646 = vpop.f32.mrf.mxu0
        %v5647 = vadd.f32 %v5558, %v5646
        %5648 = vmatmul.bf16.gmra.mxu0 %v3827
        %v5649 = vpop.f32.mrf.mxu0
        %v5650 = vadd.f32 %v5561, %v5649
        %v5651 = vpop.f32.mrf.mxu0
        %v5652 = vadd.f32 %v5563, %v5651
        %5653 = vmatmul.bf16.gmra.mxu0 %v3839
        %v5654 = vpop.f32.mrf.mxu0
        %v5655 = vadd.f32 %v5566, %v5654
        %v5656 = vpop.f32.mrf.mxu0
        %v5657 = vadd.f32 %v5568, %v5656
        %5658 = vmatmul.bf16.gmra.mxu0 %v3851
        %v5659 = vpop.f32.mrf.mxu0
        %v5660 = vadd.f32 %v5571, %v5659
        %v5661 = vpop.f32.mrf.mxu0
        %v5662 = vadd.f32 %v5573, %v5661
        %5663 = vmatmul.bf16.gmra.mxu0 %v3863
        %v5664 = vpop.f32.mrf.mxu0
        %v5665 = vadd.f32 %v5576, %v5664
        %v5666 = vpop.f32.mrf.mxu0
        %v5667 = vadd.f32 %v5578, %v5666
        %5668 = vmatmul.bf16.gmra.mxu0 %v3875
        %v5669 = vpop.f32.mrf.mxu0
        %v5670 = vadd.f32 %v5581, %v5669
        %v5671 = vpop.f32.mrf.mxu0
        %v5672 = vadd.f32 %v5583, %v5671
        %5673 = vmatmul.bf16.gmra.mxu0 %v3887
        %v5674 = vpop.f32.mrf.mxu0
        %v5675 = vadd.f32 %v5586, %v5674
        %v5676 = vpop.f32.mrf.mxu0
        %v5677 = vadd.f32 %v5588, %v5676
        %5678 = vmatmul.bf16.gmra.mxu0 %v3899
        %v5679 = vpop.f32.mrf.mxu0
        %v5680 = vadd.f32 %v5591, %v5679
        %v5681 = vpop.f32.mrf.mxu0
        %v5682 = vadd.f32 %v5593, %v5681
        %5683 = vmatmul.bf16.gmra.mxu0 %v3911
        %v5684 = vpop.f32.mrf.mxu0
        %v5685 = vadd.f32 %v5596, %v5684
        %v5686 = vpop.f32.mrf.mxu0
        %v5687 = vadd.f32 %v5598, %v5686
        %5688 = vmatmul.bf16.gmra.mxu0 %v3923
        %v5689 = vpop.f32.mrf.mxu0
        %v5690 = vadd.f32 %v5601, %v5689
        %v5691 = vpop.f32.mrf.mxu0
        %v5692 = vadd.f32 %v5603, %v5691
        %5693 = vmatmul.bf16.gmra.mxu0 %v3935
        %v5694 = vpop.f32.mrf.mxu0
        %v5695 = vadd.f32 %v5606, %v5694
        %v5696 = vpop.f32.mrf.mxu0
        %v5697 = vadd.f32 %v5608, %v5696
        %5698 = vmatmul.bf16.gmra.mxu0 %v3947
        %v5699 = vpop.f32.mrf.mxu0
        %v5700 = vadd.f32 %v5611, %v5699
        %v5701 = vpop.f32.mrf.mxu0
        %v5702 = vadd.f32 %v5613, %v5701
        %5703 = vmatmul.bf16.gmra.mxu0 %v3959
        %v5704 = vpop.f32.mrf.mxu0
        %v5705 = vadd.f32 %v5616, %v5704
        %v5706 = vpop.f32.mrf.mxu0
        %v5707 = vadd.f32 %v5618, %v5706
        %5708 = vmatmul.bf16.gmra.mxu0 %v3971
        %v5709 = vpop.f32.mrf.mxu0
        %v5710 = vadd.f32 %v5621, %v5709
        %v5711 = vpop.f32.mrf.mxu0
        %v5712 = vadd.f32 %v5623, %v5711
        %5713 = vmatmul.bf16.gmra.mxu0 %v4072
        %v5714 = vpop.f32.mrf.mxu0
        %v5715 = vadd.f32 %v5626, %v5714
        %v5716 = vpop.f32.mrf.mxu0
        %v5717 = vadd.f32 %v5628, %v5716
        %5718 = vmatmul.bf16.gmra.mxu0 %v4098
        %v5719 = vpop.f32.mrf.mxu0
        %v5720 = vadd.f32 %v5631, %v5719
        %v5721 = vpop.f32.mrf.mxu0
        %v5722 = vadd.f32 %v5633, %v5721
        %5723 = vdwg.mxu0
        %5724 = vmatpush.bf16.msra.mxu0 %v4939
        %5725 = vmatpush.bf16.msra.mxu0 %v4938
        %5726 = vmatpush.bf16.msra.mxu0 %v4937
        %5727 = vmatpush.bf16.msra.mxu0 %v4936
        %5728 = vmatpush.bf16.msra.mxu0 %v4935
        %5729 = vmatpush.bf16.msra.mxu0 %v4934
        %5730 = vmatpush.bf16.msra.mxu0 %v4933
        %5731 = vmatpush.bf16.msra.mxu0 %v4932
        %5732 = vmatmul.bf16.gmra.mxu0 %v3996
        %v5733 = vpop.f32.mrf.mxu0
        %v5734 = vadd.f32 %v5645, %v5733
        %v5735 = vpop.f32.mrf.mxu0
        %v5736 = vadd.f32 %v5647, %v5735
        %5737 = vmatmul.bf16.gmra.mxu0 %v3999
        %v5738 = vpop.f32.mrf.mxu0
        %v5739 = vadd.f32 %v5650, %v5738
        %v5740 = vpop.f32.mrf.mxu0
        %v5741 = vadd.f32 %v5652, %v5740
        %5742 = vmatmul.bf16.gmra.mxu0 %v4002
        %v5743 = vpop.f32.mrf.mxu0
        %v5744 = vadd.f32 %v5655, %v5743
        %v5745 = vpop.f32.mrf.mxu0
        %v5746 = vadd.f32 %v5657, %v5745
        %5747 = vmatmul.bf16.gmra.mxu0 %v4005
        %v5748 = vpop.f32.mrf.mxu0
        %v5749 = vadd.f32 %v5660, %v5748
        %v5750 = vpop.f32.mrf.mxu0
        %v5751 = vadd.f32 %v5662, %v5750
        %5752 = vmatmul.bf16.gmra.mxu0 %v4008
        %v5753 = vpop.f32.mrf.mxu0
        %v5754 = vadd.f32 %v5665, %v5753
        %v5755 = vpop.f32.mrf.mxu0
        %v5756 = vadd.f32 %v5667, %v5755
        %5757 = vmatmul.bf16.gmra.mxu0 %v4011
        %v5758 = vpop.f32.mrf.mxu0
        %v5759 = vadd.f32 %v5670, %v5758
        %v5760 = vpop.f32.mrf.mxu0
        %v5761 = vadd.f32 %v5672, %v5760
        %5762 = vmatmul.bf16.gmra.mxu0 %v4014
        %v5763 = vpop.f32.mrf.mxu0
        %v5764 = vadd.f32 %v5675, %v5763
        %v5765 = vpop.f32.mrf.mxu0
        %v5766 = vadd.f32 %v5677, %v5765
        %5767 = vmatmul.bf16.gmra.mxu0 %v4017
        %v5768 = vpop.f32.mrf.mxu0
        %v5769 = vadd.f32 %v5680, %v5768
        %v5770 = vpop.f32.mrf.mxu0
        %v5771 = vadd.f32 %v5682, %v5770
        %5772 = vmatmul.bf16.gmra.mxu0 %v4020
        %v5773 = vpop.f32.mrf.mxu0
        %v5774 = vadd.f32 %v5685, %v5773
        %v5775 = vpop.f32.mrf.mxu0
        %v5776 = vadd.f32 %v5687, %v5775
        %5777 = vmatmul.bf16.gmra.mxu0 %v4023
        %v5778 = vpop.f32.mrf.mxu0
        %v5779 = vadd.f32 %v5690, %v5778
        %v5780 = vpop.f32.mrf.mxu0
        %v5781 = vadd.f32 %v5692, %v5780
        %5782 = vmatmul.bf16.gmra.mxu0 %v4026
        %v5783 = vpop.f32.mrf.mxu0
        %v5784 = vadd.f32 %v5695, %v5783
        %v5785 = vpop.f32.mrf.mxu0
        %v5786 = vadd.f32 %v5697, %v5785
        %5787 = vmatmul.bf16.gmra.mxu0 %v4029
        %v5788 = vpop.f32.mrf.mxu0
        %v5789 = vadd.f32 %v5700, %v5788
        %v5790 = vpop.f32.mrf.mxu0
        %v5791 = vadd.f32 %v5702, %v5790
        %5792 = vmatmul.bf16.gmra.mxu0 %v4032
        %v5793 = vpop.f32.mrf.mxu0
        %v5794 = vadd.f32 %v5705, %v5793
        %v5795 = vpop.f32.mrf.mxu0
        %v5796 = vadd.f32 %v5707, %v5795
        %5797 = vmatmul.bf16.gmra.mxu0 %v4035
        %v5798 = vpop.f32.mrf.mxu0
        %v5799 = vadd.f32 %v5710, %v5798
        %v5800 = vpop.f32.mrf.mxu0
        %v5801 = vadd.f32 %v5712, %v5800
        %5802 = vmatmul.bf16.gmra.mxu0 %v4076
        %v5803 = vpop.f32.mrf.mxu0
        %v5804 = vadd.f32 %v5715, %v5803
        %v5805 = vpop.f32.mrf.mxu0
        %v5806 = vadd.f32 %v5717, %v5805
        %5807 = vmatmul.bf16.gmra.mxu0 %v4102
        %v5808 = vpop.f32.mrf.mxu0
        %v5809 = vadd.f32 %v5720, %v5808
        %v5810 = vpop.f32.mrf.mxu0
        %v5811 = vadd.f32 %v5722, %v5810
        %5812 = vdwg.mxu0
        %v5813 = vmax.f32 %v5734, 0.0
        %v5814 = vmax.f32 %v5736, 0.0
        %v5815 = vmax.f32 %v5739, 0.0
        %v5816 = vmax.f32 %v5741, 0.0
        %v5817 = vmax.f32 %v5744, 0.0
        %v5818 = vmax.f32 %v5746, 0.0
        %v5819 = vmax.f32 %v5749, 0.0
        %v5820 = vmax.f32 %v5751, 0.0
        %v5821 = vmax.f32 %v5754, 0.0
        %v5822 = vmax.f32 %v5756, 0.0
        %v5823 = vmax.f32 %v5759, 0.0
        %v5824 = vmax.f32 %v5761, 0.0
        %v5825 = vmax.f32 %v5764, 0.0
        %v5826 = vmax.f32 %v5766, 0.0
        %v5827 = vmax.f32 %v5769, 0.0
        %v5828 = vmax.f32 %v5771, 0.0
        %v5829 = vmax.f32 %v5774, 0.0
        %v5830 = vmax.f32 %v5776, 0.0
        %v5831 = vmax.f32 %v5779, 0.0
        %v5832 = vmax.f32 %v5781, 0.0
        %v5833 = vmax.f32 %v5784, 0.0
        %v5834 = vmax.f32 %v5786, 0.0
        %v5835 = vmax.f32 %v5789, 0.0
        %v5836 = vmax.f32 %v5791, 0.0
        %v5837 = vmax.f32 %v5794, 0.0
        %v5838 = vmax.f32 %v5796, 0.0
        %v5839 = vmax.f32 %v5799, 0.0
        %v5840 = vmax.f32 %v5801, 0.0
        %v5841 = vmax.f32 %v5804, 0.0
        %v5842 = vmax.f32 %v5806, 0.0
        %v5843 = vmax.f32 %v5809, 0.0
        %v5844 = vmax.f32 %v5811, 0.0
        %v5845 = vpack.c.bf16 %v5813, %v5813
        %v5846 = vpack.c.bf16 %v5814, %v5814
        %v5847 = vpack.c.bf16 %v5815, %v5815
        %v5848 = vpack.c.bf16 %v5816, %v5816
        %v5849 = vpack.c.bf16 %v5817, %v5817
        %v5850 = vpack.c.bf16 %v5818, %v5818
        %v5851 = vpack.c.bf16 %v5819, %v5819
        %v5852 = vpack.c.bf16 %v5820, %v5820
        %v5853 = vpack.c.bf16 %v5821, %v5821
        %v5854 = vpack.c.bf16 %v5822, %v5822
        %v5855 = vpack.c.bf16 %v5823, %v5823
        %v5856 = vpack.c.bf16 %v5824, %v5824
        %v5857 = vpack.c.bf16 %v5825, %v5825
        %v5858 = vpack.c.bf16 %v5826, %v5826
        %v5859 = vpack.c.bf16 %v5827, %v5827
        %v5860 = vpack.c.bf16 %v5828, %v5828
        %v5861 = vpack.c.bf16 %v5829, %v5829
        %v5862 = vpack.c.bf16 %v5830, %v5830
        %v5863 = vpack.c.bf16 %v5831, %v5831
        %v5864 = vpack.c.bf16 %v5832, %v5832
        %v5865 = vpack.c.bf16 %v5833, %v5833
        %v5866 = vpack.c.bf16 %v5834, %v5834
        %v5867 = vpack.c.bf16 %v5835, %v5835
        %v5868 = vpack.c.bf16 %v5836, %v5836
        %v5869 = vpack.c.bf16 %v5837, %v5837
        %v5870 = vpack.c.bf16 %v5838, %v5838
        %v5871 = vpack.c.bf16 %v5839, %v5839
        %v5872 = vpack.c.bf16 %v5840, %v5840
        %v5873 = vpack.c.bf16 %v5841, %v5841
        %v5874 = vpack.c.bf16 %v5842, %v5842
        %v5875 = vpack.c.bf16 %v5843, %v5843
        %v5876 = vpack.c.bf16 %v5844, %v5844
        %5877 = vst [vmem:[%s204] sm:$0xf] %v5845
        %5878 = vst [vmem:[%s204 + $0x4] sm:$0xf] %v5846
        %5879 = vst [vmem:[%s204 + $0x8] sm:$0xf] %v5847
        %5880 = vst [vmem:[%s204 + $0xc] sm:$0xf] %v5848
        %5881 = vst [vmem:[%s204 + $0x10] sm:$0xf] %v5849
        %5882 = vst [vmem:[%s204 + $0x14] sm:$0xf] %v5850
        %5883 = vst [vmem:[%s204 + $0x18] sm:$0xf] %v5851
        %5884 = vst [vmem:[%s204 + $0x1c] sm:$0xf] %v5852
        %5885 = vst [vmem:[%s204 + $0x20] sm:$0xf] %v5853
        %5886 = vst [vmem:[%s204 + $0x24] sm:$0xf] %v5854
        %5887 = vst [vmem:[%s204 + $0x28] sm:$0xf] %v5855
        %5888 = vst [vmem:[%s204 + $0x2c] sm:$0xf] %v5856
        %5889 = vst [vmem:[%s204 + $0x30] sm:$0xf] %v5857
        %5890 = vst [vmem:[%s204 + $0x34] sm:$0xf] %v5858
        %5891 = vst [vmem:[%s204 + $0x38] sm:$0xf] %v5859
        %5892 = vst [vmem:[%s204 + $0x3c] sm:$0xf] %v5860
        %5893 = vst [vmem:[%s204 + $0x40] sm:$0xf] %v5861
        %5894 = vst [vmem:[%s204 + $0x44] sm:$0xf] %v5862
        %5895 = vst [vmem:[%s204 + $0x48] sm:$0xf] %v5863
        %5896 = vst [vmem:[%s204 + $0x4c] sm:$0xf] %v5864
        %5897 = vst [vmem:[%s204 + $0x50] sm:$0xf] %v5865
        %5898 = vst [vmem:[%s204 + $0x54] sm:$0xf] %v5866
        %5899 = vst [vmem:[%s204 + $0x58] sm:$0xf] %v5867
        %5900 = vst [vmem:[%s204 + $0x5c] sm:$0xf] %v5868
        %5901 = vst [vmem:[%s204 + $0x60] sm:$0xf] %v5869
        %5902 = vst [vmem:[%s204 + $0x64] sm:$0xf] %v5870
        %5903 = vst [vmem:[%s204 + $0x68] sm:$0xf] %v5871
        %5904 = vst [vmem:[%s204 + $0x6c] sm:$0xf] %v5872
        %5905 = vst [vmem:[%s204 + $0x70] sm:$0xf] %v5873
        %5906 = vst [vmem:[%s204 + $0x74] sm:$0xf] %v5874
        %5907 = vst [vmem:[%s204 + $0x78] sm:$0xf] %v5875
        %5908 = vst [vmem:[%s204 + $0x7c] sm:$0xf] %v5876
        %s5909 = sand.u32 %s129, 1
        %s5910 = scalar_lea.sflag [#allocation3], %s5909
        %s5911 = sand.u32 %s129, 1
        %s5912 = smul.addr %s5911, 128
        %s5913 = scalar_lea.vmem [#allocation2], %s5912
        // Predicated region
        $region37: #{basic_block_forward_nhwc.1} parent=35 // pred_check
          %p5914 = pneg %p139
        $region38: #{basic_block_forward_nhwc.1} parent=35 // pred_check_branch
          %5916 = sbr.rel (%p5914) target = $region40
        $region39: #{basic_block_forward_nhwc.1} parent=35 // pred_region
          %s5917 = smul.u32 16, %s23
          %5919 = vsyncadd %s5910, 0
          %s5920 = smul.addr %s5917, 2
          %s5921 = smul.addr %s22, 32
          %s5922 = sadd.s32 %s5920, %s5921
          %s5923 = smul.addr %s5922, 4
          %s5924 = scalar_lea.hbm %s4, %s5923
          %s5925 = sshll.u32 %s5913, 4
          %s5926 = int_to_ptr.vmem [resolvable:$true] %s5925
          %s5927 = sshll.u32 %s5924, 4
          %s5928 = int_to_ptr.hbm [resolvable:$true] %s5927
          %5933 = dma.vmem_to_hbm [thread:$0]  %s5926, 2048, %s5928, %s5910, 64, 64, 4
        $region40: #{basic_block_forward_nhwc.1} parent=35 // pred_fallthru
          _
      $region36: #{basic_block_forward_nhwc.1} parent=5 // pred_fallthru
        _
      %p5934 = scmp.le.s32.totalorder 2, %s13
      // Predicated region
      $region41: #{basic_block_forward_nhwc.1} parent=5 // pred_check
        %p5935 = pneg %p5934
      $region42: #{basic_block_forward_nhwc.1} parent=5 // pred_check_branch
        %5937 = sbr.rel (%p5935) target = $region44
      $region43: #{basic_block_forward_nhwc.1} parent=5 // pred_region
        %s5938 = ssub.s32 %s13, 2
        // Predicated region
        $region45: #{basic_block_forward_nhwc.1} parent=43 // pred_check
          %p5939 = pneg %p145
        $region46: #{basic_block_forward_nhwc.1} parent=43 // pred_check_branch
          %5941 = sbr.rel (%p5939) target = $region48
        $region47: #{basic_block_forward_nhwc.1} parent=43 // pred_region
          %s5942 = sand.u32 %s130, 1
          %s5943 = scalar_lea.sflag [#allocation3], %s5942
          %s5944 = sand.u32 %s130, 1
          %s5945 = smul.addr %s5944, 128
          %s5946 = scalar_lea.vmem [#allocation2], %s5945
          %5948 = dma.done %s5943, 2048
        $region48: #{basic_block_forward_nhwc.1} parent=43 // pred_fallthru
          _
      $region44: #{basic_block_forward_nhwc.1} parent=5 // pred_fallthru
        _
    $region6: #{basic_block_forward_nhwc.1} parent=1 // loop_footer
      %s17 = sadd.s32 1, %s13
    $region7: #{basic_block_forward_nhwc.1} parent=1 // loop_footer_branch
      %12 = sbr.rel target = $region3
    $region8: #{basic_block_forward_nhwc.1} parent=1 // loop_exit
      _
    %5949 = vsyncpa [#allocation3], 1
    %s5950 = scalar_lea.sflag [#allocation3], 1
    %5951 = vsyncpa %s5950, 1

</llo_original>
